<compile_context>
chip_gen: v7x
topology: tpu7x:2x2x1
jax: 0.10.0
libtpu: 0.0.40
codegen_flags: <defaults>
</compile_context>

<pallas_src>
import functools
import math

import jax
import jax.numpy as jnp
from jax.experimental import pallas as pl
from jax.experimental.pallas import tpu as pltpu


# -----------------------------------------------------------------------------
# In-kernel helpers (traced inside the Pallas kernel body)
# -----------------------------------------------------------------------------
def _mha(xq, xkv, w, b, num_heads):
    """Multi-head cross attention for the whole batch.

    xq : (B, Sq, D)   query-side activations
    xkv: (B, Sk, D)   key/value-side activations
    w  : (4, D, D)    [Wq, Wk, Wv, Wo] stored as [in, out]
    b  : (4, D)       [bq, bk, bv, bo]
    """
    Bq, Sq, D = xq.shape
    Bk, Sk, _ = xkv.shape
    dh = D // num_heads
    scale = 1.0 / math.sqrt(dh)

    # Single flattened projection matmul per weight (no per-batch grid).
    q = jnp.dot(xq.reshape(Bq * Sq, D), w[0],
                preferred_element_type=jnp.float32) + b[0:1, :]
    k = jnp.dot(xkv.reshape(Bk * Sk, D), w[1],
                preferred_element_type=jnp.float32) + b[1:2, :]
    v = jnp.dot(xkv.reshape(Bk * Sk, D), w[2],
                preferred_element_type=jnp.float32) + b[2:3, :]
    q = q.reshape(Bq, Sq, D)
    k = k.reshape(Bk, Sk, D)
    v = v.reshape(Bk, Sk, D)

    head_outs = []
    for h in range(num_heads):            # static unroll; dots absorb transposes
        qh = q[:, :, h * dh:(h + 1) * dh]     # (B, Sq, dh)
        kh = k[:, :, h * dh:(h + 1) * dh]     # (B, Sk, dh)
        vh = v[:, :, h * dh:(h + 1) * dh]     # (B, Sk, dh)
        s = jnp.einsum('bqd,bkd->bqk', qh, kh,
                       preferred_element_type=jnp.float32) * scale
        s = s - jnp.max(s, axis=-1, keepdims=True)
        p = jnp.exp(s)
        p = p * pl.reciprocal(jnp.sum(p, axis=-1, keepdims=True), approx=True)
        head_outs.append(jnp.einsum('bqk,bkd->bqd', p, vh,
                                    preferred_element_type=jnp.float32))

    concat = jnp.concatenate(head_outs, axis=-1)          # (B, Sq, D)
    out = jnp.dot(concat.reshape(Bq * Sq, D), w[3],
                  preferred_element_type=jnp.float32) + b[3:4, :]
    return out.reshape(Bq, Sq, D)


def _ffn_addnorm(a, w, b, ln):
    """LayerNorm(FFN(a) + a) for the whole batch.

    a : (B, S, D)
    w : (2, D, D)  [W1, W2],  b: (2, D)  [b1, b2]
    ln: (2, D)     [gamma, beta]
    """
    B, S, D = a.shape
    a2 = a.reshape(B * S, D)
    h = jnp.dot(a2, w[0], preferred_element_type=jnp.float32) + b[0:1, :]
    h = jnp.where(h > 0, h, 0.01 * h)                     # LeakyReLU(0.01)
    y = jnp.dot(h, w[1], preferred_element_type=jnp.float32) + b[1:2, :]

    z = y + a2                                            # residual add
    mean = jnp.mean(z, axis=-1, keepdims=True)
    var = jnp.mean(jnp.square(z - mean), axis=-1, keepdims=True)
    zn = (z - mean) * jax.lax.rsqrt(var + 1e-5)           # eps matches nn.LayerNorm
    out = zn * ln[0:1, :] + ln[1:2, :]
    return out.reshape(B, S, D)


# -----------------------------------------------------------------------------
# Fused kernel: one grid step == one full cross-attention layer
# -----------------------------------------------------------------------------
def _cross_attn_layers_kernel(x1_ref, x2_ref,
                              wa1_ref, ba1_ref, wa2_ref, ba2_ref,
                              wf1_ref, bf1_ref, ln1_ref,
                              wf2_ref, bf2_ref, ln2_ref,
                              y1_ref, y2_ref, *, num_heads):
    l = pl.program_id(0)

    # Layer 0: initialize the VMEM-resident carry (output blocks) from inputs.
    @pl.when(l == 0)
    def _():
        y1_ref[...] = x1_ref[...]
        y2_ref[...] = x2_ref[...]

    x1 = y1_ref[...].astype(jnp.float32)   # (B, S1, D)
    x2 = y2_ref[...].astype(jnp.float32)   # (B, S2, D)

    attn1 = _mha(x1, x2, wa1_ref[0], ba1_ref[0], num_heads)
    x1 = _ffn_addnorm(attn1, wf1_ref[0], bf1_ref[0], ln1_ref[0])
    attn2 = _mha(x2, x1, wa2_ref[0], ba2_ref[0], num_heads)
    x2 = _ffn_addnorm(attn2, wf2_ref[0], bf2_ref[0], ln2_ref[0])

    y1_ref[...] = x1.astype(y1_ref.dtype)
    y2_ref[...] = x2.astype(y2_ref.dtype)


# -----------------------------------------------------------------------------
# pallas_call wrapper (single launch for the whole multi-layer forward)
# -----------------------------------------------------------------------------
def multi_head_cross_attention(x1, x2, params, num_heads):
    B, S1, D = x1.shape
    _, S2, _ = x2.shape
    L = params["wa1"].shape[0]

    def per_layer(arr):
        # Block over the stacked-layer axis; index_map selects layer l.
        nd = arr.ndim
        return pl.BlockSpec((1,) + arr.shape[1:],
                            lambda l: (l,) + (0,) * (nd - 1))

    def whole(shape):
        # Whole-array block, constant across the layer axis (resident in VMEM).
        nd = len(shape)
        return pl.BlockSpec(shape, lambda l: (0,) * nd)

    kernel = functools.partial(_cross_attn_layers_kernel, num_heads=num_heads)

    return pl.pallas_call(
        kernel,
        out_shape=(jax.ShapeDtypeStruct((B, S1, D), x1.dtype),
                   jax.ShapeDtypeStruct((B, S2, D), x2.dtype)),
        grid=(L,),
        in_specs=[
            whole((B, S1, D)),
            whole((B, S2, D)),
            per_layer(params["wa1"]), per_layer(params["ba1"]),
            per_layer(params["wa2"]), per_layer(params["ba2"]),
            per_layer(params["wf1"]), per_layer(params["bf1"]),
            per_layer(params["ln1"]),
            per_layer(params["wf2"]), per_layer(params["bf2"]),
            per_layer(params["ln2"]),
        ],
        out_specs=(whole((B, S1, D)), whole((B, S2, D))),
        compiler_params=pltpu.CompilerParams(
            dimension_semantics=("arbitrary",)),   # layers carry state -> serial
    )(x1, x2,
      params["wa1"], params["ba1"], params["wa2"], params["ba2"],
      params["wf1"], params["bf1"], params["ln1"],
      params["wf2"], params["bf2"], params["ln2"])


# -----------------------------------------------------------------------------
# Parameter construction (deterministic, synthetic), stacked over layers
# -----------------------------------------------------------------------------
def init_cross_attention_params(key, hid_dim, layer_num):
    def linear(k):
        k1, k2 = jax.random.split(k)
        w = jax.random.normal(k1, (hid_dim, hid_dim), jnp.float32) * 0.05
        b = jax.random.normal(k2, (hid_dim,), jnp.float32) * 0.01
        return w, b

    def stack_linears(keys):
        ws, bs = zip(*(linear(k) for k in keys))
        return jnp.stack(ws), jnp.stack(bs)

    ln_block = jnp.stack([jnp.ones((hid_dim,), jnp.float32),
                          jnp.zeros((hid_dim,), jnp.float32)])  # [gamma, beta]

    wa1, ba1, wa2, ba2 = [], [], [], []
    wf1, bf1, wf2, bf2 = [], [], [], []
    ln1, ln2 = [], []
    for _ in range(layer_num):
        key, *ks = jax.random.split(key, 13)
        w, b = stack_linears(ks[0:4]);   wa1.append(w); ba1.append(b)   # q,k,v,o
        w, b = stack_linears(ks[4:8]);   wa2.append(w); ba2.append(b)
        w, b = stack_linears(ks[8:10]);  wf1.append(w); bf1.append(b)   # W1,W2
        w, b = stack_linears(ks[10:12]); wf2.append(w); bf2.append(b)
        ln1.append(ln_block); ln2.append(ln_block)

    st = lambda xs: jnp.stack(xs, axis=0)
    return dict(wa1=st(wa1), ba1=st(ba1), wa2=st(wa2), ba2=st(ba2),
                wf1=st(wf1), bf1=st(bf1), wf2=st(wf2), bf2=st(bf2),
                ln1=st(ln1), ln2=st(ln2))


# -----------------------------------------------------------------------------
# Pure-JAX reference (mirrors the PyTorch module, eval mode)
# -----------------------------------------------------------------------------
def _mha_ref(xq, xkv, w, b, num_heads):
    B, Sq, D = xq.shape
    dh = D // num_heads

    def split(x):
        return x.reshape(x.shape[0], x.shape[1], num_heads, dh).transpose(0, 2, 1, 3)

    q = split(xq @ w[0] + b[0])
    k = split(xkv @ w[1] + b[1])
    v = split(xkv @ w[2] + b[2])
    s = jnp.einsum('bhqd,bhkd->bhqk', q, k) / math.sqrt(dh)
    p = jax.nn.softmax(s, axis=-1)
    o = jnp.einsum('bhqk,bhkd->bhqd', p, v)
    o = o.transpose(0, 2, 1, 3).reshape(B, Sq, D)
    return o @ w[3] + b[3]


def _ffn_addnorm_ref(a, w, b, ln):
    h = a @ w[0] + b[0]
    h = jnp.where(h > 0, h, 0.01 * h)
    y = h @ w[1] + b[1]
    z = y + a
    mean = z.mean(-1, keepdims=True)
    var = ((z - mean) ** 2).mean(-1, keepdims=True)
    zn = (z - mean) / jnp.sqrt(var + 1e-5)
    return zn * ln[0] + ln[1]


def reference_forward(x1, x2, params, num_heads):
    L = params["wa1"].shape[0]
    for l in range(L):
        a1 = _mha_ref(x1, x2, params["wa1"][l], params["ba1"][l], num_heads)
        x1 = _ffn_addnorm_ref(a1, params["wf1"][l], params["bf1"][l], params["ln1"][l])
        a2 = _mha_ref(x2, x1, params["wa2"][l], params["ba2"][l], num_heads)
        x2 = _ffn_addnorm_ref(a2, params["wf2"][l], params["bf2"][l], params["ln2"][l])
    return x1, x2


# -----------------------------------------------------------------------------
# Main
# -----------------------------------------------------------------------------
if __name__ == "__main__":
    hid_dim = 32
    num_heads = 4
    layer_num = 2
    batch = 2
    seq1 = 8
    seq2 = 16

    key = jax.random.PRNGKey(0)
    kx1, kx2, kp = jax.random.split(key, 3)
    x1 = jax.random.normal(kx1, (batch, seq1, hid_dim), jnp.float32)
    x2 = jax.random.normal(kx2, (batch, seq2, hid_dim), jnp.float32)
    params = init_cross_attention_params(kp, hid_dim, layer_num)

    y1, y2 = multi_head_cross_attention(x1, x2, params, num_heads)
    jax.block_until_ready(y1)
    jax.block_until_ready(y2)

    r1, r2 = reference_forward(x1, x2, params, num_heads)

    assert y1.shape == (batch, seq1, hid_dim)
    assert y2.shape == (batch, seq2, hid_dim)
    assert bool(jnp.all(jnp.isfinite(y1))) and bool(jnp.all(jnp.isfinite(y2)))
    # Loose tolerance: kernel uses the EUP approximate reciprocal for softmax.
    assert bool(jnp.allclose(y1, r1, atol=5e-2, rtol=5e-2))
    assert bool(jnp.allclose(y2, r2, atol=5e-2, rtol=5e-2))
    print("KERNEL_OK")
</pallas_src>

<mosaic_0001>
module attributes {stable_mosaic.version = 11 : i64} {
  func.func @_cross_attn_layers_kernel(%arg0: i32, %arg1: memref<2x8x32xf32, #tpu.memory_space<vmem>>, %arg2: memref<2x16x32xf32, #tpu.memory_space<vmem>>, %arg3: memref<1x4x32x32xf32, #tpu.memory_space<vmem>>, %arg4: memref<1x4x32xf32, #tpu.memory_space<vmem>>, %arg5: memref<1x4x32x32xf32, #tpu.memory_space<vmem>>, %arg6: memref<1x4x32xf32, #tpu.memory_space<vmem>>, %arg7: memref<1x2x32x32xf32, #tpu.memory_space<vmem>>, %arg8: memref<1x2x32xf32, #tpu.memory_space<vmem>>, %arg9: memref<1x2x32xf32, #tpu.memory_space<vmem>>, %arg10: memref<1x2x32x32xf32, #tpu.memory_space<vmem>>, %arg11: memref<1x2x32xf32, #tpu.memory_space<vmem>>, %arg12: memref<1x2x32xf32, #tpu.memory_space<vmem>>, %arg13: memref<2x8x32xf32, #tpu.memory_space<vmem>>, %arg14: memref<2x16x32xf32, #tpu.memory_space<vmem>>) attributes {dimension_semantics = [#tpu.dimension_semantics<arbitrary>], iteration_bounds = array<i64: 2>, scalar_prefetch = 0 : i64, scratch_operands = 0 : i64, tpu.core_type = #tpu.core_type<tc>, window_params = [{pipeline_mode = #tpu.pipeline_mode<synchronous>, transform_indices = @transform_0, window_bounds = array<i64: 2, 8, 32>}, {pipeline_mode = #tpu.pipeline_mode<synchronous>, transform_indices = @transform_1, window_bounds = array<i64: 2, 16, 32>}, {transform_indices = @transform_2, window_bounds = array<i64: 1, 4, 32, 32>}, {transform_indices = @transform_3, window_bounds = array<i64: 1, 4, 32>}, {transform_indices = @transform_4, window_bounds = array<i64: 1, 4, 32, 32>}, {transform_indices = @transform_5, window_bounds = array<i64: 1, 4, 32>}, {transform_indices = @transform_6, window_bounds = array<i64: 1, 2, 32, 32>}, {transform_indices = @transform_7, window_bounds = array<i64: 1, 2, 32>}, {transform_indices = @transform_8, window_bounds = array<i64: 1, 2, 32>}, {transform_indices = @transform_9, window_bounds = array<i64: 1, 2, 32, 32>}, {transform_indices = @transform_10, window_bounds = array<i64: 1, 2, 32>}, {transform_indices = @transform_11, window_bounds = array<i64: 1, 2, 32>}, {pipeline_mode = #tpu.pipeline_mode<synchronous>, transform_indices = @transform_12, window_bounds = array<i64: 2, 8, 32>}, {pipeline_mode = #tpu.pipeline_mode<synchronous>, transform_indices = @transform_13, window_bounds = array<i64: 2, 16, 32>}]} {
    %c0_i32 = arith.constant 0 : i32
    %0 = arith.cmpi eq, %arg0, %c0_i32 : i32
    %1 = arith.extui %0 : i1 to i32
    %c0_i32_0 = arith.constant 0 : i32
    %2 = arith.cmpi ne, %1, %c0_i32_0 : i32
    scf.if %2 {
      %c0_111 = arith.constant 0 : index
      %c0_112 = arith.constant 0 : index
      %c0_113 = arith.constant 0 : index
      %317 = vector.load %arg1[%c0_111, %c0_112, %c0_113] : memref<2x8x32xf32, #tpu.memory_space<vmem>>, vector<2x8x32xf32>
      %c0_114 = arith.constant 0 : index
      %c0_115 = arith.constant 0 : index
      %c0_116 = arith.constant 0 : index
      %318 = vector.load %arg13[%c0_114, %c0_115, %c0_116] : memref<2x8x32xf32, #tpu.memory_space<vmem>>, vector<2x8x32xf32>
      tpu.vector_store %arg13[%c0_114, %c0_115, %c0_116], %317 {strides = array<i32>} : memref<2x8x32xf32, #tpu.memory_space<vmem>>, vector<2x8x32xf32>,
      %c0_117 = arith.constant 0 : index
      %c0_118 = arith.constant 0 : index
      %c0_119 = arith.constant 0 : index
      %319 = vector.load %arg2[%c0_117, %c0_118, %c0_119] : memref<2x16x32xf32, #tpu.memory_space<vmem>>, vector<2x16x32xf32>
      %c0_120 = arith.constant 0 : index
      %c0_121 = arith.constant 0 : index
      %c0_122 = arith.constant 0 : index
      %320 = vector.load %arg14[%c0_120, %c0_121, %c0_122] : memref<2x16x32xf32, #tpu.memory_space<vmem>>, vector<2x16x32xf32>
      tpu.vector_store %arg14[%c0_120, %c0_121, %c0_122], %319 {strides = array<i32>} : memref<2x16x32xf32, #tpu.memory_space<vmem>>, vector<2x16x32xf32>,
    } else {
    }
    %c0 = arith.constant 0 : index
    %c0_1 = arith.constant 0 : index
    %c0_2 = arith.constant 0 : index
    %3 = vector.load %arg13[%c0, %c0_1, %c0_2] : memref<2x8x32xf32, #tpu.memory_space<vmem>>, vector<2x8x32xf32>
    %c0_3 = arith.constant 0 : index
    %c0_4 = arith.constant 0 : index
    %c0_5 = arith.constant 0 : index
    %4 = vector.load %arg14[%c0_3, %c0_4, %c0_5] : memref<2x16x32xf32, #tpu.memory_space<vmem>>, vector<2x16x32xf32>
    %c0_6 = arith.constant 0 : index
    %c0_7 = arith.constant 0 : index
    %c0_8 = arith.constant 0 : index
    %c0_9 = arith.constant 0 : index
    %5 = vector.load %arg3[%c0_6, %c0_7, %c0_8, %c0_9] : memref<1x4x32x32xf32, #tpu.memory_space<vmem>>, vector<1x4x32x32xf32>
    %6 = vector.shape_cast %5 : vector<1x4x32x32xf32> to vector<4x32x32xf32>
    %c0_10 = arith.constant 0 : index
    %c0_11 = arith.constant 0 : index
    %c0_12 = arith.constant 0 : index
    %7 = vector.load %arg4[%c0_10, %c0_11, %c0_12] : memref<1x4x32xf32, #tpu.memory_space<vmem>>, vector<1x4x32xf32>
    %8 = vector.shape_cast %7 : vector<1x4x32xf32> to vector<4x32xf32>
    %9 = vector.shape_cast %3 : vector<2x8x32xf32> to vector<16x32xf32>
    %10 = vector.extract_strided_slice %6 {offsets = [0, 0, 0], sizes = [1, 32, 32], strides = [1, 1, 1]} : vector<4x32x32xf32> to vector<1x32x32xf32>
    %11 = vector.shape_cast %10 : vector<1x32x32xf32> to vector<32x32xf32>
    %cst = arith.constant dense<0.000000e+00> : vector<16x32xf32>
    %12 = tpu.matmul %9, %11, %cst {dimension_numbers = #tpu.dot_dimension_numbers<[1], [0], [0], [1], [0, 0, 1, 1], [], []>} : vector<16x32xf32>, vector<32x32xf32>, vector<16x32xf32> -> vector<16x32xf32>
    %13 = vector.extract_strided_slice %8 {offsets = [0, 0], sizes = [1, 32], strides = [1, 1]} : vector<4x32xf32> to vector<1x32xf32>
    %14 = vector.broadcast %13 : vector<1x32xf32> to vector<16x32xf32>
    %15 = arith.addf %12, %14 : vector<16x32xf32>
    %16 = vector.shape_cast %4 : vector<2x16x32xf32> to vector<32x32xf32>
    %17 = vector.extract_strided_slice %6 {offsets = [1, 0, 0], sizes = [1, 32, 32], strides = [1, 1, 1]} : vector<4x32x32xf32> to vector<1x32x32xf32>
    %18 = vector.shape_cast %17 : vector<1x32x32xf32> to vector<32x32xf32>
    %cst_13 = arith.constant dense<0.000000e+00> : vector<32x32xf32>
    %19 = tpu.matmul %16, %18, %cst_13 {dimension_numbers = #tpu.dot_dimension_numbers<[1], [0], [0], [1], [0, 0, 1, 1], [], []>} : vector<32x32xf32>, vector<32x32xf32>, vector<32x32xf32> -> vector<32x32xf32>
    %20 = vector.extract_strided_slice %8 {offsets = [1, 0], sizes = [1, 32], strides = [1, 1]} : vector<4x32xf32> to vector<1x32xf32>
    %21 = vector.broadcast %20 : vector<1x32xf32> to vector<32x32xf32>
    %22 = arith.addf %19, %21 : vector<32x32xf32>
    %23 = vector.shape_cast %4 : vector<2x16x32xf32> to vector<32x32xf32>
    %24 = vector.extract_strided_slice %6 {offsets = [2, 0, 0], sizes = [1, 32, 32], strides = [1, 1, 1]} : vector<4x32x32xf32> to vector<1x32x32xf32>
    %25 = vector.shape_cast %24 : vector<1x32x32xf32> to vector<32x32xf32>
    %cst_14 = arith.constant dense<0.000000e+00> : vector<32x32xf32>
    %26 = tpu.matmul %23, %25, %cst_14 {dimension_numbers = #tpu.dot_dimension_numbers<[1], [0], [0], [1], [0, 0, 1, 1], [], []>} : vector<32x32xf32>, vector<32x32xf32>, vector<32x32xf32> -> vector<32x32xf32>
    %27 = vector.extract_strided_slice %8 {offsets = [2, 0], sizes = [1, 32], strides = [1, 1]} : vector<4x32xf32> to vector<1x32xf32>
    %28 = vector.broadcast %27 : vector<1x32xf32> to vector<32x32xf32>
    %29 = arith.addf %26, %28 : vector<32x32xf32>
    %30 = vector.shape_cast %15 : vector<16x32xf32> to vector<2x8x32xf32>
    %31 = vector.shape_cast %22 : vector<32x32xf32> to vector<2x16x32xf32>
    %32 = vector.shape_cast %29 : vector<32x32xf32> to vector<2x16x32xf32>
    %33 = vector.extract_strided_slice %30 {offsets = [0, 0, 0], sizes = [2, 8, 8], strides = [1, 1, 1]} : vector<2x8x32xf32> to vector<2x8x8xf32>
    %34 = vector.extract_strided_slice %31 {offsets = [0, 0, 0], sizes = [2, 16, 8], strides = [1, 1, 1]} : vector<2x16x32xf32> to vector<2x16x8xf32>
    %35 = vector.extract_strided_slice %32 {offsets = [0, 0, 0], sizes = [2, 16, 8], strides = [1, 1, 1]} : vector<2x16x32xf32> to vector<2x16x8xf32>
    "tpu.trace_start"() <{level = 10 : i32, message = "bqd,bkd->bqk"}> : () -> ()
    %cst_15 = arith.constant dense<0.000000e+00> : vector<2x8x16xf32>
    %36 = tpu.matmul %33, %34, %cst_15 {dimension_numbers = #tpu.dot_dimension_numbers<[2], [2], [1], [1], [0, 0, 0, 1, 1, 1], [0], [0]>} : vector<2x8x8xf32>, vector<2x16x8xf32>, vector<2x8x16xf32> -> vector<2x8x16xf32>
    "tpu.trace_stop"() : () -> ()
    %cst_16 = arith.constant 0.353553385 : f32
    %37 = vector.broadcast %cst_16 : f32 to vector<2x8x16xf32>
    %38 = arith.mulf %36, %37 : vector<2x8x16xf32>
    %cst_17 = arith.constant dense<0xFF800000> : vector<2x8xf32>
    %39 = vector.multi_reduction <maximumf>, %38, %cst_17 [2] : vector<2x8x16xf32> to vector<2x8xf32>
    %40 = vector.shape_cast %39 : vector<2x8xf32> to vector<2x8x1xf32>
    %41 = vector.broadcast %40 : vector<2x8x1xf32> to vector<2x8x16xf32>
    %42 = arith.subf %38, %41 : vector<2x8x16xf32>
    %43 = math.exp %42 : vector<2x8x16xf32>
    %cst_18 = arith.constant dense<0.000000e+00> : vector<2x8xf32>
    %44 = vector.multi_reduction <add>, %43, %cst_18 [2] : vector<2x8x16xf32> to vector<2x8xf32>
    %45 = vector.shape_cast %44 : vector<2x8xf32> to vector<2x8x1xf32>
    %46 = tpu.reciprocal %45 {approx = true} : vector<2x8x1xf32> -> vector<2x8x1xf32>
    %47 = vector.broadcast %46 : vector<2x8x1xf32> to vector<2x8x16xf32>
    %48 = arith.mulf %43, %47 : vector<2x8x16xf32>
    "tpu.trace_start"() <{level = 10 : i32, message = "bqk,bkd->bqd"}> : () -> ()
    %cst_19 = arith.constant dense<0.000000e+00> : vector<2x8x8xf32>
    %49 = tpu.matmul %48, %35, %cst_19 {dimension_numbers = #tpu.dot_dimension_numbers<[2], [1], [1], [2], [0, 0, 0, 1, 1, 2], [0], [0]>} : vector<2x8x16xf32>, vector<2x16x8xf32>, vector<2x8x8xf32> -> vector<2x8x8xf32>
    "tpu.trace_stop"() : () -> ()
    %50 = vector.extract_strided_slice %30 {offsets = [0, 0, 8], sizes = [2, 8, 8], strides = [1, 1, 1]} : vector<2x8x32xf32> to vector<2x8x8xf32>
    %51 = vector.extract_strided_slice %31 {offsets = [0, 0, 8], sizes = [2, 16, 8], strides = [1, 1, 1]} : vector<2x16x32xf32> to vector<2x16x8xf32>
    %52 = vector.extract_strided_slice %32 {offsets = [0, 0, 8], sizes = [2, 16, 8], strides = [1, 1, 1]} : vector<2x16x32xf32> to vector<2x16x8xf32>
    "tpu.trace_start"() <{level = 10 : i32, message = "bqd,bkd->bqk"}> : () -> ()
    %cst_20 = arith.constant dense<0.000000e+00> : vector<2x8x16xf32>
    %53 = tpu.matmul %50, %51, %cst_20 {dimension_numbers = #tpu.dot_dimension_numbers<[2], [2], [1], [1], [0, 0, 0, 1, 1, 1], [0], [0]>} : vector<2x8x8xf32>, vector<2x16x8xf32>, vector<2x8x16xf32> -> vector<2x8x16xf32>
    "tpu.trace_stop"() : () -> ()
    %cst_21 = arith.constant 0.353553385 : f32
    %54 = vector.broadcast %cst_21 : f32 to vector<2x8x16xf32>
    %55 = arith.mulf %53, %54 : vector<2x8x16xf32>
    %cst_22 = arith.constant dense<0xFF800000> : vector<2x8xf32>
    %56 = vector.multi_reduction <maximumf>, %55, %cst_22 [2] : vector<2x8x16xf32> to vector<2x8xf32>
    %57 = vector.shape_cast %56 : vector<2x8xf32> to vector<2x8x1xf32>
    %58 = vector.broadcast %57 : vector<2x8x1xf32> to vector<2x8x16xf32>
    %59 = arith.subf %55, %58 : vector<2x8x16xf32>
    %60 = math.exp %59 : vector<2x8x16xf32>
    %cst_23 = arith.constant dense<0.000000e+00> : vector<2x8xf32>
    %61 = vector.multi_reduction <add>, %60, %cst_23 [2] : vector<2x8x16xf32> to vector<2x8xf32>
    %62 = vector.shape_cast %61 : vector<2x8xf32> to vector<2x8x1xf32>
    %63 = tpu.reciprocal %62 {approx = true} : vector<2x8x1xf32> -> vector<2x8x1xf32>
    %64 = vector.broadcast %63 : vector<2x8x1xf32> to vector<2x8x16xf32>
    %65 = arith.mulf %60, %64 : vector<2x8x16xf32>
    "tpu.trace_start"() <{level = 10 : i32, message = "bqk,bkd->bqd"}> : () -> ()
    %cst_24 = arith.constant dense<0.000000e+00> : vector<2x8x8xf32>
    %66 = tpu.matmul %65, %52, %cst_24 {dimension_numbers = #tpu.dot_dimension_numbers<[2], [1], [1], [2], [0, 0, 0, 1, 1, 2], [0], [0]>} : vector<2x8x16xf32>, vector<2x16x8xf32>, vector<2x8x8xf32> -> vector<2x8x8xf32>
    "tpu.trace_stop"() : () -> ()
    %67 = vector.extract_strided_slice %30 {offsets = [0, 0, 16], sizes = [2, 8, 8], strides = [1, 1, 1]} : vector<2x8x32xf32> to vector<2x8x8xf32>
    %68 = vector.extract_strided_slice %31 {offsets = [0, 0, 16], sizes = [2, 16, 8], strides = [1, 1, 1]} : vector<2x16x32xf32> to vector<2x16x8xf32>
    %69 = vector.extract_strided_slice %32 {offsets = [0, 0, 16], sizes = [2, 16, 8], strides = [1, 1, 1]} : vector<2x16x32xf32> to vector<2x16x8xf32>
    "tpu.trace_start"() <{level = 10 : i32, message = "bqd,bkd->bqk"}> : () -> ()
    %cst_25 = arith.constant dense<0.000000e+00> : vector<2x8x16xf32>
    %70 = tpu.matmul %67, %68, %cst_25 {dimension_numbers = #tpu.dot_dimension_numbers<[2], [2], [1], [1], [0, 0, 0, 1, 1, 1], [0], [0]>} : vector<2x8x8xf32>, vector<2x16x8xf32>, vector<2x8x16xf32> -> vector<2x8x16xf32>
    "tpu.trace_stop"() : () -> ()
    %cst_26 = arith.constant 0.353553385 : f32
    %71 = vector.broadcast %cst_26 : f32 to vector<2x8x16xf32>
    %72 = arith.mulf %70, %71 : vector<2x8x16xf32>
    %cst_27 = arith.constant dense<0xFF800000> : vector<2x8xf32>
    %73 = vector.multi_reduction <maximumf>, %72, %cst_27 [2] : vector<2x8x16xf32> to vector<2x8xf32>
    %74 = vector.shape_cast %73 : vector<2x8xf32> to vector<2x8x1xf32>
    %75 = vector.broadcast %74 : vector<2x8x1xf32> to vector<2x8x16xf32>
    %76 = arith.subf %72, %75 : vector<2x8x16xf32>
    %77 = math.exp %76 : vector<2x8x16xf32>
    %cst_28 = arith.constant dense<0.000000e+00> : vector<2x8xf32>
    %78 = vector.multi_reduction <add>, %77, %cst_28 [2] : vector<2x8x16xf32> to vector<2x8xf32>
    %79 = vector.shape_cast %78 : vector<2x8xf32> to vector<2x8x1xf32>
    %80 = tpu.reciprocal %79 {approx = true} : vector<2x8x1xf32> -> vector<2x8x1xf32>
    %81 = vector.broadcast %80 : vector<2x8x1xf32> to vector<2x8x16xf32>
    %82 = arith.mulf %77, %81 : vector<2x8x16xf32>
    "tpu.trace_start"() <{level = 10 : i32, message = "bqk,bkd->bqd"}> : () -> ()
    %cst_29 = arith.constant dense<0.000000e+00> : vector<2x8x8xf32>
    %83 = tpu.matmul %82, %69, %cst_29 {dimension_numbers = #tpu.dot_dimension_numbers<[2], [1], [1], [2], [0, 0, 0, 1, 1, 2], [0], [0]>} : vector<2x8x16xf32>, vector<2x16x8xf32>, vector<2x8x8xf32> -> vector<2x8x8xf32>
    "tpu.trace_stop"() : () -> ()
    %84 = vector.extract_strided_slice %30 {offsets = [0, 0, 24], sizes = [2, 8, 8], strides = [1, 1, 1]} : vector<2x8x32xf32> to vector<2x8x8xf32>
    %85 = vector.extract_strided_slice %31 {offsets = [0, 0, 24], sizes = [2, 16, 8], strides = [1, 1, 1]} : vector<2x16x32xf32> to vector<2x16x8xf32>
    %86 = vector.extract_strided_slice %32 {offsets = [0, 0, 24], sizes = [2, 16, 8], strides = [1, 1, 1]} : vector<2x16x32xf32> to vector<2x16x8xf32>
    "tpu.trace_start"() <{level = 10 : i32, message = "bqd,bkd->bqk"}> : () -> ()
    %cst_30 = arith.constant dense<0.000000e+00> : vector<2x8x16xf32>
    %87 = tpu.matmul %84, %85, %cst_30 {dimension_numbers = #tpu.dot_dimension_numbers<[2], [2], [1], [1], [0, 0, 0, 1, 1, 1], [0], [0]>} : vector<2x8x8xf32>, vector<2x16x8xf32>, vector<2x8x16xf32> -> vector<2x8x16xf32>
    "tpu.trace_stop"() : () -> ()
    %cst_31 = arith.constant 0.353553385 : f32
    %88 = vector.broadcast %cst_31 : f32 to vector<2x8x16xf32>
    %89 = arith.mulf %87, %88 : vector<2x8x16xf32>
    %cst_32 = arith.constant dense<0xFF800000> : vector<2x8xf32>
    %90 = vector.multi_reduction <maximumf>, %89, %cst_32 [2] : vector<2x8x16xf32> to vector<2x8xf32>
    %91 = vector.shape_cast %90 : vector<2x8xf32> to vector<2x8x1xf32>
    %92 = vector.broadcast %91 : vector<2x8x1xf32> to vector<2x8x16xf32>
    %93 = arith.subf %89, %92 : vector<2x8x16xf32>
    %94 = math.exp %93 : vector<2x8x16xf32>
    %cst_33 = arith.constant dense<0.000000e+00> : vector<2x8xf32>
    %95 = vector.multi_reduction <add>, %94, %cst_33 [2] : vector<2x8x16xf32> to vector<2x8xf32>
    %96 = vector.shape_cast %95 : vector<2x8xf32> to vector<2x8x1xf32>
    %97 = tpu.reciprocal %96 {approx = true} : vector<2x8x1xf32> -> vector<2x8x1xf32>
    %98 = vector.broadcast %97 : vector<2x8x1xf32> to vector<2x8x16xf32>
    %99 = arith.mulf %94, %98 : vector<2x8x16xf32>
    "tpu.trace_start"() <{level = 10 : i32, message = "bqk,bkd->bqd"}> : () -> ()
    %cst_34 = arith.constant dense<0.000000e+00> : vector<2x8x8xf32>
    %100 = tpu.matmul %99, %86, %cst_34 {dimension_numbers = #tpu.dot_dimension_numbers<[2], [1], [1], [2], [0, 0, 0, 1, 1, 2], [0], [0]>} : vector<2x8x16xf32>, vector<2x16x8xf32>, vector<2x8x8xf32> -> vector<2x8x8xf32>
    "tpu.trace_stop"() : () -> ()
    %101 = tpu.concatenate %49, %66, %83, %100 in 2 : vector<2x8x8xf32>, vector<2x8x8xf32>, vector<2x8x8xf32>, vector<2x8x8xf32> -> vector<2x8x32xf32>
    %102 = vector.shape_cast %101 : vector<2x8x32xf32> to vector<16x32xf32>
    %103 = vector.extract_strided_slice %6 {offsets = [3, 0, 0], sizes = [1, 32, 32], strides = [1, 1, 1]} : vector<4x32x32xf32> to vector<1x32x32xf32>
    %104 = vector.shape_cast %103 : vector<1x32x32xf32> to vector<32x32xf32>
    %cst_35 = arith.constant dense<0.000000e+00> : vector<16x32xf32>
    %105 = tpu.matmul %102, %104, %cst_35 {dimension_numbers = #tpu.dot_dimension_numbers<[1], [0], [0], [1], [0, 0, 1, 1], [], []>} : vector<16x32xf32>, vector<32x32xf32>, vector<16x32xf32> -> vector<16x32xf32>
    %106 = vector.extract_strided_slice %8 {offsets = [3, 0], sizes = [1, 32], strides = [1, 1]} : vector<4x32xf32> to vector<1x32xf32>
    %107 = vector.broadcast %106 : vector<1x32xf32> to vector<16x32xf32>
    %108 = arith.addf %105, %107 : vector<16x32xf32>
    %109 = vector.shape_cast %108 : vector<16x32xf32> to vector<2x8x32xf32>
    %c0_36 = arith.constant 0 : index
    %c0_37 = arith.constant 0 : index
    %c0_38 = arith.constant 0 : index
    %c0_39 = arith.constant 0 : index
    %110 = vector.load %arg7[%c0_36, %c0_37, %c0_38, %c0_39] : memref<1x2x32x32xf32, #tpu.memory_space<vmem>>, vector<1x2x32x32xf32>
    %111 = vector.shape_cast %110 : vector<1x2x32x32xf32> to vector<2x32x32xf32>
    %c0_40 = arith.constant 0 : index
    %c0_41 = arith.constant 0 : index
    %c0_42 = arith.constant 0 : index
    %112 = vector.load %arg8[%c0_40, %c0_41, %c0_42] : memref<1x2x32xf32, #tpu.memory_space<vmem>>, vector<1x2x32xf32>
    %113 = vector.shape_cast %112 : vector<1x2x32xf32> to vector<2x32xf32>
    %c0_43 = arith.constant 0 : index
    %c0_44 = arith.constant 0 : index
    %c0_45 = arith.constant 0 : index
    %114 = vector.load %arg9[%c0_43, %c0_44, %c0_45] : memref<1x2x32xf32, #tpu.memory_space<vmem>>, vector<1x2x32xf32>
    %115 = vector.shape_cast %114 : vector<1x2x32xf32> to vector<2x32xf32>
    %116 = vector.shape_cast %109 : vector<2x8x32xf32> to vector<16x32xf32>
    %117 = vector.extract_strided_slice %111 {offsets = [0, 0, 0], sizes = [1, 32, 32], strides = [1, 1, 1]} : vector<2x32x32xf32> to vector<1x32x32xf32>
    %118 = vector.shape_cast %117 : vector<1x32x32xf32> to vector<32x32xf32>
    %cst_46 = arith.constant dense<0.000000e+00> : vector<16x32xf32>
    %119 = tpu.matmul %116, %118, %cst_46 {dimension_numbers = #tpu.dot_dimension_numbers<[1], [0], [0], [1], [0, 0, 1, 1], [], []>} : vector<16x32xf32>, vector<32x32xf32>, vector<16x32xf32> -> vector<16x32xf32>
    %120 = vector.extract_strided_slice %113 {offsets = [0, 0], sizes = [1, 32], strides = [1, 1]} : vector<2x32xf32> to vector<1x32xf32>
    %121 = vector.broadcast %120 : vector<1x32xf32> to vector<16x32xf32>
    %122 = arith.addf %119, %121 : vector<16x32xf32>
    %cst_47 = arith.constant 0.000000e+00 : f32
    %123 = vector.broadcast %cst_47 : f32 to vector<16x32xf32>
    %124 = arith.cmpf ogt, %122, %123 : vector<16x32xf32>
    %cst_48 = arith.constant 0.00999999977 : f32
    %125 = vector.broadcast %cst_48 : f32 to vector<16x32xf32>
    %126 = arith.mulf %125, %122 : vector<16x32xf32>
    %127 = arith.select %124, %122, %126 : vector<16x32xi1>, vector<16x32xf32>
    %128 = vector.extract_strided_slice %111 {offsets = [1, 0, 0], sizes = [1, 32, 32], strides = [1, 1, 1]} : vector<2x32x32xf32> to vector<1x32x32xf32>
    %129 = vector.shape_cast %128 : vector<1x32x32xf32> to vector<32x32xf32>
    %cst_49 = arith.constant dense<0.000000e+00> : vector<16x32xf32>
    %130 = tpu.matmul %127, %129, %cst_49 {dimension_numbers = #tpu.dot_dimension_numbers<[1], [0], [0], [1], [0, 0, 1, 1], [], []>} : vector<16x32xf32>, vector<32x32xf32>, vector<16x32xf32> -> vector<16x32xf32>
    %131 = vector.extract_strided_slice %113 {offsets = [1, 0], sizes = [1, 32], strides = [1, 1]} : vector<2x32xf32> to vector<1x32xf32>
    %132 = vector.broadcast %131 : vector<1x32xf32> to vector<16x32xf32>
    %133 = arith.addf %130, %132 : vector<16x32xf32>
    %134 = arith.addf %133, %116 : vector<16x32xf32>
    %cst_50 = arith.constant dense<0.000000e+00> : vector<16xf32>
    %135 = vector.multi_reduction <add>, %134, %cst_50 [1] : vector<16x32xf32> to vector<16xf32>
    %136 = vector.shape_cast %135 : vector<16xf32> to vector<16x1xf32>
    %cst_51 = arith.constant 3.200000e+01 : f32
    %137 = vector.broadcast %cst_51 : f32 to vector<16x1xf32>
    %138 = arith.divf %136, %137 : vector<16x1xf32>
    %139 = vector.broadcast %138 : vector<16x1xf32> to vector<16x32xf32>
    %140 = arith.subf %134, %139 : vector<16x32xf32>
    %141 = arith.mulf %140, %140 : vector<16x32xf32>
    %cst_52 = arith.constant dense<0.000000e+00> : vector<16xf32>
    %142 = vector.multi_reduction <add>, %141, %cst_52 [1] : vector<16x32xf32> to vector<16xf32>
    %143 = vector.shape_cast %142 : vector<16xf32> to vector<16x1xf32>
    %cst_53 = arith.constant 3.200000e+01 : f32
    %144 = vector.broadcast %cst_53 : f32 to vector<16x1xf32>
    %145 = arith.divf %143, %144 : vector<16x1xf32>
    %146 = vector.broadcast %138 : vector<16x1xf32> to vector<16x32xf32>
    %147 = arith.subf %134, %146 : vector<16x32xf32>
    %cst_54 = arith.constant 9.99999974E-6 : f32
    %148 = vector.broadcast %cst_54 : f32 to vector<16x1xf32>
    %149 = arith.addf %145, %148 : vector<16x1xf32>
    %150 = math.rsqrt %149 : vector<16x1xf32>
    %151 = vector.broadcast %150 : vector<16x1xf32> to vector<16x32xf32>
    %152 = arith.mulf %147, %151 : vector<16x32xf32>
    %153 = vector.extract_strided_slice %115 {offsets = [0, 0], sizes = [1, 32], strides = [1, 1]} : vector<2x32xf32> to vector<1x32xf32>
    %154 = vector.broadcast %153 : vector<1x32xf32> to vector<16x32xf32>
    %155 = arith.mulf %152, %154 : vector<16x32xf32>
    %156 = vector.extract_strided_slice %115 {offsets = [1, 0], sizes = [1, 32], strides = [1, 1]} : vector<2x32xf32> to vector<1x32xf32>
    %157 = vector.broadcast %156 : vector<1x32xf32> to vector<16x32xf32>
    %158 = arith.addf %155, %157 : vector<16x32xf32>
    %159 = vector.shape_cast %158 : vector<16x32xf32> to vector<2x8x32xf32>
    %c0_55 = arith.constant 0 : index
    %c0_56 = arith.constant 0 : index
    %c0_57 = arith.constant 0 : index
    %c0_58 = arith.constant 0 : index
    %160 = vector.load %arg5[%c0_55, %c0_56, %c0_57, %c0_58] : memref<1x4x32x32xf32, #tpu.memory_space<vmem>>, vector<1x4x32x32xf32>
    %161 = vector.shape_cast %160 : vector<1x4x32x32xf32> to vector<4x32x32xf32>
    %c0_59 = arith.constant 0 : index
    %c0_60 = arith.constant 0 : index
    %c0_61 = arith.constant 0 : index
    %162 = vector.load %arg6[%c0_59, %c0_60, %c0_61] : memref<1x4x32xf32, #tpu.memory_space<vmem>>, vector<1x4x32xf32>
    %163 = vector.shape_cast %162 : vector<1x4x32xf32> to vector<4x32xf32>
    %164 = vector.shape_cast %4 : vector<2x16x32xf32> to vector<32x32xf32>
    %165 = vector.extract_strided_slice %161 {offsets = [0, 0, 0], sizes = [1, 32, 32], strides = [1, 1, 1]} : vector<4x32x32xf32> to vector<1x32x32xf32>
    %166 = vector.shape_cast %165 : vector<1x32x32xf32> to vector<32x32xf32>
    %cst_62 = arith.constant dense<0.000000e+00> : vector<32x32xf32>
    %167 = tpu.matmul %164, %166, %cst_62 {dimension_numbers = #tpu.dot_dimension_numbers<[1], [0], [0], [1], [0, 0, 1, 1], [], []>} : vector<32x32xf32>, vector<32x32xf32>, vector<32x32xf32> -> vector<32x32xf32>
    %168 = vector.extract_strided_slice %163 {offsets = [0, 0], sizes = [1, 32], strides = [1, 1]} : vector<4x32xf32> to vector<1x32xf32>
    %169 = vector.broadcast %168 : vector<1x32xf32> to vector<32x32xf32>
    %170 = arith.addf %167, %169 : vector<32x32xf32>
    %171 = vector.shape_cast %159 : vector<2x8x32xf32> to vector<16x32xf32>
    %172 = vector.extract_strided_slice %161 {offsets = [1, 0, 0], sizes = [1, 32, 32], strides = [1, 1, 1]} : vector<4x32x32xf32> to vector<1x32x32xf32>
    %173 = vector.shape_cast %172 : vector<1x32x32xf32> to vector<32x32xf32>
    %cst_63 = arith.constant dense<0.000000e+00> : vector<16x32xf32>
    %174 = tpu.matmul %171, %173, %cst_63 {dimension_numbers = #tpu.dot_dimension_numbers<[1], [0], [0], [1], [0, 0, 1, 1], [], []>} : vector<16x32xf32>, vector<32x32xf32>, vector<16x32xf32> -> vector<16x32xf32>
    %175 = vector.extract_strided_slice %163 {offsets = [1, 0], sizes = [1, 32], strides = [1, 1]} : vector<4x32xf32> to vector<1x32xf32>
    %176 = vector.broadcast %175 : vector<1x32xf32> to vector<16x32xf32>
    %177 = arith.addf %174, %176 : vector<16x32xf32>
    %178 = vector.shape_cast %159 : vector<2x8x32xf32> to vector<16x32xf32>
    %179 = vector.extract_strided_slice %161 {offsets = [2, 0, 0], sizes = [1, 32, 32], strides = [1, 1, 1]} : vector<4x32x32xf32> to vector<1x32x32xf32>
    %180 = vector.shape_cast %179 : vector<1x32x32xf32> to vector<32x32xf32>
    %cst_64 = arith.constant dense<0.000000e+00> : vector<16x32xf32>
    %181 = tpu.matmul %178, %180, %cst_64 {dimension_numbers = #tpu.dot_dimension_numbers<[1], [0], [0], [1], [0, 0, 1, 1], [], []>} : vector<16x32xf32>, vector<32x32xf32>, vector<16x32xf32> -> vector<16x32xf32>
    %182 = vector.extract_strided_slice %163 {offsets = [2, 0], sizes = [1, 32], strides = [1, 1]} : vector<4x32xf32> to vector<1x32xf32>
    %183 = vector.broadcast %182 : vector<1x32xf32> to vector<16x32xf32>
    %184 = arith.addf %181, %183 : vector<16x32xf32>
    %185 = vector.shape_cast %170 : vector<32x32xf32> to vector<2x16x32xf32>
    %186 = vector.shape_cast %177 : vector<16x32xf32> to vector<2x8x32xf32>
    %187 = vector.shape_cast %184 : vector<16x32xf32> to vector<2x8x32xf32>
    %188 = vector.extract_strided_slice %185 {offsets = [0, 0, 0], sizes = [2, 16, 8], strides = [1, 1, 1]} : vector<2x16x32xf32> to vector<2x16x8xf32>
    %189 = vector.extract_strided_slice %186 {offsets = [0, 0, 0], sizes = [2, 8, 8], strides = [1, 1, 1]} : vector<2x8x32xf32> to vector<2x8x8xf32>
    %190 = vector.extract_strided_slice %187 {offsets = [0, 0, 0], sizes = [2, 8, 8], strides = [1, 1, 1]} : vector<2x8x32xf32> to vector<2x8x8xf32>
    "tpu.trace_start"() <{level = 10 : i32, message = "bqd,bkd->bqk"}> : () -> ()
    %cst_65 = arith.constant dense<0.000000e+00> : vector<2x16x8xf32>
    %191 = tpu.matmul %188, %189, %cst_65 {dimension_numbers = #tpu.dot_dimension_numbers<[2], [2], [1], [1], [0, 0, 0, 1, 1, 1], [0], [0]>} : vector<2x16x8xf32>, vector<2x8x8xf32>, vector<2x16x8xf32> -> vector<2x16x8xf32>
    "tpu.trace_stop"() : () -> ()
    %cst_66 = arith.constant 0.353553385 : f32
    %192 = vector.broadcast %cst_66 : f32 to vector<2x16x8xf32>
    %193 = arith.mulf %191, %192 : vector<2x16x8xf32>
    %cst_67 = arith.constant dense<0xFF800000> : vector<2x16xf32>
    %194 = vector.multi_reduction <maximumf>, %193, %cst_67 [2] : vector<2x16x8xf32> to vector<2x16xf32>
    %195 = vector.shape_cast %194 : vector<2x16xf32> to vector<2x16x1xf32>
    %196 = vector.broadcast %195 : vector<2x16x1xf32> to vector<2x16x8xf32>
    %197 = arith.subf %193, %196 : vector<2x16x8xf32>
    %198 = math.exp %197 : vector<2x16x8xf32>
    %cst_68 = arith.constant dense<0.000000e+00> : vector<2x16xf32>
    %199 = vector.multi_reduction <add>, %198, %cst_68 [2] : vector<2x16x8xf32> to vector<2x16xf32>
    %200 = vector.shape_cast %199 : vector<2x16xf32> to vector<2x16x1xf32>
    %201 = tpu.reciprocal %200 {approx = true} : vector<2x16x1xf32> -> vector<2x16x1xf32>
    %202 = vector.broadcast %201 : vector<2x16x1xf32> to vector<2x16x8xf32>
    %203 = arith.mulf %198, %202 : vector<2x16x8xf32>
    "tpu.trace_start"() <{level = 10 : i32, message = "bqk,bkd->bqd"}> : () -> ()
    %cst_69 = arith.constant dense<0.000000e+00> : vector<2x16x8xf32>
    %204 = tpu.matmul %203, %190, %cst_69 {dimension_numbers = #tpu.dot_dimension_numbers<[2], [1], [1], [2], [0, 0, 0, 1, 1, 2], [0], [0]>} : vector<2x16x8xf32>, vector<2x8x8xf32>, vector<2x16x8xf32> -> vector<2x16x8xf32>
    "tpu.trace_stop"() : () -> ()
    %205 = vector.extract_strided_slice %185 {offsets = [0, 0, 8], sizes = [2, 16, 8], strides = [1, 1, 1]} : vector<2x16x32xf32> to vector<2x16x8xf32>
    %206 = vector.extract_strided_slice %186 {offsets = [0, 0, 8], sizes = [2, 8, 8], strides = [1, 1, 1]} : vector<2x8x32xf32> to vector<2x8x8xf32>
    %207 = vector.extract_strided_slice %187 {offsets = [0, 0, 8], sizes = [2, 8, 8], strides = [1, 1, 1]} : vector<2x8x32xf32> to vector<2x8x8xf32>
    "tpu.trace_start"() <{level = 10 : i32, message = "bqd,bkd->bqk"}> : () -> ()
    %cst_70 = arith.constant dense<0.000000e+00> : vector<2x16x8xf32>
    %208 = tpu.matmul %205, %206, %cst_70 {dimension_numbers = #tpu.dot_dimension_numbers<[2], [2], [1], [1], [0, 0, 0, 1, 1, 1], [0], [0]>} : vector<2x16x8xf32>, vector<2x8x8xf32>, vector<2x16x8xf32> -> vector<2x16x8xf32>
    "tpu.trace_stop"() : () -> ()
    %cst_71 = arith.constant 0.353553385 : f32
    %209 = vector.broadcast %cst_71 : f32 to vector<2x16x8xf32>
    %210 = arith.mulf %208, %209 : vector<2x16x8xf32>
    %cst_72 = arith.constant dense<0xFF800000> : vector<2x16xf32>
    %211 = vector.multi_reduction <maximumf>, %210, %cst_72 [2] : vector<2x16x8xf32> to vector<2x16xf32>
    %212 = vector.shape_cast %211 : vector<2x16xf32> to vector<2x16x1xf32>
    %213 = vector.broadcast %212 : vector<2x16x1xf32> to vector<2x16x8xf32>
    %214 = arith.subf %210, %213 : vector<2x16x8xf32>
    %215 = math.exp %214 : vector<2x16x8xf32>
    %cst_73 = arith.constant dense<0.000000e+00> : vector<2x16xf32>
    %216 = vector.multi_reduction <add>, %215, %cst_73 [2] : vector<2x16x8xf32> to vector<2x16xf32>
    %217 = vector.shape_cast %216 : vector<2x16xf32> to vector<2x16x1xf32>
    %218 = tpu.reciprocal %217 {approx = true} : vector<2x16x1xf32> -> vector<2x16x1xf32>
    %219 = vector.broadcast %218 : vector<2x16x1xf32> to vector<2x16x8xf32>
    %220 = arith.mulf %215, %219 : vector<2x16x8xf32>
    "tpu.trace_start"() <{level = 10 : i32, message = "bqk,bkd->bqd"}> : () -> ()
    %cst_74 = arith.constant dense<0.000000e+00> : vector<2x16x8xf32>
    %221 = tpu.matmul %220, %207, %cst_74 {dimension_numbers = #tpu.dot_dimension_numbers<[2], [1], [1], [2], [0, 0, 0, 1, 1, 2], [0], [0]>} : vector<2x16x8xf32>, vector<2x8x8xf32>, vector<2x16x8xf32> -> vector<2x16x8xf32>
    "tpu.trace_stop"() : () -> ()
    %222 = vector.extract_strided_slice %185 {offsets = [0, 0, 16], sizes = [2, 16, 8], strides = [1, 1, 1]} : vector<2x16x32xf32> to vector<2x16x8xf32>
    %223 = vector.extract_strided_slice %186 {offsets = [0, 0, 16], sizes = [2, 8, 8], strides = [1, 1, 1]} : vector<2x8x32xf32> to vector<2x8x8xf32>
    %224 = vector.extract_strided_slice %187 {offsets = [0, 0, 16], sizes = [2, 8, 8], strides = [1, 1, 1]} : vector<2x8x32xf32> to vector<2x8x8xf32>
    "tpu.trace_start"() <{level = 10 : i32, message = "bqd,bkd->bqk"}> : () -> ()
    %cst_75 = arith.constant dense<0.000000e+00> : vector<2x16x8xf32>
    %225 = tpu.matmul %222, %223, %cst_75 {dimension_numbers = #tpu.dot_dimension_numbers<[2], [2], [1], [1], [0, 0, 0, 1, 1, 1], [0], [0]>} : vector<2x16x8xf32>, vector<2x8x8xf32>, vector<2x16x8xf32> -> vector<2x16x8xf32>
    "tpu.trace_stop"() : () -> ()
    %cst_76 = arith.constant 0.353553385 : f32
    %226 = vector.broadcast %cst_76 : f32 to vector<2x16x8xf32>
    %227 = arith.mulf %225, %226 : vector<2x16x8xf32>
    %cst_77 = arith.constant dense<0xFF800000> : vector<2x16xf32>
    %228 = vector.multi_reduction <maximumf>, %227, %cst_77 [2] : vector<2x16x8xf32> to vector<2x16xf32>
    %229 = vector.shape_cast %228 : vector<2x16xf32> to vector<2x16x1xf32>
    %230 = vector.broadcast %229 : vector<2x16x1xf32> to vector<2x16x8xf32>
    %231 = arith.subf %227, %230 : vector<2x16x8xf32>
    %232 = math.exp %231 : vector<2x16x8xf32>
    %cst_78 = arith.constant dense<0.000000e+00> : vector<2x16xf32>
    %233 = vector.multi_reduction <add>, %232, %cst_78 [2] : vector<2x16x8xf32> to vector<2x16xf32>
    %234 = vector.shape_cast %233 : vector<2x16xf32> to vector<2x16x1xf32>
    %235 = tpu.reciprocal %234 {approx = true} : vector<2x16x1xf32> -> vector<2x16x1xf32>
    %236 = vector.broadcast %235 : vector<2x16x1xf32> to vector<2x16x8xf32>
    %237 = arith.mulf %232, %236 : vector<2x16x8xf32>
    "tpu.trace_start"() <{level = 10 : i32, message = "bqk,bkd->bqd"}> : () -> ()
    %cst_79 = arith.constant dense<0.000000e+00> : vector<2x16x8xf32>
    %238 = tpu.matmul %237, %224, %cst_79 {dimension_numbers = #tpu.dot_dimension_numbers<[2], [1], [1], [2], [0, 0, 0, 1, 1, 2], [0], [0]>} : vector<2x16x8xf32>, vector<2x8x8xf32>, vector<2x16x8xf32> -> vector<2x16x8xf32>
    "tpu.trace_stop"() : () -> ()
    %239 = vector.extract_strided_slice %185 {offsets = [0, 0, 24], sizes = [2, 16, 8], strides = [1, 1, 1]} : vector<2x16x32xf32> to vector<2x16x8xf32>
    %240 = vector.extract_strided_slice %186 {offsets = [0, 0, 24], sizes = [2, 8, 8], strides = [1, 1, 1]} : vector<2x8x32xf32> to vector<2x8x8xf32>
    %241 = vector.extract_strided_slice %187 {offsets = [0, 0, 24], sizes = [2, 8, 8], strides = [1, 1, 1]} : vector<2x8x32xf32> to vector<2x8x8xf32>
    "tpu.trace_start"() <{level = 10 : i32, message = "bqd,bkd->bqk"}> : () -> ()
    %cst_80 = arith.constant dense<0.000000e+00> : vector<2x16x8xf32>
    %242 = tpu.matmul %239, %240, %cst_80 {dimension_numbers = #tpu.dot_dimension_numbers<[2], [2], [1], [1], [0, 0, 0, 1, 1, 1], [0], [0]>} : vector<2x16x8xf32>, vector<2x8x8xf32>, vector<2x16x8xf32> -> vector<2x16x8xf32>
    "tpu.trace_stop"() : () -> ()
    %cst_81 = arith.constant 0.353553385 : f32
    %243 = vector.broadcast %cst_81 : f32 to vector<2x16x8xf32>
    %244 = arith.mulf %242, %243 : vector<2x16x8xf32>
    %cst_82 = arith.constant dense<0xFF800000> : vector<2x16xf32>
    %245 = vector.multi_reduction <maximumf>, %244, %cst_82 [2] : vector<2x16x8xf32> to vector<2x16xf32>
    %246 = vector.shape_cast %245 : vector<2x16xf32> to vector<2x16x1xf32>
    %247 = vector.broadcast %246 : vector<2x16x1xf32> to vector<2x16x8xf32>
    %248 = arith.subf %244, %247 : vector<2x16x8xf32>
    %249 = math.exp %248 : vector<2x16x8xf32>
    %cst_83 = arith.constant dense<0.000000e+00> : vector<2x16xf32>
    %250 = vector.multi_reduction <add>, %249, %cst_83 [2] : vector<2x16x8xf32> to vector<2x16xf32>
    %251 = vector.shape_cast %250 : vector<2x16xf32> to vector<2x16x1xf32>
    %252 = tpu.reciprocal %251 {approx = true} : vector<2x16x1xf32> -> vector<2x16x1xf32>
    %253 = vector.broadcast %252 : vector<2x16x1xf32> to vector<2x16x8xf32>
    %254 = arith.mulf %249, %253 : vector<2x16x8xf32>
    "tpu.trace_start"() <{level = 10 : i32, message = "bqk,bkd->bqd"}> : () -> ()
    %cst_84 = arith.constant dense<0.000000e+00> : vector<2x16x8xf32>
    %255 = tpu.matmul %254, %241, %cst_84 {dimension_numbers = #tpu.dot_dimension_numbers<[2], [1], [1], [2], [0, 0, 0, 1, 1, 2], [0], [0]>} : vector<2x16x8xf32>, vector<2x8x8xf32>, vector<2x16x8xf32> -> vector<2x16x8xf32>
    "tpu.trace_stop"() : () -> ()
    %256 = tpu.concatenate %204, %221, %238, %255 in 2 : vector<2x16x8xf32>, vector<2x16x8xf32>, vector<2x16x8xf32>, vector<2x16x8xf32> -> vector<2x16x32xf32>
    %257 = vector.shape_cast %256 : vector<2x16x32xf32> to vector<32x32xf32>
    %258 = vector.extract_strided_slice %161 {offsets = [3, 0, 0], sizes = [1, 32, 32], strides = [1, 1, 1]} : vector<4x32x32xf32> to vector<1x32x32xf32>
    %259 = vector.shape_cast %258 : vector<1x32x32xf32> to vector<32x32xf32>
    %cst_85 = arith.constant dense<0.000000e+00> : vector<32x32xf32>
    %260 = tpu.matmul %257, %259, %cst_85 {dimension_numbers = #tpu.dot_dimension_numbers<[1], [0], [0], [1], [0, 0, 1, 1], [], []>} : vector<32x32xf32>, vector<32x32xf32>, vector<32x32xf32> -> vector<32x32xf32>
    %261 = vector.extract_strided_slice %163 {offsets = [3, 0], sizes = [1, 32], strides = [1, 1]} : vector<4x32xf32> to vector<1x32xf32>
    %262 = vector.broadcast %261 : vector<1x32xf32> to vector<32x32xf32>
    %263 = arith.addf %260, %262 : vector<32x32xf32>
    %264 = vector.shape_cast %263 : vector<32x32xf32> to vector<2x16x32xf32>
    %c0_86 = arith.constant 0 : index
    %c0_87 = arith.constant 0 : index
    %c0_88 = arith.constant 0 : index
    %c0_89 = arith.constant 0 : index
    %265 = vector.load %arg10[%c0_86, %c0_87, %c0_88, %c0_89] : memref<1x2x32x32xf32, #tpu.memory_space<vmem>>, vector<1x2x32x32xf32>
    %266 = vector.shape_cast %265 : vector<1x2x32x32xf32> to vector<2x32x32xf32>
    %c0_90 = arith.constant 0 : index
    %c0_91 = arith.constant 0 : index
    %c0_92 = arith.constant 0 : index
    %267 = vector.load %arg11[%c0_90, %c0_91, %c0_92] : memref<1x2x32xf32, #tpu.memory_space<vmem>>, vector<1x2x32xf32>
    %268 = vector.shape_cast %267 : vector<1x2x32xf32> to vector<2x32xf32>
    %c0_93 = arith.constant 0 : index
    %c0_94 = arith.constant 0 : index
    %c0_95 = arith.constant 0 : index
    %269 = vector.load %arg12[%c0_93, %c0_94, %c0_95] : memref<1x2x32xf32, #tpu.memory_space<vmem>>, vector<1x2x32xf32>
    %270 = vector.shape_cast %269 : vector<1x2x32xf32> to vector<2x32xf32>
    %271 = vector.shape_cast %264 : vector<2x16x32xf32> to vector<32x32xf32>
    %272 = vector.extract_strided_slice %266 {offsets = [0, 0, 0], sizes = [1, 32, 32], strides = [1, 1, 1]} : vector<2x32x32xf32> to vector<1x32x32xf32>
    %273 = vector.shape_cast %272 : vector<1x32x32xf32> to vector<32x32xf32>
    %cst_96 = arith.constant dense<0.000000e+00> : vector<32x32xf32>
    %274 = tpu.matmul %271, %273, %cst_96 {dimension_numbers = #tpu.dot_dimension_numbers<[1], [0], [0], [1], [0, 0, 1, 1], [], []>} : vector<32x32xf32>, vector<32x32xf32>, vector<32x32xf32> -> vector<32x32xf32>
    %275 = vector.extract_strided_slice %268 {offsets = [0, 0], sizes = [1, 32], strides = [1, 1]} : vector<2x32xf32> to vector<1x32xf32>
    %276 = vector.broadcast %275 : vector<1x32xf32> to vector<32x32xf32>
    %277 = arith.addf %274, %276 : vector<32x32xf32>
    %cst_97 = arith.constant 0.000000e+00 : f32
    %278 = vector.broadcast %cst_97 : f32 to vector<32x32xf32>
    %279 = arith.cmpf ogt, %277, %278 : vector<32x32xf32>
    %cst_98 = arith.constant 0.00999999977 : f32
    %280 = vector.broadcast %cst_98 : f32 to vector<32x32xf32>
    %281 = arith.mulf %280, %277 : vector<32x32xf32>
    %282 = arith.select %279, %277, %281 : vector<32x32xi1>, vector<32x32xf32>
    %283 = vector.extract_strided_slice %266 {offsets = [1, 0, 0], sizes = [1, 32, 32], strides = [1, 1, 1]} : vector<2x32x32xf32> to vector<1x32x32xf32>
    %284 = vector.shape_cast %283 : vector<1x32x32xf32> to vector<32x32xf32>
    %cst_99 = arith.constant dense<0.000000e+00> : vector<32x32xf32>
    %285 = tpu.matmul %282, %284, %cst_99 {dimension_numbers = #tpu.dot_dimension_numbers<[1], [0], [0], [1], [0, 0, 1, 1], [], []>} : vector<32x32xf32>, vector<32x32xf32>, vector<32x32xf32> -> vector<32x32xf32>
    %286 = vector.extract_strided_slice %268 {offsets = [1, 0], sizes = [1, 32], strides = [1, 1]} : vector<2x32xf32> to vector<1x32xf32>
    %287 = vector.broadcast %286 : vector<1x32xf32> to vector<32x32xf32>
    %288 = arith.addf %285, %287 : vector<32x32xf32>
    %289 = arith.addf %288, %271 : vector<32x32xf32>
    %cst_100 = arith.constant dense<0.000000e+00> : vector<32xf32>
    %290 = vector.multi_reduction <add>, %289, %cst_100 [1] : vector<32x32xf32> to vector<32xf32>
    %291 = vector.shape_cast %290 : vector<32xf32> to vector<32x1xf32>
    %cst_101 = arith.constant 3.200000e+01 : f32
    %292 = vector.broadcast %cst_101 : f32 to vector<32x1xf32>
    %293 = arith.divf %291, %292 : vector<32x1xf32>
    %294 = vector.broadcast %293 : vector<32x1xf32> to vector<32x32xf32>
    %295 = arith.subf %289, %294 : vector<32x32xf32>
    %296 = arith.mulf %295, %295 : vector<32x32xf32>
    %cst_102 = arith.constant dense<0.000000e+00> : vector<32xf32>
    %297 = vector.multi_reduction <add>, %296, %cst_102 [1] : vector<32x32xf32> to vector<32xf32>
    %298 = vector.shape_cast %297 : vector<32xf32> to vector<32x1xf32>
    %cst_103 = arith.constant 3.200000e+01 : f32
    %299 = vector.broadcast %cst_103 : f32 to vector<32x1xf32>
    %300 = arith.divf %298, %299 : vector<32x1xf32>
    %301 = vector.broadcast %293 : vector<32x1xf32> to vector<32x32xf32>
    %302 = arith.subf %289, %301 : vector<32x32xf32>
    %cst_104 = arith.constant 9.99999974E-6 : f32
    %303 = vector.broadcast %cst_104 : f32 to vector<32x1xf32>
    %304 = arith.addf %300, %303 : vector<32x1xf32>
    %305 = math.rsqrt %304 : vector<32x1xf32>
    %306 = vector.broadcast %305 : vector<32x1xf32> to vector<32x32xf32>
    %307 = arith.mulf %302, %306 : vector<32x32xf32>
    %308 = vector.extract_strided_slice %270 {offsets = [0, 0], sizes = [1, 32], strides = [1, 1]} : vector<2x32xf32> to vector<1x32xf32>
    %309 = vector.broadcast %308 : vector<1x32xf32> to vector<32x32xf32>
    %310 = arith.mulf %307, %309 : vector<32x32xf32>
    %311 = vector.extract_strided_slice %270 {offsets = [1, 0], sizes = [1, 32], strides = [1, 1]} : vector<2x32xf32> to vector<1x32xf32>
    %312 = vector.broadcast %311 : vector<1x32xf32> to vector<32x32xf32>
    %313 = arith.addf %310, %312 : vector<32x32xf32>
    %314 = vector.shape_cast %313 : vector<32x32xf32> to vector<2x16x32xf32>
    %c0_105 = arith.constant 0 : index
    %c0_106 = arith.constant 0 : index
    %c0_107 = arith.constant 0 : index
    %315 = vector.load %arg13[%c0_105, %c0_106, %c0_107] : memref<2x8x32xf32, #tpu.memory_space<vmem>>, vector<2x8x32xf32>
    tpu.vector_store %arg13[%c0_105, %c0_106, %c0_107], %159 {strides = array<i32>} : memref<2x8x32xf32, #tpu.memory_space<vmem>>, vector<2x8x32xf32>,
    %c0_108 = arith.constant 0 : index
    %c0_109 = arith.constant 0 : index
    %c0_110 = arith.constant 0 : index
    %316 = vector.load %arg14[%c0_108, %c0_109, %c0_110] : memref<2x16x32xf32, #tpu.memory_space<vmem>>, vector<2x16x32xf32>
    tpu.vector_store %arg14[%c0_108, %c0_109, %c0_110], %314 {strides = array<i32>} : memref<2x16x32xf32, #tpu.memory_space<vmem>>, vector<2x16x32xf32>,
    return
  }
  func.func @transform_0(%arg0: i32) -> (i32, i32, i32) {
    %c0_i32 = arith.constant 0 : i32
    %c0_i32_0 = arith.constant 0 : i32
    %c0_i32_1 = arith.constant 0 : i32
    %c0_i32_2 = arith.constant 0 : i32
    return %c0_i32, %c0_i32_0, %c0_i32_1 : i32, i32, i32
  }
  func.func @transform_1(%arg0: i32) -> (i32, i32, i32) {
    %c0_i32 = arith.constant 0 : i32
    %c0_i32_0 = arith.constant 0 : i32
    %c0_i32_1 = arith.constant 0 : i32
    %c0_i32_2 = arith.constant 0 : i32
    return %c0_i32, %c0_i32_0, %c0_i32_1 : i32, i32, i32
  }
  func.func @transform_2(%arg0: i32) -> (i32, i32, i32, i32) {
    %c0_i32 = arith.constant 0 : i32
    %c0_i32_0 = arith.constant 0 : i32
    %c0_i32_1 = arith.constant 0 : i32
    %c0_i32_2 = arith.constant 0 : i32
    return %arg0, %c0_i32, %c0_i32_0, %c0_i32_1 : i32, i32, i32, i32
  }
  func.func @transform_3(%arg0: i32) -> (i32, i32, i32) {
    %c0_i32 = arith.constant 0 : i32
    %c0_i32_0 = arith.constant 0 : i32
    %c0_i32_1 = arith.constant 0 : i32
    return %arg0, %c0_i32, %c0_i32_0 : i32, i32, i32
  }
  func.func @transform_4(%arg0: i32) -> (i32, i32, i32, i32) {
    %c0_i32 = arith.constant 0 : i32
    %c0_i32_0 = arith.constant 0 : i32
    %c0_i32_1 = arith.constant 0 : i32
    %c0_i32_2 = arith.constant 0 : i32
    return %arg0, %c0_i32, %c0_i32_0, %c0_i32_1 : i32, i32, i32, i32
  }
  func.func @transform_5(%arg0: i32) -> (i32, i32, i32) {
    %c0_i32 = arith.constant 0 : i32
    %c0_i32_0 = arith.constant 0 : i32
    %c0_i32_1 = arith.constant 0 : i32
    return %arg0, %c0_i32, %c0_i32_0 : i32, i32, i32
  }
  func.func @transform_6(%arg0: i32) -> (i32, i32, i32, i32) {
    %c0_i32 = arith.constant 0 : i32
    %c0_i32_0 = arith.constant 0 : i32
    %c0_i32_1 = arith.constant 0 : i32
    %c0_i32_2 = arith.constant 0 : i32
    return %arg0, %c0_i32, %c0_i32_0, %c0_i32_1 : i32, i32, i32, i32
  }
  func.func @transform_7(%arg0: i32) -> (i32, i32, i32) {
    %c0_i32 = arith.constant 0 : i32
    %c0_i32_0 = arith.constant 0 : i32
    %c0_i32_1 = arith.constant 0 : i32
    return %arg0, %c0_i32, %c0_i32_0 : i32, i32, i32
  }
  func.func @transform_8(%arg0: i32) -> (i32, i32, i32) {
    %c0_i32 = arith.constant 0 : i32
    %c0_i32_0 = arith.constant 0 : i32
    %c0_i32_1 = arith.constant 0 : i32
    return %arg0, %c0_i32, %c0_i32_0 : i32, i32, i32
  }
  func.func @transform_9(%arg0: i32) -> (i32, i32, i32, i32) {
    %c0_i32 = arith.constant 0 : i32
    %c0_i32_0 = arith.constant 0 : i32
    %c0_i32_1 = arith.constant 0 : i32
    %c0_i32_2 = arith.constant 0 : i32
    return %arg0, %c0_i32, %c0_i32_0, %c0_i32_1 : i32, i32, i32, i32
  }
  func.func @transform_10(%arg0: i32) -> (i32, i32, i32) {
    %c0_i32 = arith.constant 0 : i32
    %c0_i32_0 = arith.constant 0 : i32
    %c0_i32_1 = arith.constant 0 : i32
    return %arg0, %c0_i32, %c0_i32_0 : i32, i32, i32
  }
  func.func @transform_11(%arg0: i32) -> (i32, i32, i32) {
    %c0_i32 = arith.constant 0 : i32
    %c0_i32_0 = arith.constant 0 : i32
    %c0_i32_1 = arith.constant 0 : i32
    return %arg0, %c0_i32, %c0_i32_0 : i32, i32, i32
  }
  func.func @transform_12(%arg0: i32) -> (i32, i32, i32) {
    %c0_i32 = arith.constant 0 : i32
    %c0_i32_0 = arith.constant 0 : i32
    %c0_i32_1 = arith.constant 0 : i32
    %c0_i32_2 = arith.constant 0 : i32
    return %c0_i32, %c0_i32_0, %c0_i32_1 : i32, i32, i32
  }
  func.func @transform_13(%arg0: i32) -> (i32, i32, i32) {
    %c0_i32 = arith.constant 0 : i32
    %c0_i32_0 = arith.constant 0 : i32
    %c0_i32_1 = arith.constant 0 : i32
    %c0_i32_2 = arith.constant 0 : i32
    return %c0_i32, %c0_i32_0, %c0_i32_1 : i32, i32, i32
  }
}

</mosaic_0001>

<llo_original>
// kernel: tpu_custom_call.1
$region0: #{tpu_custom_call.1}
  #allocation0 [shape = 'u32[]', space=smem, size = 0x4, offset = 0x4, fixed_abs, tag = 'smem constant byte address 0x4 - core index']
  #allocation1 [shape = 'u32[144,128]{1,0:T(1,128)}', space=vmem, size = 0x12000, scoped, tag = 'internal scratch']
  %s0 = inlined_call_operand.hbm [shape: f32[2,8,32], index: 0, kind: input, shape index: {}]
  %s1 = inlined_call_operand.hbm [shape: f32[2,16,32], index: 1, kind: input, shape index: {}]
  %s2 = inlined_call_operand.hbm [shape: f32[2,4,32,32], index: 2, kind: input, shape index: {}]
  %s3 = inlined_call_operand.vmem [shape: f32[2,4,32], index: 3, kind: input, shape index: {}]
  %s4 = inlined_call_operand.hbm [shape: f32[2,4,32,32], index: 4, kind: input, shape index: {}]
  %s5 = inlined_call_operand.vmem [shape: f32[2,4,32], index: 5, kind: input, shape index: {}]
  %s6 = inlined_call_operand.hbm [shape: f32[2,2,32,32], index: 6, kind: input, shape index: {}]
  %s7 = inlined_call_operand.vmem [shape: f32[2,2,32], index: 7, kind: input, shape index: {}]
  %s8 = inlined_call_operand.vmem [shape: f32[2,2,32], index: 8, kind: input, shape index: {}]
  %s9 = inlined_call_operand.hbm [shape: f32[2,2,32,32], index: 9, kind: input, shape index: {}]
  %s10 = inlined_call_operand.vmem [shape: f32[2,2,32], index: 10, kind: input, shape index: {}]
  %s11 = inlined_call_operand.vmem [shape: f32[2,2,32], index: 11, kind: input, shape index: {}]
  %s12 = inlined_call_operand.hbm [shape: f32[2,8,32], index: 12, kind: output, shape index: {0}]
  %s13 = inlined_call_operand.hbm [shape: f32[2,16,32], index: 13, kind: output, shape index: {1}]
  %14 = xla_tuple %s12, %s13
  %s15 = sld [smem:[#allocation0]]
  $region117: #{tpu_custom_call.1} parent=0
    _
  %s17 = ssub.s32 1, %s15
  %s18 = scalar_select 0, %s17, %s15
  $region1: #{tpu_custom_call.1} parent=0
    #allocation2 [shape = 'u8[8192]{0}', space=vmem, size = 0x2000, scoped, tag = 'input window, operand 0, single buffered']
    #allocation3 [shape = 's32[2]{0}', space=sflag, size = 0x8, scoped, tag = 'scoped memory for tpu_custom_call.1']
    #allocation4 [shape = 's32[2]{0}', space=sflag, size = 0x8, scoped, tag = 'scoped memory for tpu_custom_call.1']
    #allocation5 [shape = 'u8[16384]{0}', space=vmem, size = 0x4000, scoped, tag = 'input window, operand 1, single buffered']
    #allocation6 [shape = 's32[1]{0}', space=sflag, size = 0x4, scoped, tag = 'scoped memory for tpu_custom_call.1']
    #allocation7 [shape = 'u8[131072]{0}', space=vmem, size = 0x20000, scoped, tag = 'input window, operand 2']
    #allocation8 [shape = 'u8[131072]{0}', space=vmem, size = 0x20000, scoped, tag = 'input window, operand 4']
    #allocation9 [shape = 'u8[65536]{0}', space=vmem, size = 0x10000, scoped, tag = 'input window, operand 6']
    #allocation10 [shape = 'u8[65536]{0}', space=vmem, size = 0x10000, scoped, tag = 'input window, operand 9']
    #allocation11 [shape = 'u8[8192]{0}', space=vmem, size = 0x2000, scoped, tag = 'output window, operand 0, single buffered']
    #allocation12 [shape = 'u8[16384]{0}', space=vmem, size = 0x4000, scoped, tag = 'output window, operand 1, single buffered']
    #allocation13 [shape = 's32[1]{0}', space=sflag, size = 0x4, scoped, tag = 'scoped memory for tpu_custom_call.1']
    %19 = vsyncpa [#allocation3], 0
    %20 = vsyncpa [#allocation6], 0
    %21 = vsyncpa [#allocation4], 0
    %22 = vsyncpa [#allocation13], 0
    loop: start=0, step=1, limit=4
    $region2: #{tpu_custom_call.1} parent=1 // loop_pre_header
      _
    $region3: #{tpu_custom_call.1} parent=1 // loop_header
      %s24 = sphi 0, %s28
      %p25 = scmp.ge.s32.totalorder %s24, 4
      %s32 = sphi 0, %s32
      %s34 = sphi 0, %s32
      %s35 = sphi 0, %s34
      %s49 = sphi 0, %s35
      %s53 = sphi 0, %s53
      %s55 = sphi 0, %s53
      %s56 = sphi 0, %s55
      %s70 = sphi 0, %s56
      %s76 = sphi 0, %s78
      %s79 = sphi 0, %s76
      %s80 = sphi 0, %s79
      %s96 = sphi 0, %s80
      %s102 = sphi 0, %s104
      %s105 = sphi 0, %s102
      %s106 = sphi 0, %s105
      %s122 = sphi 0, %s106
      %s128 = sphi 0, %s130
      %s131 = sphi 0, %s128
      %s132 = sphi 0, %s131
      %s148 = sphi 0, %s132
      %s154 = sphi 0, %s156
      %s157 = sphi 0, %s154
      %s158 = sphi 0, %s157
      %s174 = sphi 0, %s158
      %s180 = sphi 0, %s182
      %s183 = sphi 0, %s180
      %s184 = sphi 0, %s183
      %s200 = sphi 0, %s184
      %s206 = sphi 0, %s208
      %s209 = sphi 0, %s206
      %s210 = sphi 0, %s209
      %s226 = sphi 0, %s210
      %s232 = sphi 0, %s234
      %s235 = sphi 0, %s232
      %s236 = sphi 0, %s235
      %s252 = sphi 0, %s236
      %s258 = sphi 0, %s260
      %s261 = sphi 0, %s258
      %s262 = sphi 0, %s261
      %s278 = sphi 0, %s262
      %s284 = sphi 0, %s286
      %s287 = sphi 0, %s284
      %s288 = sphi 0, %s287
      %s304 = sphi 0, %s288
      %s310 = sphi 0, %s312
      %s313 = sphi 0, %s310
      %s314 = sphi 0, %s313
      %s330 = sphi 0, %s314
      %s334 = sphi 0, %s334
      %s336 = sphi 0, %s334
      %s337 = sphi 0, %s336
      %s351 = sphi 0, %s337
      %s355 = sphi 0, %s355
      %s357 = sphi 0, %s355
      %s358 = sphi 0, %s357
      %s372 = sphi 0, %s358
    $region4: #{tpu_custom_call.1} parent=1 // loop_header_branch
      %27 = sbr.rel (%p25) target = $region8
    $region5: #{tpu_custom_call.1} parent=1 // loop_body
      %s29 = ssub.s32 %s24, 1
      %s30 = ssub.s32 %s24, 2
      %s31 = sadd.s32 %s24, 1
      %s33 = sadd.s32 %s32, 1
      %p36 = scmp.eq.s32.totalorder %s24, 1
      %p37 = scmp.ne.s32.totalorder %s32, %s34
      %p38 = scmp.eq.s32.totalorder %s24, 0
      %p39 = por %p37, %p38
      %p40 = scmp.ne.s32.totalorder %s32, %s34
      %p41 = scmp.eq.s32.totalorder %s29, 1
      %p42 = por %p40, %p41
      %p43 = scmp.ne.s32.totalorder %s34, %s35
      %p44 = scmp.eq.s32.totalorder %s29, 0
      %p45 = por %p43, %p44
      %p46 = scmp.ne.s32.totalorder %s34, %s35
      %p47 = scmp.eq.s32.totalorder %s30, 1
      %p48 = por %p46, %p47
      %p50 = scmp.ne.s32.totalorder %s35, %s49
      %p51 = scmp.eq.s32.totalorder %s30, 0
      %p52 = por %p50, %p51
      %s54 = sadd.s32 %s53, 1
      %p57 = scmp.eq.s32.totalorder %s24, 1
      %p58 = scmp.ne.s32.totalorder %s53, %s55
      %p59 = scmp.eq.s32.totalorder %s24, 0
      %p60 = por %p58, %p59
      %p61 = scmp.ne.s32.totalorder %s53, %s55
      %p62 = scmp.eq.s32.totalorder %s29, 1
      %p63 = por %p61, %p62
      %p64 = scmp.ne.s32.totalorder %s55, %s56
      %p65 = scmp.eq.s32.totalorder %s29, 0
      %p66 = por %p64, %p65
      %p67 = scmp.ne.s32.totalorder %s55, %s56
      %p68 = scmp.eq.s32.totalorder %s30, 1
      %p69 = por %p67, %p68
      %p71 = scmp.ne.s32.totalorder %s56, %s70
      %p72 = scmp.eq.s32.totalorder %s30, 0
      %p73 = por %p71, %p72
      %s74 = ssub.s32 %s24, %s31
      %p75 = scmp.eq.s32.totalorder %s74, 0
      %s77 = sadd.s32 %s76, 1
      %s78 = scalar_select %p75, %s76, %s77
      %p81 = pneg %p75
      %p82 = scmp.eq.s32.totalorder %s24, 1
      %p83 = por %p81, %p82
      %p84 = scmp.ne.s32.totalorder %s76, %s79
      %p85 = scmp.eq.s32.totalorder %s24, 0
      %p86 = por %p84, %p85
      %p87 = scmp.ne.s32.totalorder %s76, %s79
      %p88 = scmp.eq.s32.totalorder %s29, 1
      %p89 = por %p87, %p88
      %p90 = scmp.ne.s32.totalorder %s79, %s80
      %p91 = scmp.eq.s32.totalorder %s29, 0
      %p92 = por %p90, %p91
      %p93 = scmp.ne.s32.totalorder %s79, %s80
      %p94 = scmp.eq.s32.totalorder %s30, 1
      %p95 = por %p93, %p94
      %p97 = scmp.ne.s32.totalorder %s80, %s96
      %p98 = scmp.eq.s32.totalorder %s30, 0
      %p99 = por %p97, %p98
      %s100 = ssub.s32 %s24, %s31
      %p101 = scmp.eq.s32.totalorder %s100, 0
      %s103 = sadd.s32 %s102, 1
      %s104 = scalar_select %p101, %s102, %s103
      %p107 = pneg %p101
      %p108 = scmp.eq.s32.totalorder %s24, 1
      %p109 = por %p107, %p108
      %p110 = scmp.ne.s32.totalorder %s102, %s105
      %p111 = scmp.eq.s32.totalorder %s24, 0
      %p112 = por %p110, %p111
      %p113 = scmp.ne.s32.totalorder %s102, %s105
      %p114 = scmp.eq.s32.totalorder %s29, 1
      %p115 = por %p113, %p114
      %p116 = scmp.ne.s32.totalorder %s105, %s106
      %p117 = scmp.eq.s32.totalorder %s29, 0
      %p118 = por %p116, %p117
      %p119 = scmp.ne.s32.totalorder %s105, %s106
      %p120 = scmp.eq.s32.totalorder %s30, 1
      %p121 = por %p119, %p120
      %p123 = scmp.ne.s32.totalorder %s106, %s122
      %p124 = scmp.eq.s32.totalorder %s30, 0
      %p125 = por %p123, %p124
      %s126 = ssub.s32 %s24, %s31
      %p127 = scmp.eq.s32.totalorder %s126, 0
      %s129 = sadd.s32 %s128, 1
      %s130 = scalar_select %p127, %s128, %s129
      %p133 = pneg %p127
      %p134 = scmp.eq.s32.totalorder %s24, 1
      %p135 = por %p133, %p134
      %p136 = scmp.ne.s32.totalorder %s128, %s131
      %p137 = scmp.eq.s32.totalorder %s24, 0
      %p138 = por %p136, %p137
      %p139 = scmp.ne.s32.totalorder %s128, %s131
      %p140 = scmp.eq.s32.totalorder %s29, 1
      %p141 = por %p139, %p140
      %p142 = scmp.ne.s32.totalorder %s131, %s132
      %p143 = scmp.eq.s32.totalorder %s29, 0
      %p144 = por %p142, %p143
      %p145 = scmp.ne.s32.totalorder %s131, %s132
      %p146 = scmp.eq.s32.totalorder %s30, 1
      %p147 = por %p145, %p146
      %p149 = scmp.ne.s32.totalorder %s132, %s148
      %p150 = scmp.eq.s32.totalorder %s30, 0
      %p151 = por %p149, %p150
      %s152 = ssub.s32 %s24, %s31
      %p153 = scmp.eq.s32.totalorder %s152, 0
      %s155 = sadd.s32 %s154, 1
      %s156 = scalar_select %p153, %s154, %s155
      %p159 = pneg %p153
      %p160 = scmp.eq.s32.totalorder %s24, 1
      %p161 = por %p159, %p160
      %p162 = scmp.ne.s32.totalorder %s154, %s157
      %p163 = scmp.eq.s32.totalorder %s24, 0
      %p164 = por %p162, %p163
      %p165 = scmp.ne.s32.totalorder %s154, %s157
      %p166 = scmp.eq.s32.totalorder %s29, 1
      %p167 = por %p165, %p166
      %p168 = scmp.ne.s32.totalorder %s157, %s158
      %p169 = scmp.eq.s32.totalorder %s29, 0
      %p170 = por %p168, %p169
      %p171 = scmp.ne.s32.totalorder %s157, %s158
      %p172 = scmp.eq.s32.totalorder %s30, 1
      %p173 = por %p171, %p172
      %p175 = scmp.ne.s32.totalorder %s158, %s174
      %p176 = scmp.eq.s32.totalorder %s30, 0
      %p177 = por %p175, %p176
      %s178 = ssub.s32 %s24, %s31
      %p179 = scmp.eq.s32.totalorder %s178, 0
      %s181 = sadd.s32 %s180, 1
      %s182 = scalar_select %p179, %s180, %s181
      %p185 = pneg %p179
      %p186 = scmp.eq.s32.totalorder %s24, 1
      %p187 = por %p185, %p186
      %p188 = scmp.ne.s32.totalorder %s180, %s183
      %p189 = scmp.eq.s32.totalorder %s24, 0
      %p190 = por %p188, %p189
      %p191 = scmp.ne.s32.totalorder %s180, %s183
      %p192 = scmp.eq.s32.totalorder %s29, 1
      %p193 = por %p191, %p192
      %p194 = scmp.ne.s32.totalorder %s183, %s184
      %p195 = scmp.eq.s32.totalorder %s29, 0
      %p196 = por %p194, %p195
      %p197 = scmp.ne.s32.totalorder %s183, %s184
      %p198 = scmp.eq.s32.totalorder %s30, 1
      %p199 = por %p197, %p198
      %p201 = scmp.ne.s32.totalorder %s184, %s200
      %p202 = scmp.eq.s32.totalorder %s30, 0
      %p203 = por %p201, %p202
      %s204 = ssub.s32 %s24, %s31
      %p205 = scmp.eq.s32.totalorder %s204, 0
      %s207 = sadd.s32 %s206, 1
      %s208 = scalar_select %p205, %s206, %s207
      %p211 = pneg %p205
      %p212 = scmp.eq.s32.totalorder %s24, 1
      %p213 = por %p211, %p212
      %p214 = scmp.ne.s32.totalorder %s206, %s209
      %p215 = scmp.eq.s32.totalorder %s24, 0
      %p216 = por %p214, %p215
      %p217 = scmp.ne.s32.totalorder %s206, %s209
      %p218 = scmp.eq.s32.totalorder %s29, 1
      %p219 = por %p217, %p218
      %p220 = scmp.ne.s32.totalorder %s209, %s210
      %p221 = scmp.eq.s32.totalorder %s29, 0
      %p222 = por %p220, %p221
      %p223 = scmp.ne.s32.totalorder %s209, %s210
      %p224 = scmp.eq.s32.totalorder %s30, 1
      %p225 = por %p223, %p224
      %p227 = scmp.ne.s32.totalorder %s210, %s226
      %p228 = scmp.eq.s32.totalorder %s30, 0
      %p229 = por %p227, %p228
      %s230 = ssub.s32 %s24, %s31
      %p231 = scmp.eq.s32.totalorder %s230, 0
      %s233 = sadd.s32 %s232, 1
      %s234 = scalar_select %p231, %s232, %s233
      %p237 = pneg %p231
      %p238 = scmp.eq.s32.totalorder %s24, 1
      %p239 = por %p237, %p238
      %p240 = scmp.ne.s32.totalorder %s232, %s235
      %p241 = scmp.eq.s32.totalorder %s24, 0
      %p242 = por %p240, %p241
      %p243 = scmp.ne.s32.totalorder %s232, %s235
      %p244 = scmp.eq.s32.totalorder %s29, 1
      %p245 = por %p243, %p244
      %p246 = scmp.ne.s32.totalorder %s235, %s236
      %p247 = scmp.eq.s32.totalorder %s29, 0
      %p248 = por %p246, %p247
      %p249 = scmp.ne.s32.totalorder %s235, %s236
      %p250 = scmp.eq.s32.totalorder %s30, 1
      %p251 = por %p249, %p250
      %p253 = scmp.ne.s32.totalorder %s236, %s252
      %p254 = scmp.eq.s32.totalorder %s30, 0
      %p255 = por %p253, %p254
      %s256 = ssub.s32 %s24, %s31
      %p257 = scmp.eq.s32.totalorder %s256, 0
      %s259 = sadd.s32 %s258, 1
      %s260 = scalar_select %p257, %s258, %s259
      %p263 = pneg %p257
      %p264 = scmp.eq.s32.totalorder %s24, 1
      %p265 = por %p263, %p264
      %p266 = scmp.ne.s32.totalorder %s258, %s261
      %p267 = scmp.eq.s32.totalorder %s24, 0
      %p268 = por %p266, %p267
      %p269 = scmp.ne.s32.totalorder %s258, %s261
      %p270 = scmp.eq.s32.totalorder %s29, 1
      %p271 = por %p269, %p270
      %p272 = scmp.ne.s32.totalorder %s261, %s262
      %p273 = scmp.eq.s32.totalorder %s29, 0
      %p274 = por %p272, %p273
      %p275 = scmp.ne.s32.totalorder %s261, %s262
      %p276 = scmp.eq.s32.totalorder %s30, 1
      %p277 = por %p275, %p276
      %p279 = scmp.ne.s32.totalorder %s262, %s278
      %p280 = scmp.eq.s32.totalorder %s30, 0
      %p281 = por %p279, %p280
      %s282 = ssub.s32 %s24, %s31
      %p283 = scmp.eq.s32.totalorder %s282, 0
      %s285 = sadd.s32 %s284, 1
      %s286 = scalar_select %p283, %s284, %s285
      %p289 = pneg %p283
      %p290 = scmp.eq.s32.totalorder %s24, 1
      %p291 = por %p289, %p290
      %p292 = scmp.ne.s32.totalorder %s284, %s287
      %p293 = scmp.eq.s32.totalorder %s24, 0
      %p294 = por %p292, %p293
      %p295 = scmp.ne.s32.totalorder %s284, %s287
      %p296 = scmp.eq.s32.totalorder %s29, 1
      %p297 = por %p295, %p296
      %p298 = scmp.ne.s32.totalorder %s287, %s288
      %p299 = scmp.eq.s32.totalorder %s29, 0
      %p300 = por %p298, %p299
      %p301 = scmp.ne.s32.totalorder %s287, %s288
      %p302 = scmp.eq.s32.totalorder %s30, 1
      %p303 = por %p301, %p302
      %p305 = scmp.ne.s32.totalorder %s288, %s304
      %p306 = scmp.eq.s32.totalorder %s30, 0
      %p307 = por %p305, %p306
      %s308 = ssub.s32 %s24, %s31
      %p309 = scmp.eq.s32.totalorder %s308, 0
      %s311 = sadd.s32 %s310, 1
      %s312 = scalar_select %p309, %s310, %s311
      %p315 = pneg %p309
      %p316 = scmp.eq.s32.totalorder %s24, 1
      %p317 = por %p315, %p316
      %p318 = scmp.ne.s32.totalorder %s310, %s313
      %p319 = scmp.eq.s32.totalorder %s24, 0
      %p320 = por %p318, %p319
      %p321 = scmp.ne.s32.totalorder %s310, %s313
      %p322 = scmp.eq.s32.totalorder %s29, 1
      %p323 = por %p321, %p322
      %p324 = scmp.ne.s32.totalorder %s313, %s314
      %p325 = scmp.eq.s32.totalorder %s29, 0
      %p326 = por %p324, %p325
      %p327 = scmp.ne.s32.totalorder %s313, %s314
      %p328 = scmp.eq.s32.totalorder %s30, 1
      %p329 = por %p327, %p328
      %p331 = scmp.ne.s32.totalorder %s314, %s330
      %p332 = scmp.eq.s32.totalorder %s30, 0
      %p333 = por %p331, %p332
      %s335 = sadd.s32 %s334, 1
      %p338 = scmp.eq.s32.totalorder %s24, 1
      %p339 = scmp.ne.s32.totalorder %s334, %s336
      %p340 = scmp.eq.s32.totalorder %s24, 0
      %p341 = por %p339, %p340
      %p342 = scmp.ne.s32.totalorder %s334, %s336
      %p343 = scmp.eq.s32.totalorder %s29, 1
      %p344 = por %p342, %p343
      %p345 = scmp.ne.s32.totalorder %s336, %s337
      %p346 = scmp.eq.s32.totalorder %s29, 0
      %p347 = por %p345, %p346
      %p348 = scmp.ne.s32.totalorder %s336, %s337
      %p349 = scmp.eq.s32.totalorder %s30, 1
      %p350 = por %p348, %p349
      %p352 = scmp.ne.s32.totalorder %s337, %s351
      %p353 = scmp.eq.s32.totalorder %s30, 0
      %p354 = por %p352, %p353
      %s356 = sadd.s32 %s355, 1
      %p359 = scmp.eq.s32.totalorder %s24, 1
      %p360 = scmp.ne.s32.totalorder %s355, %s357
      %p361 = scmp.eq.s32.totalorder %s24, 0
      %p362 = por %p360, %p361
      %p363 = scmp.ne.s32.totalorder %s355, %s357
      %p364 = scmp.eq.s32.totalorder %s29, 1
      %p365 = por %p363, %p364
      %p366 = scmp.ne.s32.totalorder %s357, %s358
      %p367 = scmp.eq.s32.totalorder %s29, 0
      %p368 = por %p366, %p367
      %p369 = scmp.ne.s32.totalorder %s357, %s358
      %p370 = scmp.eq.s32.totalorder %s30, 1
      %p371 = por %p369, %p370
      %p373 = scmp.ne.s32.totalorder %s358, %s372
      %p374 = scmp.eq.s32.totalorder %s30, 0
      %p375 = por %p373, %p374
      %p376 = scmp.le.s32.totalorder 1, %s24
      %p377 = scmp.lt.s32.totalorder %s24, 3
      %p378 = pnand %p376, %p377
      %p379 = pneg %p378
      // Predicated region
      $region9: #{tpu_custom_call.1} parent=5 // pred_check
        _
      $region10: #{tpu_custom_call.1} parent=5 // pred_check_branch
        %381 = sbr.rel (%p378) target = $region12
      $region11: #{tpu_custom_call.1} parent=5 // pred_region
        %s382 = ssub.s32 %s24, 1
        // Predicated region
        $region13: #{tpu_custom_call.1} parent=11 // pred_check
          %p383 = pneg %p45
        $region14: #{tpu_custom_call.1} parent=11 // pred_check_branch
          %385 = sbr.rel (%p383) target = $region16
        $region15: #{tpu_custom_call.1} parent=11 // pred_region
          %s387 = ssub.s32 256, 256
          %388 = vsyncadd [#allocation3], %s387
          %s389 = sshll.u32 [#allocation2], 4
          %s390 = int_to_ptr.vmem [resolvable:$true] %s389
          %395 = dma.hbm_to_vmem [thread:$0]  %s0, 256, %s390, [#allocation3], 128, 128, 8
        $region16: #{tpu_custom_call.1} parent=11 // pred_fallthru
          _
        // Predicated region
        $region17: #{tpu_custom_call.1} parent=11 // pred_check
          %p396 = pneg %p66
        $region18: #{tpu_custom_call.1} parent=11 // pred_check_branch
          %398 = sbr.rel (%p396) target = $region20
        $region19: #{tpu_custom_call.1} parent=11 // pred_region
          %s400 = ssub.s32 512, 512
          %401 = vsyncadd [#allocation6], %s400
          %s402 = sshll.u32 [#allocation5], 4
          %s403 = int_to_ptr.vmem [resolvable:$true] %s402
          %408 = dma.hbm_to_vmem [thread:$0]  %s1, 512, %s403, [#allocation6], 128, 128, 8
        $region20: #{tpu_custom_call.1} parent=11 // pred_fallthru
          _
      $region12: #{tpu_custom_call.1} parent=5 // pred_fallthru
        _
      %p409 = scmp.lt.s32.totalorder %s24, 2
      // Predicated region
      $region21: #{tpu_custom_call.1} parent=5 // pred_check
        %p410 = pneg %p409
      $region22: #{tpu_custom_call.1} parent=5 // pred_check_branch
        %412 = sbr.rel (%p410) target = $region24
      $region23: #{tpu_custom_call.1} parent=5 // pred_region
        // Predicated region
        $region25: #{tpu_custom_call.1} parent=23 // pred_check
          %p413 = pneg %p86
        $region26: #{tpu_custom_call.1} parent=23 // pred_check_branch
          %415 = sbr.rel (%p413) target = $region28
        $region27: #{tpu_custom_call.1} parent=23 // pred_region
          %s416 = sand.u32 %s24, 1
          %s417 = scalar_lea.sflag [#allocation3], %s416
          %s418 = sand.u32 %s76, 1
          %s419 = smul.addr %s418, 128
          %s420 = scalar_lea.vmem [#allocation7], %s419
          %s422 = ssub.s32 2048, 2048
          %423 = vsyncadd %s417, %s422
          %s424 = smul.addr %s24, 16
          %s425 = smul.addr %s424, 128
          %s426 = scalar_lea.hbm %s2, %s425
          %s427 = sshll.u32 %s420, 4
          %s428 = int_to_ptr.vmem [resolvable:$true] %s427
          %433 = dma.hbm_to_vmem [thread:$0]  %s426, 2048, %s428, %s417, 128, 128, 8
        $region28: #{tpu_custom_call.1} parent=23 // pred_fallthru
          _
        // Predicated region
        $region29: #{tpu_custom_call.1} parent=23 // pred_check
          %p434 = pneg %p112
        $region30: #{tpu_custom_call.1} parent=23 // pred_check_branch
          %436 = sbr.rel (%p434) target = $region32
        $region31: #{tpu_custom_call.1} parent=23 // pred_region
          %p437 = scmp.lt.s32.totalorder %s24, 1
          %s438 = scalar_select %p437, %s24, 1
          %s439 = smul.addr %s438, 4
          %s440 = scalar_lea.vmem %s3, %s439
        $region32: #{tpu_custom_call.1} parent=23 // pred_fallthru
          _
        // Predicated region
        $region33: #{tpu_custom_call.1} parent=23 // pred_check
          %p441 = pneg %p138
        $region34: #{tpu_custom_call.1} parent=23 // pred_check_branch
          %443 = sbr.rel (%p441) target = $region36
        $region35: #{tpu_custom_call.1} parent=23 // pred_region
          %s444 = sand.u32 %s24, 1
          %s445 = scalar_lea.sflag [#allocation3], %s444
          %s446 = sand.u32 %s128, 1
          %s447 = smul.addr %s446, 128
          %s448 = scalar_lea.vmem [#allocation8], %s447
          %s450 = ssub.s32 2048, 2048
          %451 = vsyncadd %s445, %s450
          %s452 = smul.addr %s24, 16
          %s453 = smul.addr %s452, 128
          %s454 = scalar_lea.hbm %s4, %s453
          %s455 = sshll.u32 %s448, 4
          %s456 = int_to_ptr.vmem [resolvable:$true] %s455
          %461 = dma.hbm_to_vmem [thread:$0]  %s454, 2048, %s456, %s445, 128, 128, 8
        $region36: #{tpu_custom_call.1} parent=23 // pred_fallthru
          _
        // Predicated region
        $region37: #{tpu_custom_call.1} parent=23 // pred_check
          %p462 = pneg %p164
        $region38: #{tpu_custom_call.1} parent=23 // pred_check_branch
          %464 = sbr.rel (%p462) target = $region40
        $region39: #{tpu_custom_call.1} parent=23 // pred_region
          %p465 = scmp.lt.s32.totalorder %s24, 1
          %s466 = scalar_select %p465, %s24, 1
          %s467 = smul.addr %s466, 4
          %s468 = scalar_lea.vmem %s5, %s467
        $region40: #{tpu_custom_call.1} parent=23 // pred_fallthru
          _
        // Predicated region
        $region41: #{tpu_custom_call.1} parent=23 // pred_check
          %p469 = pneg %p190
        $region42: #{tpu_custom_call.1} parent=23 // pred_check_branch
          %471 = sbr.rel (%p469) target = $region44
        $region43: #{tpu_custom_call.1} parent=23 // pred_region
          %s472 = sand.u32 %s24, 1
          %s473 = scalar_lea.sflag [#allocation3], %s472
          %s474 = sand.u32 %s180, 1
          %s475 = smul.addr %s474, 64
          %s476 = scalar_lea.vmem [#allocation9], %s475
          %s478 = ssub.s32 1024, 1024
          %479 = vsyncadd %s473, %s478
          %s480 = smul.addr %s24, 8
          %s481 = smul.addr %s480, 128
          %s482 = scalar_lea.hbm %s6, %s481
          %s483 = sshll.u32 %s476, 4
          %s484 = int_to_ptr.vmem [resolvable:$true] %s483
          %489 = dma.hbm_to_vmem [thread:$0]  %s482, 1024, %s484, %s473, 128, 128, 8
        $region44: #{tpu_custom_call.1} parent=23 // pred_fallthru
          _
        // Predicated region
        $region45: #{tpu_custom_call.1} parent=23 // pred_check
          %p490 = pneg %p216
        $region46: #{tpu_custom_call.1} parent=23 // pred_check_branch
          %492 = sbr.rel (%p490) target = $region48
        $region47: #{tpu_custom_call.1} parent=23 // pred_region
          %p493 = scmp.lt.s32.totalorder %s24, 1
          %s494 = scalar_select %p493, %s24, 1
          %s495 = smul.addr %s494, 2
          %s496 = scalar_lea.vmem %s7, %s495
        $region48: #{tpu_custom_call.1} parent=23 // pred_fallthru
          _
        // Predicated region
        $region49: #{tpu_custom_call.1} parent=23 // pred_check
          %p497 = pneg %p242
        $region50: #{tpu_custom_call.1} parent=23 // pred_check_branch
          %499 = sbr.rel (%p497) target = $region52
        $region51: #{tpu_custom_call.1} parent=23 // pred_region
          %p500 = scmp.lt.s32.totalorder %s24, 1
          %s501 = scalar_select %p500, %s24, 1
          %s502 = smul.addr %s501, 2
          %s503 = scalar_lea.vmem %s8, %s502
        $region52: #{tpu_custom_call.1} parent=23 // pred_fallthru
          _
        // Predicated region
        $region53: #{tpu_custom_call.1} parent=23 // pred_check
          %p504 = pneg %p268
        $region54: #{tpu_custom_call.1} parent=23 // pred_check_branch
          %506 = sbr.rel (%p504) target = $region56
        $region55: #{tpu_custom_call.1} parent=23 // pred_region
          %s507 = sand.u32 %s24, 1
          %s508 = scalar_lea.sflag [#allocation3], %s507
          %s509 = sand.u32 %s258, 1
          %s510 = smul.addr %s509, 64
          %s511 = scalar_lea.vmem [#allocation10], %s510
          %s513 = ssub.s32 1024, 1024
          %514 = vsyncadd %s508, %s513
          %s515 = smul.addr %s24, 8
          %s516 = smul.addr %s515, 128
          %s517 = scalar_lea.hbm %s9, %s516
          %s518 = sshll.u32 %s511, 4
          %s519 = int_to_ptr.vmem [resolvable:$true] %s518
          %524 = dma.hbm_to_vmem [thread:$0]  %s517, 1024, %s519, %s508, 128, 128, 8
        $region56: #{tpu_custom_call.1} parent=23 // pred_fallthru
          _
        // Predicated region
        $region57: #{tpu_custom_call.1} parent=23 // pred_check
          %p525 = pneg %p294
        $region58: #{tpu_custom_call.1} parent=23 // pred_check_branch
          %527 = sbr.rel (%p525) target = $region60
        $region59: #{tpu_custom_call.1} parent=23 // pred_region
          %p528 = scmp.lt.s32.totalorder %s24, 1
          %s529 = scalar_select %p528, %s24, 1
          %s530 = smul.addr %s529, 2
          %s531 = scalar_lea.vmem %s10, %s530
        $region60: #{tpu_custom_call.1} parent=23 // pred_fallthru
          _
        // Predicated region
        $region61: #{tpu_custom_call.1} parent=23 // pred_check
          %p532 = pneg %p320
        $region62: #{tpu_custom_call.1} parent=23 // pred_check_branch
          %534 = sbr.rel (%p532) target = $region64
        $region63: #{tpu_custom_call.1} parent=23 // pred_region
          %p535 = scmp.lt.s32.totalorder %s24, 1
          %s536 = scalar_select %p535, %s24, 1
          %s537 = smul.addr %s536, 2
          %s538 = scalar_lea.vmem %s11, %s537
        $region64: #{tpu_custom_call.1} parent=23 // pred_fallthru
          _
      $region24: #{tpu_custom_call.1} parent=5 // pred_fallthru
        _
      %p539 = scmp.le.s32.totalorder 1, %s24
      %p540 = scmp.lt.s32.totalorder %s24, 3
      %p541 = pnand %p539, %p540
      %p542 = pneg %p541
      // Predicated region
      $region65: #{tpu_custom_call.1} parent=5 // pred_check
        _
      $region66: #{tpu_custom_call.1} parent=5 // pred_check_branch
        %544 = sbr.rel (%p541) target = $region68
      $region67: #{tpu_custom_call.1} parent=5 // pred_region
        %s545 = ssub.s32 %s24, 1
        // Predicated region
        $region69: #{tpu_custom_call.1} parent=67 // pred_check
          %p546 = pneg %p45
        $region70: #{tpu_custom_call.1} parent=67 // pred_check_branch
          %548 = sbr.rel (%p546) target = $region72
        $region71: #{tpu_custom_call.1} parent=67 // pred_region
          %549 = dma.done [#allocation3], 256
        $region72: #{tpu_custom_call.1} parent=67 // pred_fallthru
          _
        // Predicated region
        $region73: #{tpu_custom_call.1} parent=67 // pred_check
          %p550 = pneg %p66
        $region74: #{tpu_custom_call.1} parent=67 // pred_check_branch
          %552 = sbr.rel (%p550) target = $region76
        $region75: #{tpu_custom_call.1} parent=67 // pred_region
          %553 = dma.done [#allocation6], 512
        $region76: #{tpu_custom_call.1} parent=67 // pred_fallthru
          _
        %s554 = sand.u32 %s29, 1
        %s555 = scalar_lea.sflag [#allocation3], %s554
        %s556 = sand.u32 %s79, 1
        %s557 = smul.addr %s556, 128
        %s558 = scalar_lea.vmem [#allocation7], %s557
        // Predicated region
        $region77: #{tpu_custom_call.1} parent=67 // pred_check
          %p559 = pneg %p92
        $region78: #{tpu_custom_call.1} parent=67 // pred_check_branch
          %561 = sbr.rel (%p559) target = $region80
        $region79: #{tpu_custom_call.1} parent=67 // pred_region
          %562 = dma.done %s555, 2048
        $region80: #{tpu_custom_call.1} parent=67 // pred_fallthru
          _
        %s563 = sand.u32 %s29, 1
        %s564 = scalar_lea.sflag [#allocation3], %s563
        %s565 = sand.u32 %s131, 1
        %s566 = smul.addr %s565, 128
        %s567 = scalar_lea.vmem [#allocation8], %s566
        // Predicated region
        $region81: #{tpu_custom_call.1} parent=67 // pred_check
          %p568 = pneg %p144
        $region82: #{tpu_custom_call.1} parent=67 // pred_check_branch
          %570 = sbr.rel (%p568) target = $region84
        $region83: #{tpu_custom_call.1} parent=67 // pred_region
          %571 = dma.done %s564, 2048
        $region84: #{tpu_custom_call.1} parent=67 // pred_fallthru
          _
        %s572 = sand.u32 %s29, 1
        %s573 = scalar_lea.sflag [#allocation3], %s572
        %s574 = sand.u32 %s183, 1
        %s575 = smul.addr %s574, 64
        %s576 = scalar_lea.vmem [#allocation9], %s575
        // Predicated region
        $region85: #{tpu_custom_call.1} parent=67 // pred_check
          %p577 = pneg %p196
        $region86: #{tpu_custom_call.1} parent=67 // pred_check_branch
          %579 = sbr.rel (%p577) target = $region88
        $region87: #{tpu_custom_call.1} parent=67 // pred_region
          %580 = dma.done %s573, 1024
        $region88: #{tpu_custom_call.1} parent=67 // pred_fallthru
          _
        %s581 = sand.u32 %s29, 1
        %s582 = scalar_lea.sflag [#allocation3], %s581
        %s583 = sand.u32 %s261, 1
        %s584 = smul.addr %s583, 64
        %s585 = scalar_lea.vmem [#allocation10], %s584
        // Predicated region
        $region89: #{tpu_custom_call.1} parent=67 // pred_check
          %p586 = pneg %p274
        $region90: #{tpu_custom_call.1} parent=67 // pred_check_branch
          %588 = sbr.rel (%p586) target = $region92
        $region91: #{tpu_custom_call.1} parent=67 // pred_region
          %589 = dma.done %s582, 1024
        $region92: #{tpu_custom_call.1} parent=67 // pred_fallthru
          _
        %p590 = pneg %p45
        %p591 = pneg %p42
        %p592 = pneg %p66
        %p593 = pneg %p63
        %s594 = sand.u32 %s29, 1
        %s595 = scalar_lea.sflag [#allocation3], %s594
        %s596 = sand.u32 %s79, 1
        %s597 = smul.addr %s596, 128
        %s598 = scalar_lea.vmem [#allocation7], %s597
        %p599 = pneg %p92
        %p600 = pneg %p89
        %p601 = scmp.lt.s32.totalorder %s29, 1
        %s602 = scalar_select %p601, %s29, 1
        %s603 = smul.addr %s602, 4
        %s604 = scalar_lea.vmem %s3, %s603
        %p605 = pneg %p118
        %p606 = pneg %p115
        %s607 = sand.u32 %s29, 1
        %s608 = scalar_lea.sflag [#allocation3], %s607
        %s609 = sand.u32 %s131, 1
        %s610 = smul.addr %s609, 128
        %s611 = scalar_lea.vmem [#allocation8], %s610
        %p612 = pneg %p144
        %p613 = pneg %p141
        %p614 = scmp.lt.s32.totalorder %s29, 1
        %s615 = scalar_select %p614, %s29, 1
        %s616 = smul.addr %s615, 4
        %s617 = scalar_lea.vmem %s5, %s616
        %p618 = pneg %p170
        %p619 = pneg %p167
        %s620 = sand.u32 %s29, 1
        %s621 = scalar_lea.sflag [#allocation3], %s620
        %s622 = sand.u32 %s183, 1
        %s623 = smul.addr %s622, 64
        %s624 = scalar_lea.vmem [#allocation9], %s623
        %p625 = pneg %p196
        %p626 = pneg %p193
        %p627 = scmp.lt.s32.totalorder %s29, 1
        %s628 = scalar_select %p627, %s29, 1
        %s629 = smul.addr %s628, 2
        %s630 = scalar_lea.vmem %s7, %s629
        %p631 = pneg %p222
        %p632 = pneg %p219
        %p633 = scmp.lt.s32.totalorder %s29, 1
        %s634 = scalar_select %p633, %s29, 1
        %s635 = smul.addr %s634, 2
        %s636 = scalar_lea.vmem %s8, %s635
        %p637 = pneg %p248
        %p638 = pneg %p245
        %s639 = sand.u32 %s29, 1
        %s640 = scalar_lea.sflag [#allocation3], %s639
        %s641 = sand.u32 %s261, 1
        %s642 = smul.addr %s641, 64
        %s643 = scalar_lea.vmem [#allocation10], %s642
        %p644 = pneg %p274
        %p645 = pneg %p271
        %p646 = scmp.lt.s32.totalorder %s29, 1
        %s647 = scalar_select %p646, %s29, 1
        %s648 = smul.addr %s647, 2
        %s649 = scalar_lea.vmem %s10, %s648
        %p650 = pneg %p300
        %p651 = pneg %p297
        %p652 = scmp.lt.s32.totalorder %s29, 1
        %s653 = scalar_select %p652, %s29, 1
        %s654 = smul.addr %s653, 2
        %s655 = scalar_lea.vmem %s11, %s654
        %p656 = pneg %p326
        %p657 = pneg %p323
        %p658 = pneg %p347
        %p659 = pneg %p344
        %p660 = pneg %p368
        %p661 = pneg %p365
        %p662 = scmp.lt.s32.totalorder %s29, 1
        %s663 = scalar_select %p662, %s29, 1
        %s664 = smul.addr %s663, 4
        %s665 = scalar_lea.vmem %s3, %s664
        %p666 = scmp.lt.s32.totalorder %s29, 1
        %s667 = scalar_select %p666, %s29, 1
        %s668 = smul.addr %s667, 4
        %s669 = scalar_lea.vmem %s5, %s668
        %p670 = scmp.lt.s32.totalorder %s29, 1
        %s671 = scalar_select %p670, %s29, 1
        %s672 = smul.addr %s671, 2
        %s673 = scalar_lea.vmem %s7, %s672
        %p674 = scmp.lt.s32.totalorder %s29, 1
        %s675 = scalar_select %p674, %s29, 1
        %s676 = smul.addr %s675, 2
        %s677 = scalar_lea.vmem %s8, %s676
        %p678 = scmp.lt.s32.totalorder %s29, 1
        %s679 = scalar_select %p678, %s29, 1
        %s680 = smul.addr %s679, 2
        %s681 = scalar_lea.vmem %s10, %s680
        %p682 = scmp.lt.s32.totalorder %s29, 1
        %s683 = scalar_select %p682, %s29, 1
        %s684 = smul.addr %s683, 2
        %s685 = scalar_lea.vmem %s11, %s684
        %p686 = scmp.eq.s32.totalorder %s29, 0
        // Predicated region
        $region93: #{tpu_custom_call.1} parent=67 // pred_check
          %p687 = pneg %p686
        $region94: #{tpu_custom_call.1} parent=67 // pred_check_branch
          %689 = sbr.rel (%p687) target = $region96
        $region95: #{tpu_custom_call.1} parent=67 // pred_region
          %v690 = vld [vmem:[#allocation2] sm:$0xff]
          %v691 = vld [vmem:[#allocation2 + $0x8] sm:$0xff]
          %vm692 = vcmask 261120
          %693 = vst.msk [vmem:[#allocation11] sm:$0xff] %vm692, %v690
          %694 = vst.msk [vmem:[#allocation11 + $0x8] sm:$0xff] %vm692, %v691
          %v695 = vld [vmem:[#allocation5] sm:$0xff]
          %v696 = vld [vmem:[#allocation5 + $0x8] sm:$0xff]
          %v697 = vld [vmem:[#allocation5 + $0x10] sm:$0xff]
          %v698 = vld [vmem:[#allocation5 + $0x18] sm:$0xff]
          %699 = vst.msk [vmem:[#allocation12] sm:$0xff] %vm692, %v695
          %700 = vst.msk [vmem:[#allocation12 + $0x8] sm:$0xff] %vm692, %v696
          %701 = vst.msk [vmem:[#allocation12 + $0x10] sm:$0xff] %vm692, %v697
          %702 = vst.msk [vmem:[#allocation12 + $0x18] sm:$0xff] %vm692, %v698
        $region96: #{tpu_custom_call.1} parent=67 // pred_fallthru
          _
        %v703 = vld [vmem:[#allocation11] sm:$0xff]
        %v704 = vld [vmem:[#allocation11 + $0x8] sm:$0xff]
        %v705 = vld [vmem:[#allocation12] sm:$0xff]
        %v706 = vld [vmem:[#allocation12 + $0x8] sm:$0xff]
        %v707 = vld [vmem:[#allocation12 + $0x10] sm:$0xff]
        %v708 = vld [vmem:[#allocation12 + $0x18] sm:$0xff]
        %v709 = vld [vmem:[%s558] sm:$0xff]
        %v710 = vld [vmem:[%s558 + $0x8] sm:$0xff]
        %v711 = vld [vmem:[%s558 + $0x10] sm:$0xff]
        %v712 = vld [vmem:[%s558 + $0x18] sm:$0xff]
        %v713 = vld [vmem:[%s558 + $0x20] sm:$0xff]
        %v714 = vld [vmem:[%s558 + $0x28] sm:$0xff]
        %v715 = vld [vmem:[%s558 + $0x30] sm:$0xff]
        %v716 = vld [vmem:[%s558 + $0x38] sm:$0xff]
        %v717 = vld [vmem:[%s558 + $0x40] sm:$0xff]
        %v718 = vld [vmem:[%s558 + $0x48] sm:$0xff]
        %v719 = vld [vmem:[%s558 + $0x50] sm:$0xff]
        %v720 = vld [vmem:[%s558 + $0x58] sm:$0xff]
        %v721 = vld [vmem:[%s558 + $0x60] sm:$0xff]
        %v722 = vld [vmem:[%s558 + $0x68] sm:$0xff]
        %v723 = vld [vmem:[%s558 + $0x70] sm:$0xff]
        %v724 = vld [vmem:[%s558 + $0x78] sm:$0xff]
        %v725 = vld [vmem:[%s665] sm:$0xf]
        %v726 = vlaneseq
        %v727 = vshrl.u32 %v726, 7
        %v728 = vsub.s32 0, %v727
        %v729 = vrot.slane %v725, %v728
        %vm730 = vcmask 261120
        %v732 = vsel %vm730, %v703, 0
        %v735 = vsel %vm730, %v704, 0
        %737 = vmatprep.subr.mxu0 0.0
        %738 = vmatpush1.msra.mxu0 %v709
        %739 = vmatprep.subr.mxu0 0.0
        %740 = vmatpush1.msra.mxu0 %v710
        %741 = vmatprep.subr.mxu0 0.0
        %742 = vmatpush1.msra.mxu0 %v711
        %743 = vmatprep.subr.mxu0 0.0
        %744 = vmatpush1.msra.mxu0 %v712
        %745 = vmatprep.subr.mxu0 0.0
        %746 = vmatpush1.msra.mxu0 0.0
        %747 = vmatprep.subr.mxu0 0.0
        %748 = vmatpush1.msra.mxu0 0.0
        %749 = vmatprep.subr.mxu0 0.0
        %750 = vmatpush1.msra.mxu0 0.0
        %751 = vmatprep.subr.mxu0 0.0
        %752 = vmatpush1.msra.mxu0 0.0
        %753 = vmatprep.subr.mxu0 0.0
        %754 = vmatpush1.msra.mxu0 0.0
        %755 = vmatprep.subr.mxu0 0.0
        %756 = vmatpush1.msra.mxu0 0.0
        %757 = vmatprep.subr.mxu0 0.0
        %758 = vmatpush1.msra.mxu0 0.0
        %759 = vmatprep.subr.mxu0 0.0
        %760 = vmatpush1.msra.mxu0 0.0
        %761 = vmatprep.subr.mxu0 0.0
        %762 = vmatpush1.msra.mxu0 0.0
        %763 = vmatprep.subr.mxu0 0.0
        %764 = vmatpush1.msra.mxu0 0.0
        %765 = vmatprep.subr.mxu0 0.0
        %766 = vmatpush1.msra.mxu0 0.0
        %767 = vmatprep.subr.mxu0 0.0
        %768 = vmatpush1.msra.mxu0 0.0
        %769 = vmatprep.subr.mxu0 0.0
        %770 = vmatpush1.msra.mxu0 0.0
        %771 = vmatprep.subr.mxu0 0.0
        %772 = vmatpush1.msra.mxu0 0.0
        %773 = vmatprep.subr.mxu0 0.0
        %774 = vmatpush1.msra.mxu0 0.0
        %775 = vmatprep.subr.mxu0 0.0
        %776 = vmatpush1.msra.mxu0 0.0
        %777 = vmatprep.subr.mxu0 0.0
        %778 = vmatpush1.msra.mxu0 0.0
        %779 = vmatprep.subr.mxu0 0.0
        %780 = vmatpush1.msra.mxu0 0.0
        %781 = vmatprep.subr.mxu0 0.0
        %782 = vmatpush1.msra.mxu0 0.0
        %783 = vmatprep.subr.mxu0 0.0
        %784 = vmatpush1.msra.mxu0 0.0
        %785 = vmatprep.subr.mxu0 0.0
        %786 = vmatpush1.msra.mxu0 0.0
        %787 = vmatprep.subr.mxu0 0.0
        %788 = vmatpush1.msra.mxu0 0.0
        %789 = vmatprep.subr.mxu0 0.0
        %790 = vmatpush1.msra.mxu0 0.0
        %791 = vmatprep.subr.mxu0 0.0
        %792 = vmatpush1.msra.mxu0 0.0
        %793 = vmatprep.subr.mxu0 0.0
        %794 = vmatpush1.msra.mxu0 0.0
        %795 = vmatprep.subr.mxu0 0.0
        %796 = vmatpush1.msra.mxu0 0.0
        %797 = vmatprep.subr.mxu0 0.0
        %798 = vmatpush1.msra.mxu0 0.0
        %799 = vmatprep.subr.mxu0 0.0
        %800 = vmatpush1.msra.mxu0 0.0
        %801 = vmatprep.mubr.f32.mxu0 0.0
        %802 = vmatmul.mubr.f32.gmra.mrb[0].mxu0 %v732
        %v803 = vpop.f32.mrb[0].mxu0
        %v804 = vadd.f32 %v729, %v803
        %v805 = vpop.f32.mrb[0].mxu0
        %806 = vmatprep.mubr.f32.mxu0 0.0
        %807 = vmatmul.mubr.f32.gmra.mrb[0].mxu0 %v735
        %v808 = vpop.f32.mrb[0].mxu0
        %v809 = vadd.f32 %v729, %v808
        %v810 = vpop.f32.mrb[0].mxu0
        %811 = vdwg.mxu0
        %v812 = vlaneseq
        %v813 = vshrl.u32 %v812, 7
        %v814 = vsub.s32 1, %v813
        %v815 = vrot.slane %v725, %v814
        %v817 = vsel %vm730, %v705, 0
        %v820 = vsel %vm730, %v706, 0
        %v823 = vsel %vm730, %v707, 0
        %v826 = vsel %vm730, %v708, 0
        %828 = vmatprep.subr.mxu0 0.0
        %829 = vmatpush1.msra.mxu0 %v713
        %830 = vmatprep.subr.mxu0 0.0
        %831 = vmatpush1.msra.mxu0 %v714
        %832 = vmatprep.subr.mxu0 0.0
        %833 = vmatpush1.msra.mxu0 %v715
        %834 = vmatprep.subr.mxu0 0.0
        %835 = vmatpush1.msra.mxu0 %v716
        %836 = vmatprep.subr.mxu0 0.0
        %837 = vmatpush1.msra.mxu0 0.0
        %838 = vmatprep.subr.mxu0 0.0
        %839 = vmatpush1.msra.mxu0 0.0
        %840 = vmatprep.subr.mxu0 0.0
        %841 = vmatpush1.msra.mxu0 0.0
        %842 = vmatprep.subr.mxu0 0.0
        %843 = vmatpush1.msra.mxu0 0.0
        %844 = vmatprep.subr.mxu0 0.0
        %845 = vmatpush1.msra.mxu0 0.0
        %846 = vmatprep.subr.mxu0 0.0
        %847 = vmatpush1.msra.mxu0 0.0
        %848 = vmatprep.subr.mxu0 0.0
        %849 = vmatpush1.msra.mxu0 0.0
        %850 = vmatprep.subr.mxu0 0.0
        %851 = vmatpush1.msra.mxu0 0.0
        %852 = vmatprep.subr.mxu0 0.0
        %853 = vmatpush1.msra.mxu0 0.0
        %854 = vmatprep.subr.mxu0 0.0
        %855 = vmatpush1.msra.mxu0 0.0
        %856 = vmatprep.subr.mxu0 0.0
        %857 = vmatpush1.msra.mxu0 0.0
        %858 = vmatprep.subr.mxu0 0.0
        %859 = vmatpush1.msra.mxu0 0.0
        %860 = vmatprep.subr.mxu0 0.0
        %861 = vmatpush1.msra.mxu0 0.0
        %862 = vmatprep.subr.mxu0 0.0
        %863 = vmatpush1.msra.mxu0 0.0
        %864 = vmatprep.subr.mxu0 0.0
        %865 = vmatpush1.msra.mxu0 0.0
        %866 = vmatprep.subr.mxu0 0.0
        %867 = vmatpush1.msra.mxu0 0.0
        %868 = vmatprep.subr.mxu0 0.0
        %869 = vmatpush1.msra.mxu0 0.0
        %870 = vmatprep.subr.mxu0 0.0
        %871 = vmatpush1.msra.mxu0 0.0
        %872 = vmatprep.subr.mxu0 0.0
        %873 = vmatpush1.msra.mxu0 0.0
        %874 = vmatprep.subr.mxu0 0.0
        %875 = vmatpush1.msra.mxu0 0.0
        %876 = vmatprep.subr.mxu0 0.0
        %877 = vmatpush1.msra.mxu0 0.0
        %878 = vmatprep.subr.mxu0 0.0
        %879 = vmatpush1.msra.mxu0 0.0
        %880 = vmatprep.subr.mxu0 0.0
        %881 = vmatpush1.msra.mxu0 0.0
        %882 = vmatprep.subr.mxu0 0.0
        %883 = vmatpush1.msra.mxu0 0.0
        %884 = vmatprep.subr.mxu0 0.0
        %885 = vmatpush1.msra.mxu0 0.0
        %886 = vmatprep.subr.mxu0 0.0
        %887 = vmatpush1.msra.mxu0 0.0
        %888 = vmatprep.subr.mxu0 0.0
        %889 = vmatpush1.msra.mxu0 0.0
        %890 = vmatprep.subr.mxu0 0.0
        %891 = vmatpush1.msra.mxu0 0.0
        %892 = vmatprep.mubr.f32.mxu0 0.0
        %893 = vmatmul.mubr.f32.gmra.mrb[0].mxu0 %v817
        %v894 = vpop.f32.mrb[0].mxu0
        %v895 = vadd.f32 %v815, %v894
        %v896 = vpop.f32.mrb[0].mxu0
        %897 = vmatprep.mubr.f32.mxu0 0.0
        %898 = vmatmul.mubr.f32.gmra.mrb[0].mxu0 %v820
        %v899 = vpop.f32.mrb[0].mxu0
        %v900 = vadd.f32 %v815, %v899
        %v901 = vpop.f32.mrb[0].mxu0
        %902 = vmatprep.mubr.f32.mxu0 0.0
        %903 = vmatmul.mubr.f32.gmra.mrb[0].mxu0 %v823
        %v904 = vpop.f32.mrb[0].mxu0
        %v905 = vadd.f32 %v815, %v904
        %v906 = vpop.f32.mrb[0].mxu0
        %907 = vmatprep.mubr.f32.mxu0 0.0
        %908 = vmatmul.mubr.f32.gmra.mrb[0].mxu0 %v826
        %v909 = vpop.f32.mrb[0].mxu0
        %v910 = vadd.f32 %v815, %v909
        %v911 = vpop.f32.mrb[0].mxu0
        %912 = vdwg.mxu0
        %v913 = vlaneseq
        %v914 = vshrl.u32 %v913, 7
        %v915 = vsub.s32 2, %v914
        %v916 = vrot.slane %v725, %v915
        %917 = vmatprep.subr.mxu0 0.0
        %918 = vmatpush1.msra.mxu0 %v717
        %919 = vmatprep.subr.mxu0 0.0
        %920 = vmatpush1.msra.mxu0 %v718
        %921 = vmatprep.subr.mxu0 0.0
        %922 = vmatpush1.msra.mxu0 %v719
        %923 = vmatprep.subr.mxu0 0.0
        %924 = vmatpush1.msra.mxu0 %v720
        %925 = vmatprep.subr.mxu0 0.0
        %926 = vmatpush1.msra.mxu0 0.0
        %927 = vmatprep.subr.mxu0 0.0
        %928 = vmatpush1.msra.mxu0 0.0
        %929 = vmatprep.subr.mxu0 0.0
        %930 = vmatpush1.msra.mxu0 0.0
        %931 = vmatprep.subr.mxu0 0.0
        %932 = vmatpush1.msra.mxu0 0.0
        %933 = vmatprep.subr.mxu0 0.0
        %934 = vmatpush1.msra.mxu0 0.0
        %935 = vmatprep.subr.mxu0 0.0
        %936 = vmatpush1.msra.mxu0 0.0
        %937 = vmatprep.subr.mxu0 0.0
        %938 = vmatpush1.msra.mxu0 0.0
        %939 = vmatprep.subr.mxu0 0.0
        %940 = vmatpush1.msra.mxu0 0.0
        %941 = vmatprep.subr.mxu0 0.0
        %942 = vmatpush1.msra.mxu0 0.0
        %943 = vmatprep.subr.mxu0 0.0
        %944 = vmatpush1.msra.mxu0 0.0
        %945 = vmatprep.subr.mxu0 0.0
        %946 = vmatpush1.msra.mxu0 0.0
        %947 = vmatprep.subr.mxu0 0.0
        %948 = vmatpush1.msra.mxu0 0.0
        %949 = vmatprep.subr.mxu0 0.0
        %950 = vmatpush1.msra.mxu0 0.0
        %951 = vmatprep.subr.mxu0 0.0
        %952 = vmatpush1.msra.mxu0 0.0
        %953 = vmatprep.subr.mxu0 0.0
        %954 = vmatpush1.msra.mxu0 0.0
        %955 = vmatprep.subr.mxu0 0.0
        %956 = vmatpush1.msra.mxu0 0.0
        %957 = vmatprep.subr.mxu0 0.0
        %958 = vmatpush1.msra.mxu0 0.0
        %959 = vmatprep.subr.mxu0 0.0
        %960 = vmatpush1.msra.mxu0 0.0
        %961 = vmatprep.subr.mxu0 0.0
        %962 = vmatpush1.msra.mxu0 0.0
        %963 = vmatprep.subr.mxu0 0.0
        %964 = vmatpush1.msra.mxu0 0.0
        %965 = vmatprep.subr.mxu0 0.0
        %966 = vmatpush1.msra.mxu0 0.0
        %967 = vmatprep.subr.mxu0 0.0
        %968 = vmatpush1.msra.mxu0 0.0
        %969 = vmatprep.subr.mxu0 0.0
        %970 = vmatpush1.msra.mxu0 0.0
        %971 = vmatprep.subr.mxu0 0.0
        %972 = vmatpush1.msra.mxu0 0.0
        %973 = vmatprep.subr.mxu0 0.0
        %974 = vmatpush1.msra.mxu0 0.0
        %975 = vmatprep.subr.mxu0 0.0
        %976 = vmatpush1.msra.mxu0 0.0
        %977 = vmatprep.subr.mxu0 0.0
        %978 = vmatpush1.msra.mxu0 0.0
        %979 = vmatprep.subr.mxu0 0.0
        %980 = vmatpush1.msra.mxu0 0.0
        %981 = vmatprep.mubr.f32.mxu0 0.0
        %982 = vmatmul.mubr.f32.gmra.mrb[0].mxu0 %v817
        %v983 = vpop.f32.mrb[0].mxu0
        %v984 = vadd.f32 %v916, %v983
        %v985 = vpop.f32.mrb[0].mxu0
        %986 = vmatprep.mubr.f32.mxu0 0.0
        %987 = vmatmul.mubr.f32.gmra.mrb[0].mxu0 %v820
        %v988 = vpop.f32.mrb[0].mxu0
        %v989 = vadd.f32 %v916, %v988
        %v990 = vpop.f32.mrb[0].mxu0
        %991 = vmatprep.mubr.f32.mxu0 0.0
        %992 = vmatmul.mubr.f32.gmra.mrb[0].mxu0 %v823
        %v993 = vpop.f32.mrb[0].mxu0
        %v994 = vadd.f32 %v916, %v993
        %v995 = vpop.f32.mrb[0].mxu0
        %996 = vmatprep.mubr.f32.mxu0 0.0
        %997 = vmatmul.mubr.f32.gmra.mrb[0].mxu0 %v826
        %v998 = vpop.f32.mrb[0].mxu0
        %v999 = vadd.f32 %v916, %v998
        %v1000 = vpop.f32.mrb[0].mxu0
        %1001 = vdwg.mxu0
        %vm1002 = vcmask 64512
        %v1004 = vsel %vm1002, %v804, 0
        %v1007 = vsel %vm1002, %v895, 0
        %v1010 = vsel %vm1002, %v900, 0
        %1012 = vmatprep.subr.mxu0 0.0
        %1013 = vmatpush1.xpose.msra.mxu0 %v1007
        %1014 = vmatprep.subr.mxu0 0.0
        %1015 = vmatpush1.xpose.msra.mxu0 %v1010
        %1016 = vmatprep.subr.mxu0 0.0
        %1017 = vmatpush1.xpose.msra.mxu0 0.0
        %1018 = vmatprep.subr.mxu0 0.0
        %1019 = vmatpush1.xpose.msra.mxu0 0.0
        %1020 = vmatprep.subr.mxu0 0.0
        %1021 = vmatpush1.xpose.msra.mxu0 0.0
        %1022 = vmatprep.subr.mxu0 0.0
        %1023 = vmatpush1.xpose.msra.mxu0 0.0
        %1024 = vmatprep.subr.mxu0 0.0
        %1025 = vmatpush1.xpose.msra.mxu0 0.0
        %1026 = vmatprep.subr.mxu0 0.0
        %1027 = vmatpush1.xpose.msra.mxu0 0.0
        %1028 = vmatprep.subr.mxu0 0.0
        %1029 = vmatpush1.xpose.msra.mxu0 0.0
        %1030 = vmatprep.subr.mxu0 0.0
        %1031 = vmatpush1.xpose.msra.mxu0 0.0
        %1032 = vmatprep.subr.mxu0 0.0
        %1033 = vmatpush1.xpose.msra.mxu0 0.0
        %1034 = vmatprep.subr.mxu0 0.0
        %1035 = vmatpush1.xpose.msra.mxu0 0.0
        %1036 = vmatprep.subr.mxu0 0.0
        %1037 = vmatpush1.xpose.msra.mxu0 0.0
        %1038 = vmatprep.subr.mxu0 0.0
        %1039 = vmatpush1.xpose.msra.mxu0 0.0
        %1040 = vmatprep.subr.mxu0 0.0
        %1041 = vmatpush1.xpose.msra.mxu0 0.0
        %1042 = vmatprep.subr.mxu0 0.0
        %1043 = vmatpush1.xpose.msra.mxu0 0.0
        %1044 = vmatprep.subr.mxu0 0.0
        %1045 = vmatpush1.xpose.msra.mxu0 0.0
        %1046 = vmatprep.subr.mxu0 0.0
        %1047 = vmatpush1.xpose.msra.mxu0 0.0
        %1048 = vmatprep.subr.mxu0 0.0
        %1049 = vmatpush1.xpose.msra.mxu0 0.0
        %1050 = vmatprep.subr.mxu0 0.0
        %1051 = vmatpush1.xpose.msra.mxu0 0.0
        %1052 = vmatprep.subr.mxu0 0.0
        %1053 = vmatpush1.xpose.msra.mxu0 0.0
        %1054 = vmatprep.subr.mxu0 0.0
        %1055 = vmatpush1.xpose.msra.mxu0 0.0
        %1056 = vmatprep.subr.mxu0 0.0
        %1057 = vmatpush1.xpose.msra.mxu0 0.0
        %1058 = vmatprep.subr.mxu0 0.0
        %1059 = vmatpush1.xpose.msra.mxu0 0.0
        %1060 = vmatprep.subr.mxu0 0.0
        %1061 = vmatpush1.xpose.msra.mxu0 0.0
        %1062 = vmatprep.subr.mxu0 0.0
        %1063 = vmatpush1.xpose.msra.mxu0 0.0
        %1064 = vmatprep.subr.mxu0 0.0
        %1065 = vmatpush1.xpose.msra.mxu0 0.0
        %1066 = vmatprep.subr.mxu0 0.0
        %1067 = vmatpush1.xpose.msra.mxu0 0.0
        %1068 = vmatprep.subr.mxu0 0.0
        %1069 = vmatpush1.xpose.msra.mxu0 0.0
        %1070 = vmatprep.subr.mxu0 0.0
        %1071 = vmatpush1.xpose.msra.mxu0 0.0
        %1072 = vmatprep.subr.mxu0 0.0
        %1073 = vmatpush1.xpose.msra.mxu0 0.0
        %1074 = vmatprep.subr.mxu0 0.0
        %1075 = vmatpush1.xpose.msra.mxu0 0.0
        %1076 = vmatprep.mubr.f32.mxu0 0.0
        %1077 = vmatmul.mubr.f32.gmra.mrb[0].mxu0 %v1004
        %v1078 = vpop.f32.mrb[0].mxu0
        %v1079 = vadd.f32 0.0, %v1078
        %v1080 = vpop.f32.mrb[0].mxu0
        %1081 = vdwg.mxu0
        %v1083 = vsel %vm1002, %v809, 0
        %v1086 = vsel %vm1002, %v905, 0
        %v1089 = vsel %vm1002, %v910, 0
        %1091 = vmatprep.subr.mxu0 0.0
        %1092 = vmatpush1.xpose.msra.mxu0 %v1086
        %1093 = vmatprep.subr.mxu0 0.0
        %1094 = vmatpush1.xpose.msra.mxu0 %v1089
        %1095 = vmatprep.subr.mxu0 0.0
        %1096 = vmatpush1.xpose.msra.mxu0 0.0
        %1097 = vmatprep.subr.mxu0 0.0
        %1098 = vmatpush1.xpose.msra.mxu0 0.0
        %1099 = vmatprep.subr.mxu0 0.0
        %1100 = vmatpush1.xpose.msra.mxu0 0.0
        %1101 = vmatprep.subr.mxu0 0.0
        %1102 = vmatpush1.xpose.msra.mxu0 0.0
        %1103 = vmatprep.subr.mxu0 0.0
        %1104 = vmatpush1.xpose.msra.mxu0 0.0
        %1105 = vmatprep.subr.mxu0 0.0
        %1106 = vmatpush1.xpose.msra.mxu0 0.0
        %1107 = vmatprep.subr.mxu0 0.0
        %1108 = vmatpush1.xpose.msra.mxu0 0.0
        %1109 = vmatprep.subr.mxu0 0.0
        %1110 = vmatpush1.xpose.msra.mxu0 0.0
        %1111 = vmatprep.subr.mxu0 0.0
        %1112 = vmatpush1.xpose.msra.mxu0 0.0
        %1113 = vmatprep.subr.mxu0 0.0
        %1114 = vmatpush1.xpose.msra.mxu0 0.0
        %1115 = vmatprep.subr.mxu0 0.0
        %1116 = vmatpush1.xpose.msra.mxu0 0.0
        %1117 = vmatprep.subr.mxu0 0.0
        %1118 = vmatpush1.xpose.msra.mxu0 0.0
        %1119 = vmatprep.subr.mxu0 0.0
        %1120 = vmatpush1.xpose.msra.mxu0 0.0
        %1121 = vmatprep.subr.mxu0 0.0
        %1122 = vmatpush1.xpose.msra.mxu0 0.0
        %1123 = vmatprep.subr.mxu0 0.0
        %1124 = vmatpush1.xpose.msra.mxu0 0.0
        %1125 = vmatprep.subr.mxu0 0.0
        %1126 = vmatpush1.xpose.msra.mxu0 0.0
        %1127 = vmatprep.subr.mxu0 0.0
        %1128 = vmatpush1.xpose.msra.mxu0 0.0
        %1129 = vmatprep.subr.mxu0 0.0
        %1130 = vmatpush1.xpose.msra.mxu0 0.0
        %1131 = vmatprep.subr.mxu0 0.0
        %1132 = vmatpush1.xpose.msra.mxu0 0.0
        %1133 = vmatprep.subr.mxu0 0.0
        %1134 = vmatpush1.xpose.msra.mxu0 0.0
        %1135 = vmatprep.subr.mxu0 0.0
        %1136 = vmatpush1.xpose.msra.mxu0 0.0
        %1137 = vmatprep.subr.mxu0 0.0
        %1138 = vmatpush1.xpose.msra.mxu0 0.0
        %1139 = vmatprep.subr.mxu0 0.0
        %1140 = vmatpush1.xpose.msra.mxu0 0.0
        %1141 = vmatprep.subr.mxu0 0.0
        %1142 = vmatpush1.xpose.msra.mxu0 0.0
        %1143 = vmatprep.subr.mxu0 0.0
        %1144 = vmatpush1.xpose.msra.mxu0 0.0
        %1145 = vmatprep.subr.mxu0 0.0
        %1146 = vmatpush1.xpose.msra.mxu0 0.0
        %1147 = vmatprep.subr.mxu0 0.0
        %1148 = vmatpush1.xpose.msra.mxu0 0.0
        %1149 = vmatprep.subr.mxu0 0.0
        %1150 = vmatpush1.xpose.msra.mxu0 0.0
        %1151 = vmatprep.subr.mxu0 0.0
        %1152 = vmatpush1.xpose.msra.mxu0 0.0
        %1153 = vmatprep.subr.mxu0 0.0
        %1154 = vmatpush1.xpose.msra.mxu0 0.0
        %1155 = vmatprep.mubr.f32.mxu0 0.0
        %1156 = vmatmul.mubr.f32.gmra.mrb[0].mxu0 %v1083
        %v1157 = vpop.f32.mrb[0].mxu0
        %v1158 = vadd.f32 0.0, %v1157
        %v1159 = vpop.f32.mrb[0].mxu0
        %1160 = vdwg.mxu0
        %v1161 = vmul.f32 %v1079, 0.35355338
        %v1162 = vmul.f32 %v1158, 0.35355338
        %vm1163 = vcmask 130048
        %v1164 = vsel %vm1163, %v1161, -inf
        %1165 = vmax.xlane.f32.xlu0 %v1164
        %v1166 = vpop.xlane.xlu0 %1165
        %v1167 = vsel %vm1163, %v1162, -inf
        %1168 = vmax.xlane.f32.xlu0 %v1167
        %v1169 = vpop.xlane.xlu0 %1168
        %v1170 = vsub.f32 %v1161, %v1166
        %v1171 = vsub.f32 %v1162, %v1169
        %v1172 = vmul.f32 %v1170, 1.442695
        %v1173 = vpow.pop %v1172
        %v1174 = vmul.f32 %v1171, 1.442695
        %v1175 = vpow.pop %v1174
        %v1176 = vsel %vm1163, %v1173, 0.0
        %1177 = vadd.xlane.f32.xlu0 %v1176
        %v1178 = vpop.xlane.xlu0 %1177
        %v1179 = vsel %vm1163, %v1175, 0.0
        %1180 = vadd.xlane.f32.xlu0 %v1179
        %v1181 = vpop.xlane.xlu0 %1180
        %v1182 = vrcp.pop %v1178
        %v1183 = vrcp.pop %v1181
        %v1184 = vmul.f32 %v1173, %v1182
        %v1185 = vmul.f32 %v1175, %v1183
        %v1187 = vsel %vm1163, %v1184, 0
        %1189 = vmatprep.subr.mxu0 0.0
        %1190 = vmatpush1.msra.mxu0 %v984
        %1191 = vmatprep.subr.mxu0 0.0
        %1192 = vmatpush1.msra.mxu0 %v989
        %1193 = vmatprep.subr.mxu0 0.0
        %1194 = vmatpush1.msra.mxu0 0.0
        %1195 = vmatprep.subr.mxu0 0.0
        %1196 = vmatpush1.msra.mxu0 0.0
        %1197 = vmatprep.subr.mxu0 0.0
        %1198 = vmatpush1.msra.mxu0 0.0
        %1199 = vmatprep.subr.mxu0 0.0
        %1200 = vmatpush1.msra.mxu0 0.0
        %1201 = vmatprep.subr.mxu0 0.0
        %1202 = vmatpush1.msra.mxu0 0.0
        %1203 = vmatprep.subr.mxu0 0.0
        %1204 = vmatpush1.msra.mxu0 0.0
        %1205 = vmatprep.subr.mxu0 0.0
        %1206 = vmatpush1.msra.mxu0 0.0
        %1207 = vmatprep.subr.mxu0 0.0
        %1208 = vmatpush1.msra.mxu0 0.0
        %1209 = vmatprep.subr.mxu0 0.0
        %1210 = vmatpush1.msra.mxu0 0.0
        %1211 = vmatprep.subr.mxu0 0.0
        %1212 = vmatpush1.msra.mxu0 0.0
        %1213 = vmatprep.subr.mxu0 0.0
        %1214 = vmatpush1.msra.mxu0 0.0
        %1215 = vmatprep.subr.mxu0 0.0
        %1216 = vmatpush1.msra.mxu0 0.0
        %1217 = vmatprep.subr.mxu0 0.0
        %1218 = vmatpush1.msra.mxu0 0.0
        %1219 = vmatprep.subr.mxu0 0.0
        %1220 = vmatpush1.msra.mxu0 0.0
        %1221 = vmatprep.subr.mxu0 0.0
        %1222 = vmatpush1.msra.mxu0 0.0
        %1223 = vmatprep.subr.mxu0 0.0
        %1224 = vmatpush1.msra.mxu0 0.0
        %1225 = vmatprep.subr.mxu0 0.0
        %1226 = vmatpush1.msra.mxu0 0.0
        %1227 = vmatprep.subr.mxu0 0.0
        %1228 = vmatpush1.msra.mxu0 0.0
        %1229 = vmatprep.subr.mxu0 0.0
        %1230 = vmatpush1.msra.mxu0 0.0
        %1231 = vmatprep.subr.mxu0 0.0
        %1232 = vmatpush1.msra.mxu0 0.0
        %1233 = vmatprep.subr.mxu0 0.0
        %1234 = vmatpush1.msra.mxu0 0.0
        %1235 = vmatprep.subr.mxu0 0.0
        %1236 = vmatpush1.msra.mxu0 0.0
        %1237 = vmatprep.subr.mxu0 0.0
        %1238 = vmatpush1.msra.mxu0 0.0
        %1239 = vmatprep.subr.mxu0 0.0
        %1240 = vmatpush1.msra.mxu0 0.0
        %1241 = vmatprep.subr.mxu0 0.0
        %1242 = vmatpush1.msra.mxu0 0.0
        %1243 = vmatprep.subr.mxu0 0.0
        %1244 = vmatpush1.msra.mxu0 0.0
        %1245 = vmatprep.subr.mxu0 0.0
        %1246 = vmatpush1.msra.mxu0 0.0
        %1247 = vmatprep.subr.mxu0 0.0
        %1248 = vmatpush1.msra.mxu0 0.0
        %1249 = vmatprep.subr.mxu0 0.0
        %1250 = vmatpush1.msra.mxu0 0.0
        %1251 = vmatprep.subr.mxu0 0.0
        %1252 = vmatpush1.msra.mxu0 0.0
        %1253 = vmatprep.mubr.f32.mxu0 0.0
        %1254 = vmatmul.mubr.f32.gmra.mrb[0].mxu0 %v1187
        %v1255 = vpop.f32.mrb[0].mxu0
        %v1256 = vadd.f32 0.0, %v1255
        %v1257 = vpop.f32.mrb[0].mxu0
        %1258 = vdwg.mxu0
        %v1260 = vsel %vm1163, %v1185, 0
        %1262 = vmatprep.subr.mxu0 0.0
        %1263 = vmatpush1.msra.mxu0 %v994
        %1264 = vmatprep.subr.mxu0 0.0
        %1265 = vmatpush1.msra.mxu0 %v999
        %1266 = vmatprep.subr.mxu0 0.0
        %1267 = vmatpush1.msra.mxu0 0.0
        %1268 = vmatprep.subr.mxu0 0.0
        %1269 = vmatpush1.msra.mxu0 0.0
        %1270 = vmatprep.subr.mxu0 0.0
        %1271 = vmatpush1.msra.mxu0 0.0
        %1272 = vmatprep.subr.mxu0 0.0
        %1273 = vmatpush1.msra.mxu0 0.0
        %1274 = vmatprep.subr.mxu0 0.0
        %1275 = vmatpush1.msra.mxu0 0.0
        %1276 = vmatprep.subr.mxu0 0.0
        %1277 = vmatpush1.msra.mxu0 0.0
        %1278 = vmatprep.subr.mxu0 0.0
        %1279 = vmatpush1.msra.mxu0 0.0
        %1280 = vmatprep.subr.mxu0 0.0
        %1281 = vmatpush1.msra.mxu0 0.0
        %1282 = vmatprep.subr.mxu0 0.0
        %1283 = vmatpush1.msra.mxu0 0.0
        %1284 = vmatprep.subr.mxu0 0.0
        %1285 = vmatpush1.msra.mxu0 0.0
        %1286 = vmatprep.subr.mxu0 0.0
        %1287 = vmatpush1.msra.mxu0 0.0
        %1288 = vmatprep.subr.mxu0 0.0
        %1289 = vmatpush1.msra.mxu0 0.0
        %1290 = vmatprep.subr.mxu0 0.0
        %1291 = vmatpush1.msra.mxu0 0.0
        %1292 = vmatprep.subr.mxu0 0.0
        %1293 = vmatpush1.msra.mxu0 0.0
        %1294 = vmatprep.subr.mxu0 0.0
        %1295 = vmatpush1.msra.mxu0 0.0
        %1296 = vmatprep.subr.mxu0 0.0
        %1297 = vmatpush1.msra.mxu0 0.0
        %1298 = vmatprep.subr.mxu0 0.0
        %1299 = vmatpush1.msra.mxu0 0.0
        %1300 = vmatprep.subr.mxu0 0.0
        %1301 = vmatpush1.msra.mxu0 0.0
        %1302 = vmatprep.subr.mxu0 0.0
        %1303 = vmatpush1.msra.mxu0 0.0
        %1304 = vmatprep.subr.mxu0 0.0
        %1305 = vmatpush1.msra.mxu0 0.0
        %1306 = vmatprep.subr.mxu0 0.0
        %1307 = vmatpush1.msra.mxu0 0.0
        %1308 = vmatprep.subr.mxu0 0.0
        %1309 = vmatpush1.msra.mxu0 0.0
        %1310 = vmatprep.subr.mxu0 0.0
        %1311 = vmatpush1.msra.mxu0 0.0
        %1312 = vmatprep.subr.mxu0 0.0
        %1313 = vmatpush1.msra.mxu0 0.0
        %1314 = vmatprep.subr.mxu0 0.0
        %1315 = vmatpush1.msra.mxu0 0.0
        %1316 = vmatprep.subr.mxu0 0.0
        %1317 = vmatpush1.msra.mxu0 0.0
        %1318 = vmatprep.subr.mxu0 0.0
        %1319 = vmatpush1.msra.mxu0 0.0
        %1320 = vmatprep.subr.mxu0 0.0
        %1321 = vmatpush1.msra.mxu0 0.0
        %1322 = vmatprep.subr.mxu0 0.0
        %1323 = vmatpush1.msra.mxu0 0.0
        %1324 = vmatprep.subr.mxu0 0.0
        %1325 = vmatpush1.msra.mxu0 0.0
        %1326 = vmatprep.mubr.f32.mxu0 0.0
        %1327 = vmatmul.mubr.f32.gmra.mrb[0].mxu0 %v1260
        %v1328 = vpop.f32.mrb[0].mxu0
        %v1329 = vadd.f32 0.0, %v1328
        %v1330 = vpop.f32.mrb[0].mxu0
        %1331 = vdwg.mxu0
        %1332 = vrot.lane.b32.xlu0 %v804, 120
        %v1333 = vpop.permute.xlu0 %1332
        %1334 = vrot.lane.b32.xlu0 %v895, 120
        %v1335 = vpop.permute.xlu0 %1334
        %1336 = vrot.lane.b32.xlu0 %v900, 120
        %v1337 = vpop.permute.xlu0 %1336
        %v1338 = vsel %vm1002, %v1333, 0
        %v1340 = vsel %vm1002, %v1335, 0
        %v1342 = vsel %vm1002, %v1337, 0
        %1344 = vmatprep.subr.mxu0 0.0
        %1345 = vmatpush1.xpose.msra.mxu0 %v1340
        %1346 = vmatprep.subr.mxu0 0.0
        %1347 = vmatpush1.xpose.msra.mxu0 %v1342
        %1348 = vmatprep.subr.mxu0 0.0
        %1349 = vmatpush1.xpose.msra.mxu0 0.0
        %1350 = vmatprep.subr.mxu0 0.0
        %1351 = vmatpush1.xpose.msra.mxu0 0.0
        %1352 = vmatprep.subr.mxu0 0.0
        %1353 = vmatpush1.xpose.msra.mxu0 0.0
        %1354 = vmatprep.subr.mxu0 0.0
        %1355 = vmatpush1.xpose.msra.mxu0 0.0
        %1356 = vmatprep.subr.mxu0 0.0
        %1357 = vmatpush1.xpose.msra.mxu0 0.0
        %1358 = vmatprep.subr.mxu0 0.0
        %1359 = vmatpush1.xpose.msra.mxu0 0.0
        %1360 = vmatprep.subr.mxu0 0.0
        %1361 = vmatpush1.xpose.msra.mxu0 0.0
        %1362 = vmatprep.subr.mxu0 0.0
        %1363 = vmatpush1.xpose.msra.mxu0 0.0
        %1364 = vmatprep.subr.mxu0 0.0
        %1365 = vmatpush1.xpose.msra.mxu0 0.0
        %1366 = vmatprep.subr.mxu0 0.0
        %1367 = vmatpush1.xpose.msra.mxu0 0.0
        %1368 = vmatprep.subr.mxu0 0.0
        %1369 = vmatpush1.xpose.msra.mxu0 0.0
        %1370 = vmatprep.subr.mxu0 0.0
        %1371 = vmatpush1.xpose.msra.mxu0 0.0
        %1372 = vmatprep.subr.mxu0 0.0
        %1373 = vmatpush1.xpose.msra.mxu0 0.0
        %1374 = vmatprep.subr.mxu0 0.0
        %1375 = vmatpush1.xpose.msra.mxu0 0.0
        %1376 = vmatprep.subr.mxu0 0.0
        %1377 = vmatpush1.xpose.msra.mxu0 0.0
        %1378 = vmatprep.subr.mxu0 0.0
        %1379 = vmatpush1.xpose.msra.mxu0 0.0
        %1380 = vmatprep.subr.mxu0 0.0
        %1381 = vmatpush1.xpose.msra.mxu0 0.0
        %1382 = vmatprep.subr.mxu0 0.0
        %1383 = vmatpush1.xpose.msra.mxu0 0.0
        %1384 = vmatprep.subr.mxu0 0.0
        %1385 = vmatpush1.xpose.msra.mxu0 0.0
        %1386 = vmatprep.subr.mxu0 0.0
        %1387 = vmatpush1.xpose.msra.mxu0 0.0
        %1388 = vmatprep.subr.mxu0 0.0
        %1389 = vmatpush1.xpose.msra.mxu0 0.0
        %1390 = vmatprep.subr.mxu0 0.0
        %1391 = vmatpush1.xpose.msra.mxu0 0.0
        %1392 = vmatprep.subr.mxu0 0.0
        %1393 = vmatpush1.xpose.msra.mxu0 0.0
        %1394 = vmatprep.subr.mxu0 0.0
        %1395 = vmatpush1.xpose.msra.mxu0 0.0
        %1396 = vmatprep.subr.mxu0 0.0
        %1397 = vmatpush1.xpose.msra.mxu0 0.0
        %1398 = vmatprep.subr.mxu0 0.0
        %1399 = vmatpush1.xpose.msra.mxu0 0.0
        %1400 = vmatprep.subr.mxu0 0.0
        %1401 = vmatpush1.xpose.msra.mxu0 0.0
        %1402 = vmatprep.subr.mxu0 0.0
        %1403 = vmatpush1.xpose.msra.mxu0 0.0
        %1404 = vmatprep.subr.mxu0 0.0
        %1405 = vmatpush1.xpose.msra.mxu0 0.0
        %1406 = vmatprep.subr.mxu0 0.0
        %1407 = vmatpush1.xpose.msra.mxu0 0.0
        %1408 = vmatprep.mubr.f32.mxu0 0.0
        %1409 = vmatmul.mubr.f32.gmra.mrb[0].mxu0 %v1338
        %v1410 = vpop.f32.mrb[0].mxu0
        %v1411 = vadd.f32 0.0, %v1410
        %v1412 = vpop.f32.mrb[0].mxu0
        %1413 = vdwg.mxu0
        %1414 = vrot.lane.b32.xlu0 %v809, 120
        %v1415 = vpop.permute.xlu0 %1414
        %1416 = vrot.lane.b32.xlu0 %v905, 120
        %v1417 = vpop.permute.xlu0 %1416
        %1418 = vrot.lane.b32.xlu0 %v910, 120
        %v1419 = vpop.permute.xlu0 %1418
        %v1420 = vsel %vm1002, %v1415, 0
        %v1422 = vsel %vm1002, %v1417, 0
        %v1424 = vsel %vm1002, %v1419, 0
        %1426 = vmatprep.subr.mxu0 0.0
        %1427 = vmatpush1.xpose.msra.mxu0 %v1422
        %1428 = vmatprep.subr.mxu0 0.0
        %1429 = vmatpush1.xpose.msra.mxu0 %v1424
        %1430 = vmatprep.subr.mxu0 0.0
        %1431 = vmatpush1.xpose.msra.mxu0 0.0
        %1432 = vmatprep.subr.mxu0 0.0
        %1433 = vmatpush1.xpose.msra.mxu0 0.0
        %1434 = vmatprep.subr.mxu0 0.0
        %1435 = vmatpush1.xpose.msra.mxu0 0.0
        %1436 = vmatprep.subr.mxu0 0.0
        %1437 = vmatpush1.xpose.msra.mxu0 0.0
        %1438 = vmatprep.subr.mxu0 0.0
        %1439 = vmatpush1.xpose.msra.mxu0 0.0
        %1440 = vmatprep.subr.mxu0 0.0
        %1441 = vmatpush1.xpose.msra.mxu0 0.0
        %1442 = vmatprep.subr.mxu0 0.0
        %1443 = vmatpush1.xpose.msra.mxu0 0.0
        %1444 = vmatprep.subr.mxu0 0.0
        %1445 = vmatpush1.xpose.msra.mxu0 0.0
        %1446 = vmatprep.subr.mxu0 0.0
        %1447 = vmatpush1.xpose.msra.mxu0 0.0
        %1448 = vmatprep.subr.mxu0 0.0
        %1449 = vmatpush1.xpose.msra.mxu0 0.0
        %1450 = vmatprep.subr.mxu0 0.0
        %1451 = vmatpush1.xpose.msra.mxu0 0.0
        %1452 = vmatprep.subr.mxu0 0.0
        %1453 = vmatpush1.xpose.msra.mxu0 0.0
        %1454 = vmatprep.subr.mxu0 0.0
        %1455 = vmatpush1.xpose.msra.mxu0 0.0
        %1456 = vmatprep.subr.mxu0 0.0
        %1457 = vmatpush1.xpose.msra.mxu0 0.0
        %1458 = vmatprep.subr.mxu0 0.0
        %1459 = vmatpush1.xpose.msra.mxu0 0.0
        %1460 = vmatprep.subr.mxu0 0.0
        %1461 = vmatpush1.xpose.msra.mxu0 0.0
        %1462 = vmatprep.subr.mxu0 0.0
        %1463 = vmatpush1.xpose.msra.mxu0 0.0
        %1464 = vmatprep.subr.mxu0 0.0
        %1465 = vmatpush1.xpose.msra.mxu0 0.0
        %1466 = vmatprep.subr.mxu0 0.0
        %1467 = vmatpush1.xpose.msra.mxu0 0.0
        %1468 = vmatprep.subr.mxu0 0.0
        %1469 = vmatpush1.xpose.msra.mxu0 0.0
        %1470 = vmatprep.subr.mxu0 0.0
        %1471 = vmatpush1.xpose.msra.mxu0 0.0
        %1472 = vmatprep.subr.mxu0 0.0
        %1473 = vmatpush1.xpose.msra.mxu0 0.0
        %1474 = vmatprep.subr.mxu0 0.0
        %1475 = vmatpush1.xpose.msra.mxu0 0.0
        %1476 = vmatprep.subr.mxu0 0.0
        %1477 = vmatpush1.xpose.msra.mxu0 0.0
        %1478 = vmatprep.subr.mxu0 0.0
        %1479 = vmatpush1.xpose.msra.mxu0 0.0
        %1480 = vmatprep.subr.mxu0 0.0
        %1481 = vmatpush1.xpose.msra.mxu0 0.0
        %1482 = vmatprep.subr.mxu0 0.0
        %1483 = vmatpush1.xpose.msra.mxu0 0.0
        %1484 = vmatprep.subr.mxu0 0.0
        %1485 = vmatpush1.xpose.msra.mxu0 0.0
        %1486 = vmatprep.subr.mxu0 0.0
        %1487 = vmatpush1.xpose.msra.mxu0 0.0
        %1488 = vmatprep.subr.mxu0 0.0
        %1489 = vmatpush1.xpose.msra.mxu0 0.0
        %1490 = vmatprep.mubr.f32.mxu0 0.0
        %1491 = vmatmul.mubr.f32.gmra.mrb[0].mxu0 %v1420
        %v1492 = vpop.f32.mrb[0].mxu0
        %v1493 = vadd.f32 0.0, %v1492
        %v1494 = vpop.f32.mrb[0].mxu0
        %1495 = vdwg.mxu0
        %v1496 = vmul.f32 %v1411, 0.35355338
        %v1497 = vmul.f32 %v1493, 0.35355338
        %v1498 = vsel %vm1163, %v1496, -inf
        %1499 = vmax.xlane.f32.xlu0 %v1498
        %v1500 = vpop.xlane.xlu0 %1499
        %v1501 = vsel %vm1163, %v1497, -inf
        %1502 = vmax.xlane.f32.xlu0 %v1501
        %v1503 = vpop.xlane.xlu0 %1502
        %v1504 = vsub.f32 %v1496, %v1500
        %v1505 = vsub.f32 %v1497, %v1503
        %v1506 = vmul.f32 %v1504, 1.442695
        %v1507 = vpow.pop %v1506
        %v1508 = vmul.f32 %v1505, 1.442695
        %v1509 = vpow.pop %v1508
        %v1510 = vsel %vm1163, %v1507, 0.0
        %1511 = vadd.xlane.f32.xlu0 %v1510
        %v1512 = vpop.xlane.xlu0 %1511
        %v1513 = vsel %vm1163, %v1509, 0.0
        %1514 = vadd.xlane.f32.xlu0 %v1513
        %v1515 = vpop.xlane.xlu0 %1514
        %v1516 = vrcp.pop %v1512
        %v1517 = vrcp.pop %v1515
        %v1518 = vmul.f32 %v1507, %v1516
        %v1519 = vmul.f32 %v1509, %v1517
        %1522 = vrot.lane.b32.xlu0 %v984, 120
        %v1523 = vpop.permute.xlu0 %1522
        %1524 = vrot.lane.b32.xlu0 %v989, 120
        %v1525 = vpop.permute.xlu0 %1524
        %v1529 = vsel %vm1163, %v1518, 0
        %1531 = vmatprep.subr.mxu0 0.0
        %1532 = vmatpush1.msra.mxu0 %v1523
        %1533 = vmatprep.subr.mxu0 0.0
        %1534 = vmatpush1.msra.mxu0 %v1525
        %1535 = vmatprep.subr.mxu0 0.0
        %1536 = vmatpush1.msra.mxu0 0.0
        %1537 = vmatprep.subr.mxu0 0.0
        %1538 = vmatpush1.msra.mxu0 0.0
        %1539 = vmatprep.subr.mxu0 0.0
        %1540 = vmatpush1.msra.mxu0 0.0
        %1541 = vmatprep.subr.mxu0 0.0
        %1542 = vmatpush1.msra.mxu0 0.0
        %1543 = vmatprep.subr.mxu0 0.0
        %1544 = vmatpush1.msra.mxu0 0.0
        %1545 = vmatprep.subr.mxu0 0.0
        %1546 = vmatpush1.msra.mxu0 0.0
        %1547 = vmatprep.subr.mxu0 0.0
        %1548 = vmatpush1.msra.mxu0 0.0
        %1549 = vmatprep.subr.mxu0 0.0
        %1550 = vmatpush1.msra.mxu0 0.0
        %1551 = vmatprep.subr.mxu0 0.0
        %1552 = vmatpush1.msra.mxu0 0.0
        %1553 = vmatprep.subr.mxu0 0.0
        %1554 = vmatpush1.msra.mxu0 0.0
        %1555 = vmatprep.subr.mxu0 0.0
        %1556 = vmatpush1.msra.mxu0 0.0
        %1557 = vmatprep.subr.mxu0 0.0
        %1558 = vmatpush1.msra.mxu0 0.0
        %1559 = vmatprep.subr.mxu0 0.0
        %1560 = vmatpush1.msra.mxu0 0.0
        %1561 = vmatprep.subr.mxu0 0.0
        %1562 = vmatpush1.msra.mxu0 0.0
        %1563 = vmatprep.subr.mxu0 0.0
        %1564 = vmatpush1.msra.mxu0 0.0
        %1565 = vmatprep.subr.mxu0 0.0
        %1566 = vmatpush1.msra.mxu0 0.0
        %1567 = vmatprep.subr.mxu0 0.0
        %1568 = vmatpush1.msra.mxu0 0.0
        %1569 = vmatprep.subr.mxu0 0.0
        %1570 = vmatpush1.msra.mxu0 0.0
        %1571 = vmatprep.subr.mxu0 0.0
        %1572 = vmatpush1.msra.mxu0 0.0
        %1573 = vmatprep.subr.mxu0 0.0
        %1574 = vmatpush1.msra.mxu0 0.0
        %1575 = vmatprep.subr.mxu0 0.0
        %1576 = vmatpush1.msra.mxu0 0.0
        %1577 = vmatprep.subr.mxu0 0.0
        %1578 = vmatpush1.msra.mxu0 0.0
        %1579 = vmatprep.subr.mxu0 0.0
        %1580 = vmatpush1.msra.mxu0 0.0
        %1581 = vmatprep.subr.mxu0 0.0
        %1582 = vmatpush1.msra.mxu0 0.0
        %1583 = vmatprep.subr.mxu0 0.0
        %1584 = vmatpush1.msra.mxu0 0.0
        %1585 = vmatprep.subr.mxu0 0.0
        %1586 = vmatpush1.msra.mxu0 0.0
        %1587 = vmatprep.subr.mxu0 0.0
        %1588 = vmatpush1.msra.mxu0 0.0
        %1589 = vmatprep.subr.mxu0 0.0
        %1590 = vmatpush1.msra.mxu0 0.0
        %1591 = vmatprep.subr.mxu0 0.0
        %1592 = vmatpush1.msra.mxu0 0.0
        %1593 = vmatprep.subr.mxu0 0.0
        %1594 = vmatpush1.msra.mxu0 0.0
        %1595 = vmatprep.mubr.f32.mxu0 0.0
        %1596 = vmatmul.mubr.f32.gmra.mrb[0].mxu0 %v1529
        %v1597 = vpop.f32.mrb[0].mxu0
        %v1598 = vadd.f32 0.0, %v1597
        %v1599 = vpop.f32.mrb[0].mxu0
        %1600 = vdwg.mxu0
        %1603 = vrot.lane.b32.xlu0 %v994, 120
        %v1604 = vpop.permute.xlu0 %1603
        %1605 = vrot.lane.b32.xlu0 %v999, 120
        %v1606 = vpop.permute.xlu0 %1605
        %v1610 = vsel %vm1163, %v1519, 0
        %1612 = vmatprep.subr.mxu0 0.0
        %1613 = vmatpush1.msra.mxu0 %v1604
        %1614 = vmatprep.subr.mxu0 0.0
        %1615 = vmatpush1.msra.mxu0 %v1606
        %1616 = vmatprep.subr.mxu0 0.0
        %1617 = vmatpush1.msra.mxu0 0.0
        %1618 = vmatprep.subr.mxu0 0.0
        %1619 = vmatpush1.msra.mxu0 0.0
        %1620 = vmatprep.subr.mxu0 0.0
        %1621 = vmatpush1.msra.mxu0 0.0
        %1622 = vmatprep.subr.mxu0 0.0
        %1623 = vmatpush1.msra.mxu0 0.0
        %1624 = vmatprep.subr.mxu0 0.0
        %1625 = vmatpush1.msra.mxu0 0.0
        %1626 = vmatprep.subr.mxu0 0.0
        %1627 = vmatpush1.msra.mxu0 0.0
        %1628 = vmatprep.subr.mxu0 0.0
        %1629 = vmatpush1.msra.mxu0 0.0
        %1630 = vmatprep.subr.mxu0 0.0
        %1631 = vmatpush1.msra.mxu0 0.0
        %1632 = vmatprep.subr.mxu0 0.0
        %1633 = vmatpush1.msra.mxu0 0.0
        %1634 = vmatprep.subr.mxu0 0.0
        %1635 = vmatpush1.msra.mxu0 0.0
        %1636 = vmatprep.subr.mxu0 0.0
        %1637 = vmatpush1.msra.mxu0 0.0
        %1638 = vmatprep.subr.mxu0 0.0
        %1639 = vmatpush1.msra.mxu0 0.0
        %1640 = vmatprep.subr.mxu0 0.0
        %1641 = vmatpush1.msra.mxu0 0.0
        %1642 = vmatprep.subr.mxu0 0.0
        %1643 = vmatpush1.msra.mxu0 0.0
        %1644 = vmatprep.subr.mxu0 0.0
        %1645 = vmatpush1.msra.mxu0 0.0
        %1646 = vmatprep.subr.mxu0 0.0
        %1647 = vmatpush1.msra.mxu0 0.0
        %1648 = vmatprep.subr.mxu0 0.0
        %1649 = vmatpush1.msra.mxu0 0.0
        %1650 = vmatprep.subr.mxu0 0.0
        %1651 = vmatpush1.msra.mxu0 0.0
        %1652 = vmatprep.subr.mxu0 0.0
        %1653 = vmatpush1.msra.mxu0 0.0
        %1654 = vmatprep.subr.mxu0 0.0
        %1655 = vmatpush1.msra.mxu0 0.0
        %1656 = vmatprep.subr.mxu0 0.0
        %1657 = vmatpush1.msra.mxu0 0.0
        %1658 = vmatprep.subr.mxu0 0.0
        %1659 = vmatpush1.msra.mxu0 0.0
        %1660 = vmatprep.subr.mxu0 0.0
        %1661 = vmatpush1.msra.mxu0 0.0
        %1662 = vmatprep.subr.mxu0 0.0
        %1663 = vmatpush1.msra.mxu0 0.0
        %1664 = vmatprep.subr.mxu0 0.0
        %1665 = vmatpush1.msra.mxu0 0.0
        %1666 = vmatprep.subr.mxu0 0.0
        %1667 = vmatpush1.msra.mxu0 0.0
        %1668 = vmatprep.subr.mxu0 0.0
        %1669 = vmatpush1.msra.mxu0 0.0
        %1670 = vmatprep.subr.mxu0 0.0
        %1671 = vmatpush1.msra.mxu0 0.0
        %1672 = vmatprep.subr.mxu0 0.0
        %1673 = vmatpush1.msra.mxu0 0.0
        %1674 = vmatprep.subr.mxu0 0.0
        %1675 = vmatpush1.msra.mxu0 0.0
        %1676 = vmatprep.mubr.f32.mxu0 0.0
        %1677 = vmatmul.mubr.f32.gmra.mrb[0].mxu0 %v1610
        %v1678 = vpop.f32.mrb[0].mxu0
        %v1679 = vadd.f32 0.0, %v1678
        %v1680 = vpop.f32.mrb[0].mxu0
        %1681 = vdwg.mxu0
        %1682 = vrot.lane.b32.xlu0 %v804, 112
        %v1683 = vpop.permute.xlu0 %1682
        %1684 = vrot.lane.b32.xlu0 %v895, 112
        %v1685 = vpop.permute.xlu0 %1684
        %1686 = vrot.lane.b32.xlu0 %v900, 112
        %v1687 = vpop.permute.xlu0 %1686
        %v1688 = vsel %vm1002, %v1683, 0
        %v1690 = vsel %vm1002, %v1685, 0
        %v1692 = vsel %vm1002, %v1687, 0
        %1694 = vmatprep.subr.mxu0 0.0
        %1695 = vmatpush1.xpose.msra.mxu0 %v1690
        %1696 = vmatprep.subr.mxu0 0.0
        %1697 = vmatpush1.xpose.msra.mxu0 %v1692
        %1698 = vmatprep.subr.mxu0 0.0
        %1699 = vmatpush1.xpose.msra.mxu0 0.0
        %1700 = vmatprep.subr.mxu0 0.0
        %1701 = vmatpush1.xpose.msra.mxu0 0.0
        %1702 = vmatprep.subr.mxu0 0.0
        %1703 = vmatpush1.xpose.msra.mxu0 0.0
        %1704 = vmatprep.subr.mxu0 0.0
        %1705 = vmatpush1.xpose.msra.mxu0 0.0
        %1706 = vmatprep.subr.mxu0 0.0
        %1707 = vmatpush1.xpose.msra.mxu0 0.0
        %1708 = vmatprep.subr.mxu0 0.0
        %1709 = vmatpush1.xpose.msra.mxu0 0.0
        %1710 = vmatprep.subr.mxu0 0.0
        %1711 = vmatpush1.xpose.msra.mxu0 0.0
        %1712 = vmatprep.subr.mxu0 0.0
        %1713 = vmatpush1.xpose.msra.mxu0 0.0
        %1714 = vmatprep.subr.mxu0 0.0
        %1715 = vmatpush1.xpose.msra.mxu0 0.0
        %1716 = vmatprep.subr.mxu0 0.0
        %1717 = vmatpush1.xpose.msra.mxu0 0.0
        %1718 = vmatprep.subr.mxu0 0.0
        %1719 = vmatpush1.xpose.msra.mxu0 0.0
        %1720 = vmatprep.subr.mxu0 0.0
        %1721 = vmatpush1.xpose.msra.mxu0 0.0
        %1722 = vmatprep.subr.mxu0 0.0
        %1723 = vmatpush1.xpose.msra.mxu0 0.0
        %1724 = vmatprep.subr.mxu0 0.0
        %1725 = vmatpush1.xpose.msra.mxu0 0.0
        %1726 = vmatprep.subr.mxu0 0.0
        %1727 = vmatpush1.xpose.msra.mxu0 0.0
        %1728 = vmatprep.subr.mxu0 0.0
        %1729 = vmatpush1.xpose.msra.mxu0 0.0
        %1730 = vmatprep.subr.mxu0 0.0
        %1731 = vmatpush1.xpose.msra.mxu0 0.0
        %1732 = vmatprep.subr.mxu0 0.0
        %1733 = vmatpush1.xpose.msra.mxu0 0.0
        %1734 = vmatprep.subr.mxu0 0.0
        %1735 = vmatpush1.xpose.msra.mxu0 0.0
        %1736 = vmatprep.subr.mxu0 0.0
        %1737 = vmatpush1.xpose.msra.mxu0 0.0
        %1738 = vmatprep.subr.mxu0 0.0
        %1739 = vmatpush1.xpose.msra.mxu0 0.0
        %1740 = vmatprep.subr.mxu0 0.0
        %1741 = vmatpush1.xpose.msra.mxu0 0.0
        %1742 = vmatprep.subr.mxu0 0.0
        %1743 = vmatpush1.xpose.msra.mxu0 0.0
        %1744 = vmatprep.subr.mxu0 0.0
        %1745 = vmatpush1.xpose.msra.mxu0 0.0
        %1746 = vmatprep.subr.mxu0 0.0
        %1747 = vmatpush1.xpose.msra.mxu0 0.0
        %1748 = vmatprep.subr.mxu0 0.0
        %1749 = vmatpush1.xpose.msra.mxu0 0.0
        %1750 = vmatprep.subr.mxu0 0.0
        %1751 = vmatpush1.xpose.msra.mxu0 0.0
        %1752 = vmatprep.subr.mxu0 0.0
        %1753 = vmatpush1.xpose.msra.mxu0 0.0
        %1754 = vmatprep.subr.mxu0 0.0
        %1755 = vmatpush1.xpose.msra.mxu0 0.0
        %1756 = vmatprep.subr.mxu0 0.0
        %1757 = vmatpush1.xpose.msra.mxu0 0.0
        %1758 = vmatprep.mubr.f32.mxu0 0.0
        %1759 = vmatmul.mubr.f32.gmra.mrb[0].mxu0 %v1688
        %v1760 = vpop.f32.mrb[0].mxu0
        %v1761 = vadd.f32 0.0, %v1760
        %v1762 = vpop.f32.mrb[0].mxu0
        %1763 = vdwg.mxu0
        %1764 = vrot.lane.b32.xlu0 %v809, 112
        %v1765 = vpop.permute.xlu0 %1764
        %1766 = vrot.lane.b32.xlu0 %v905, 112
        %v1767 = vpop.permute.xlu0 %1766
        %1768 = vrot.lane.b32.xlu0 %v910, 112
        %v1769 = vpop.permute.xlu0 %1768
        %v1770 = vsel %vm1002, %v1765, 0
        %v1772 = vsel %vm1002, %v1767, 0
        %v1774 = vsel %vm1002, %v1769, 0
        %1776 = vmatprep.subr.mxu0 0.0
        %1777 = vmatpush1.xpose.msra.mxu0 %v1772
        %1778 = vmatprep.subr.mxu0 0.0
        %1779 = vmatpush1.xpose.msra.mxu0 %v1774
        %1780 = vmatprep.subr.mxu0 0.0
        %1781 = vmatpush1.xpose.msra.mxu0 0.0
        %1782 = vmatprep.subr.mxu0 0.0
        %1783 = vmatpush1.xpose.msra.mxu0 0.0
        %1784 = vmatprep.subr.mxu0 0.0
        %1785 = vmatpush1.xpose.msra.mxu0 0.0
        %1786 = vmatprep.subr.mxu0 0.0
        %1787 = vmatpush1.xpose.msra.mxu0 0.0
        %1788 = vmatprep.subr.mxu0 0.0
        %1789 = vmatpush1.xpose.msra.mxu0 0.0
        %1790 = vmatprep.subr.mxu0 0.0
        %1791 = vmatpush1.xpose.msra.mxu0 0.0
        %1792 = vmatprep.subr.mxu0 0.0
        %1793 = vmatpush1.xpose.msra.mxu0 0.0
        %1794 = vmatprep.subr.mxu0 0.0
        %1795 = vmatpush1.xpose.msra.mxu0 0.0
        %1796 = vmatprep.subr.mxu0 0.0
        %1797 = vmatpush1.xpose.msra.mxu0 0.0
        %1798 = vmatprep.subr.mxu0 0.0
        %1799 = vmatpush1.xpose.msra.mxu0 0.0
        %1800 = vmatprep.subr.mxu0 0.0
        %1801 = vmatpush1.xpose.msra.mxu0 0.0
        %1802 = vmatprep.subr.mxu0 0.0
        %1803 = vmatpush1.xpose.msra.mxu0 0.0
        %1804 = vmatprep.subr.mxu0 0.0
        %1805 = vmatpush1.xpose.msra.mxu0 0.0
        %1806 = vmatprep.subr.mxu0 0.0
        %1807 = vmatpush1.xpose.msra.mxu0 0.0
        %1808 = vmatprep.subr.mxu0 0.0
        %1809 = vmatpush1.xpose.msra.mxu0 0.0
        %1810 = vmatprep.subr.mxu0 0.0
        %1811 = vmatpush1.xpose.msra.mxu0 0.0
        %1812 = vmatprep.subr.mxu0 0.0
        %1813 = vmatpush1.xpose.msra.mxu0 0.0
        %1814 = vmatprep.subr.mxu0 0.0
        %1815 = vmatpush1.xpose.msra.mxu0 0.0
        %1816 = vmatprep.subr.mxu0 0.0
        %1817 = vmatpush1.xpose.msra.mxu0 0.0
        %1818 = vmatprep.subr.mxu0 0.0
        %1819 = vmatpush1.xpose.msra.mxu0 0.0
        %1820 = vmatprep.subr.mxu0 0.0
        %1821 = vmatpush1.xpose.msra.mxu0 0.0
        %1822 = vmatprep.subr.mxu0 0.0
        %1823 = vmatpush1.xpose.msra.mxu0 0.0
        %1824 = vmatprep.subr.mxu0 0.0
        %1825 = vmatpush1.xpose.msra.mxu0 0.0
        %1826 = vmatprep.subr.mxu0 0.0
        %1827 = vmatpush1.xpose.msra.mxu0 0.0
        %1828 = vmatprep.subr.mxu0 0.0
        %1829 = vmatpush1.xpose.msra.mxu0 0.0
        %1830 = vmatprep.subr.mxu0 0.0
        %1831 = vmatpush1.xpose.msra.mxu0 0.0
        %1832 = vmatprep.subr.mxu0 0.0
        %1833 = vmatpush1.xpose.msra.mxu0 0.0
        %1834 = vmatprep.subr.mxu0 0.0
        %1835 = vmatpush1.xpose.msra.mxu0 0.0
        %1836 = vmatprep.subr.mxu0 0.0
        %1837 = vmatpush1.xpose.msra.mxu0 0.0
        %1838 = vmatprep.subr.mxu0 0.0
        %1839 = vmatpush1.xpose.msra.mxu0 0.0
        %1840 = vmatprep.mubr.f32.mxu0 0.0
        %1841 = vmatmul.mubr.f32.gmra.mrb[0].mxu0 %v1770
        %v1842 = vpop.f32.mrb[0].mxu0
        %v1843 = vadd.f32 0.0, %v1842
        %v1844 = vpop.f32.mrb[0].mxu0
        %1845 = vdwg.mxu0
        %v1846 = vmul.f32 %v1761, 0.35355338
        %v1847 = vmul.f32 %v1843, 0.35355338
        %v1848 = vsel %vm1163, %v1846, -inf
        %1849 = vmax.xlane.f32.xlu0 %v1848
        %v1850 = vpop.xlane.xlu0 %1849
        %v1851 = vsel %vm1163, %v1847, -inf
        %1852 = vmax.xlane.f32.xlu0 %v1851
        %v1853 = vpop.xlane.xlu0 %1852
        %v1854 = vsub.f32 %v1846, %v1850
        %v1855 = vsub.f32 %v1847, %v1853
        %v1856 = vmul.f32 %v1854, 1.442695
        %v1857 = vpow.pop %v1856
        %v1858 = vmul.f32 %v1855, 1.442695
        %v1859 = vpow.pop %v1858
        %v1860 = vsel %vm1163, %v1857, 0.0
        %1861 = vadd.xlane.f32.xlu0 %v1860
        %v1862 = vpop.xlane.xlu0 %1861
        %v1863 = vsel %vm1163, %v1859, 0.0
        %1864 = vadd.xlane.f32.xlu0 %v1863
        %v1865 = vpop.xlane.xlu0 %1864
        %v1866 = vrcp.pop %v1862
        %v1867 = vrcp.pop %v1865
        %v1868 = vmul.f32 %v1857, %v1866
        %v1869 = vmul.f32 %v1859, %v1867
        %1870 = vrot.lane.b32.xlu0 %v984, 112
        %v1871 = vpop.permute.xlu0 %1870
        %1872 = vrot.lane.b32.xlu0 %v989, 112
        %v1873 = vpop.permute.xlu0 %1872
        %v1877 = vsel %vm1163, %v1868, 0
        %1879 = vmatprep.subr.mxu0 0.0
        %1880 = vmatpush1.msra.mxu0 %v1871
        %1881 = vmatprep.subr.mxu0 0.0
        %1882 = vmatpush1.msra.mxu0 %v1873
        %1883 = vmatprep.subr.mxu0 0.0
        %1884 = vmatpush1.msra.mxu0 0.0
        %1885 = vmatprep.subr.mxu0 0.0
        %1886 = vmatpush1.msra.mxu0 0.0
        %1887 = vmatprep.subr.mxu0 0.0
        %1888 = vmatpush1.msra.mxu0 0.0
        %1889 = vmatprep.subr.mxu0 0.0
        %1890 = vmatpush1.msra.mxu0 0.0
        %1891 = vmatprep.subr.mxu0 0.0
        %1892 = vmatpush1.msra.mxu0 0.0
        %1893 = vmatprep.subr.mxu0 0.0
        %1894 = vmatpush1.msra.mxu0 0.0
        %1895 = vmatprep.subr.mxu0 0.0
        %1896 = vmatpush1.msra.mxu0 0.0
        %1897 = vmatprep.subr.mxu0 0.0
        %1898 = vmatpush1.msra.mxu0 0.0
        %1899 = vmatprep.subr.mxu0 0.0
        %1900 = vmatpush1.msra.mxu0 0.0
        %1901 = vmatprep.subr.mxu0 0.0
        %1902 = vmatpush1.msra.mxu0 0.0
        %1903 = vmatprep.subr.mxu0 0.0
        %1904 = vmatpush1.msra.mxu0 0.0
        %1905 = vmatprep.subr.mxu0 0.0
        %1906 = vmatpush1.msra.mxu0 0.0
        %1907 = vmatprep.subr.mxu0 0.0
        %1908 = vmatpush1.msra.mxu0 0.0
        %1909 = vmatprep.subr.mxu0 0.0
        %1910 = vmatpush1.msra.mxu0 0.0
        %1911 = vmatprep.subr.mxu0 0.0
        %1912 = vmatpush1.msra.mxu0 0.0
        %1913 = vmatprep.subr.mxu0 0.0
        %1914 = vmatpush1.msra.mxu0 0.0
        %1915 = vmatprep.subr.mxu0 0.0
        %1916 = vmatpush1.msra.mxu0 0.0
        %1917 = vmatprep.subr.mxu0 0.0
        %1918 = vmatpush1.msra.mxu0 0.0
        %1919 = vmatprep.subr.mxu0 0.0
        %1920 = vmatpush1.msra.mxu0 0.0
        %1921 = vmatprep.subr.mxu0 0.0
        %1922 = vmatpush1.msra.mxu0 0.0
        %1923 = vmatprep.subr.mxu0 0.0
        %1924 = vmatpush1.msra.mxu0 0.0
        %1925 = vmatprep.subr.mxu0 0.0
        %1926 = vmatpush1.msra.mxu0 0.0
        %1927 = vmatprep.subr.mxu0 0.0
        %1928 = vmatpush1.msra.mxu0 0.0
        %1929 = vmatprep.subr.mxu0 0.0
        %1930 = vmatpush1.msra.mxu0 0.0
        %1931 = vmatprep.subr.mxu0 0.0
        %1932 = vmatpush1.msra.mxu0 0.0
        %1933 = vmatprep.subr.mxu0 0.0
        %1934 = vmatpush1.msra.mxu0 0.0
        %1935 = vmatprep.subr.mxu0 0.0
        %1936 = vmatpush1.msra.mxu0 0.0
        %1937 = vmatprep.subr.mxu0 0.0
        %1938 = vmatpush1.msra.mxu0 0.0
        %1939 = vmatprep.subr.mxu0 0.0
        %1940 = vmatpush1.msra.mxu0 0.0
        %1941 = vmatprep.subr.mxu0 0.0
        %1942 = vmatpush1.msra.mxu0 0.0
        %1943 = vmatprep.mubr.f32.mxu0 0.0
        %1944 = vmatmul.mubr.f32.gmra.mrb[0].mxu0 %v1877
        %v1945 = vpop.f32.mrb[0].mxu0
        %v1946 = vadd.f32 0.0, %v1945
        %v1947 = vpop.f32.mrb[0].mxu0
        %1948 = vdwg.mxu0
        %1949 = vrot.lane.b32.xlu0 %v994, 112
        %v1950 = vpop.permute.xlu0 %1949
        %1951 = vrot.lane.b32.xlu0 %v999, 112
        %v1952 = vpop.permute.xlu0 %1951
        %v1956 = vsel %vm1163, %v1869, 0
        %1958 = vmatprep.subr.mxu0 0.0
        %1959 = vmatpush1.msra.mxu0 %v1950
        %1960 = vmatprep.subr.mxu0 0.0
        %1961 = vmatpush1.msra.mxu0 %v1952
        %1962 = vmatprep.subr.mxu0 0.0
        %1963 = vmatpush1.msra.mxu0 0.0
        %1964 = vmatprep.subr.mxu0 0.0
        %1965 = vmatpush1.msra.mxu0 0.0
        %1966 = vmatprep.subr.mxu0 0.0
        %1967 = vmatpush1.msra.mxu0 0.0
        %1968 = vmatprep.subr.mxu0 0.0
        %1969 = vmatpush1.msra.mxu0 0.0
        %1970 = vmatprep.subr.mxu0 0.0
        %1971 = vmatpush1.msra.mxu0 0.0
        %1972 = vmatprep.subr.mxu0 0.0
        %1973 = vmatpush1.msra.mxu0 0.0
        %1974 = vmatprep.subr.mxu0 0.0
        %1975 = vmatpush1.msra.mxu0 0.0
        %1976 = vmatprep.subr.mxu0 0.0
        %1977 = vmatpush1.msra.mxu0 0.0
        %1978 = vmatprep.subr.mxu0 0.0
        %1979 = vmatpush1.msra.mxu0 0.0
        %1980 = vmatprep.subr.mxu0 0.0
        %1981 = vmatpush1.msra.mxu0 0.0
        %1982 = vmatprep.subr.mxu0 0.0
        %1983 = vmatpush1.msra.mxu0 0.0
        %1984 = vmatprep.subr.mxu0 0.0
        %1985 = vmatpush1.msra.mxu0 0.0
        %1986 = vmatprep.subr.mxu0 0.0
        %1987 = vmatpush1.msra.mxu0 0.0
        %1988 = vmatprep.subr.mxu0 0.0
        %1989 = vmatpush1.msra.mxu0 0.0
        %1990 = vmatprep.subr.mxu0 0.0
        %1991 = vmatpush1.msra.mxu0 0.0
        %1992 = vmatprep.subr.mxu0 0.0
        %1993 = vmatpush1.msra.mxu0 0.0
        %1994 = vmatprep.subr.mxu0 0.0
        %1995 = vmatpush1.msra.mxu0 0.0
        %1996 = vmatprep.subr.mxu0 0.0
        %1997 = vmatpush1.msra.mxu0 0.0
        %1998 = vmatprep.subr.mxu0 0.0
        %1999 = vmatpush1.msra.mxu0 0.0
        %2000 = vmatprep.subr.mxu0 0.0
        %2001 = vmatpush1.msra.mxu0 0.0
        %2002 = vmatprep.subr.mxu0 0.0
        %2003 = vmatpush1.msra.mxu0 0.0
        %2004 = vmatprep.subr.mxu0 0.0
        %2005 = vmatpush1.msra.mxu0 0.0
        %2006 = vmatprep.subr.mxu0 0.0
        %2007 = vmatpush1.msra.mxu0 0.0
        %2008 = vmatprep.subr.mxu0 0.0
        %2009 = vmatpush1.msra.mxu0 0.0
        %2010 = vmatprep.subr.mxu0 0.0
        %2011 = vmatpush1.msra.mxu0 0.0
        %2012 = vmatprep.subr.mxu0 0.0
        %2013 = vmatpush1.msra.mxu0 0.0
        %2014 = vmatprep.subr.mxu0 0.0
        %2015 = vmatpush1.msra.mxu0 0.0
        %2016 = vmatprep.subr.mxu0 0.0
        %2017 = vmatpush1.msra.mxu0 0.0
        %2018 = vmatprep.subr.mxu0 0.0
        %2019 = vmatpush1.msra.mxu0 0.0
        %2020 = vmatprep.subr.mxu0 0.0
        %2021 = vmatpush1.msra.mxu0 0.0
        %2022 = vmatprep.mubr.f32.mxu0 0.0
        %2023 = vmatmul.mubr.f32.gmra.mrb[0].mxu0 %v1956
        %v2024 = vpop.f32.mrb[0].mxu0
        %v2025 = vadd.f32 0.0, %v2024
        %v2026 = vpop.f32.mrb[0].mxu0
        %2027 = vdwg.mxu0
        %2028 = vrot.lane.b32.xlu0 %v804, 104
        %v2029 = vpop.permute.xlu0 %2028
        %2030 = vrot.lane.b32.xlu0 %v895, 104
        %v2031 = vpop.permute.xlu0 %2030
        %2032 = vrot.lane.b32.xlu0 %v900, 104
        %v2033 = vpop.permute.xlu0 %2032
        %v2034 = vsel %vm1002, %v2029, 0
        %v2036 = vsel %vm1002, %v2031, 0
        %v2038 = vsel %vm1002, %v2033, 0
        %2040 = vmatprep.subr.mxu0 0.0
        %2041 = vmatpush1.xpose.msra.mxu0 %v2036
        %2042 = vmatprep.subr.mxu0 0.0
        %2043 = vmatpush1.xpose.msra.mxu0 %v2038
        %2044 = vmatprep.subr.mxu0 0.0
        %2045 = vmatpush1.xpose.msra.mxu0 0.0
        %2046 = vmatprep.subr.mxu0 0.0
        %2047 = vmatpush1.xpose.msra.mxu0 0.0
        %2048 = vmatprep.subr.mxu0 0.0
        %2049 = vmatpush1.xpose.msra.mxu0 0.0
        %2050 = vmatprep.subr.mxu0 0.0
        %2051 = vmatpush1.xpose.msra.mxu0 0.0
        %2052 = vmatprep.subr.mxu0 0.0
        %2053 = vmatpush1.xpose.msra.mxu0 0.0
        %2054 = vmatprep.subr.mxu0 0.0
        %2055 = vmatpush1.xpose.msra.mxu0 0.0
        %2056 = vmatprep.subr.mxu0 0.0
        %2057 = vmatpush1.xpose.msra.mxu0 0.0
        %2058 = vmatprep.subr.mxu0 0.0
        %2059 = vmatpush1.xpose.msra.mxu0 0.0
        %2060 = vmatprep.subr.mxu0 0.0
        %2061 = vmatpush1.xpose.msra.mxu0 0.0
        %2062 = vmatprep.subr.mxu0 0.0
        %2063 = vmatpush1.xpose.msra.mxu0 0.0
        %2064 = vmatprep.subr.mxu0 0.0
        %2065 = vmatpush1.xpose.msra.mxu0 0.0
        %2066 = vmatprep.subr.mxu0 0.0
        %2067 = vmatpush1.xpose.msra.mxu0 0.0
        %2068 = vmatprep.subr.mxu0 0.0
        %2069 = vmatpush1.xpose.msra.mxu0 0.0
        %2070 = vmatprep.subr.mxu0 0.0
        %2071 = vmatpush1.xpose.msra.mxu0 0.0
        %2072 = vmatprep.subr.mxu0 0.0
        %2073 = vmatpush1.xpose.msra.mxu0 0.0
        %2074 = vmatprep.subr.mxu0 0.0
        %2075 = vmatpush1.xpose.msra.mxu0 0.0
        %2076 = vmatprep.subr.mxu0 0.0
        %2077 = vmatpush1.xpose.msra.mxu0 0.0
        %2078 = vmatprep.subr.mxu0 0.0
        %2079 = vmatpush1.xpose.msra.mxu0 0.0
        %2080 = vmatprep.subr.mxu0 0.0
        %2081 = vmatpush1.xpose.msra.mxu0 0.0
        %2082 = vmatprep.subr.mxu0 0.0
        %2083 = vmatpush1.xpose.msra.mxu0 0.0
        %2084 = vmatprep.subr.mxu0 0.0
        %2085 = vmatpush1.xpose.msra.mxu0 0.0
        %2086 = vmatprep.subr.mxu0 0.0
        %2087 = vmatpush1.xpose.msra.mxu0 0.0
        %2088 = vmatprep.subr.mxu0 0.0
        %2089 = vmatpush1.xpose.msra.mxu0 0.0
        %2090 = vmatprep.subr.mxu0 0.0
        %2091 = vmatpush1.xpose.msra.mxu0 0.0
        %2092 = vmatprep.subr.mxu0 0.0
        %2093 = vmatpush1.xpose.msra.mxu0 0.0
        %2094 = vmatprep.subr.mxu0 0.0
        %2095 = vmatpush1.xpose.msra.mxu0 0.0
        %2096 = vmatprep.subr.mxu0 0.0
        %2097 = vmatpush1.xpose.msra.mxu0 0.0
        %2098 = vmatprep.subr.mxu0 0.0
        %2099 = vmatpush1.xpose.msra.mxu0 0.0
        %2100 = vmatprep.subr.mxu0 0.0
        %2101 = vmatpush1.xpose.msra.mxu0 0.0
        %2102 = vmatprep.subr.mxu0 0.0
        %2103 = vmatpush1.xpose.msra.mxu0 0.0
        %2104 = vmatprep.mubr.f32.mxu0 0.0
        %2105 = vmatmul.mubr.f32.gmra.mrb[0].mxu0 %v2034
        %v2106 = vpop.f32.mrb[0].mxu0
        %v2107 = vadd.f32 0.0, %v2106
        %v2108 = vpop.f32.mrb[0].mxu0
        %2109 = vdwg.mxu0
        %2110 = vrot.lane.b32.xlu0 %v809, 104
        %v2111 = vpop.permute.xlu0 %2110
        %2112 = vrot.lane.b32.xlu0 %v905, 104
        %v2113 = vpop.permute.xlu0 %2112
        %2114 = vrot.lane.b32.xlu0 %v910, 104
        %v2115 = vpop.permute.xlu0 %2114
        %v2116 = vsel %vm1002, %v2111, 0
        %v2118 = vsel %vm1002, %v2113, 0
        %v2120 = vsel %vm1002, %v2115, 0
        %2122 = vmatprep.subr.mxu0 0.0
        %2123 = vmatpush1.xpose.msra.mxu0 %v2118
        %2124 = vmatprep.subr.mxu0 0.0
        %2125 = vmatpush1.xpose.msra.mxu0 %v2120
        %2126 = vmatprep.subr.mxu0 0.0
        %2127 = vmatpush1.xpose.msra.mxu0 0.0
        %2128 = vmatprep.subr.mxu0 0.0
        %2129 = vmatpush1.xpose.msra.mxu0 0.0
        %2130 = vmatprep.subr.mxu0 0.0
        %2131 = vmatpush1.xpose.msra.mxu0 0.0
        %2132 = vmatprep.subr.mxu0 0.0
        %2133 = vmatpush1.xpose.msra.mxu0 0.0
        %2134 = vmatprep.subr.mxu0 0.0
        %2135 = vmatpush1.xpose.msra.mxu0 0.0
        %2136 = vmatprep.subr.mxu0 0.0
        %2137 = vmatpush1.xpose.msra.mxu0 0.0
        %2138 = vmatprep.subr.mxu0 0.0
        %2139 = vmatpush1.xpose.msra.mxu0 0.0
        %2140 = vmatprep.subr.mxu0 0.0
        %2141 = vmatpush1.xpose.msra.mxu0 0.0
        %2142 = vmatprep.subr.mxu0 0.0
        %2143 = vmatpush1.xpose.msra.mxu0 0.0
        %2144 = vmatprep.subr.mxu0 0.0
        %2145 = vmatpush1.xpose.msra.mxu0 0.0
        %2146 = vmatprep.subr.mxu0 0.0
        %2147 = vmatpush1.xpose.msra.mxu0 0.0
        %2148 = vmatprep.subr.mxu0 0.0
        %2149 = vmatpush1.xpose.msra.mxu0 0.0
        %2150 = vmatprep.subr.mxu0 0.0
        %2151 = vmatpush1.xpose.msra.mxu0 0.0
        %2152 = vmatprep.subr.mxu0 0.0
        %2153 = vmatpush1.xpose.msra.mxu0 0.0
        %2154 = vmatprep.subr.mxu0 0.0
        %2155 = vmatpush1.xpose.msra.mxu0 0.0
        %2156 = vmatprep.subr.mxu0 0.0
        %2157 = vmatpush1.xpose.msra.mxu0 0.0
        %2158 = vmatprep.subr.mxu0 0.0
        %2159 = vmatpush1.xpose.msra.mxu0 0.0
        %2160 = vmatprep.subr.mxu0 0.0
        %2161 = vmatpush1.xpose.msra.mxu0 0.0
        %2162 = vmatprep.subr.mxu0 0.0
        %2163 = vmatpush1.xpose.msra.mxu0 0.0
        %2164 = vmatprep.subr.mxu0 0.0
        %2165 = vmatpush1.xpose.msra.mxu0 0.0
        %2166 = vmatprep.subr.mxu0 0.0
        %2167 = vmatpush1.xpose.msra.mxu0 0.0
        %2168 = vmatprep.subr.mxu0 0.0
        %2169 = vmatpush1.xpose.msra.mxu0 0.0
        %2170 = vmatprep.subr.mxu0 0.0
        %2171 = vmatpush1.xpose.msra.mxu0 0.0
        %2172 = vmatprep.subr.mxu0 0.0
        %2173 = vmatpush1.xpose.msra.mxu0 0.0
        %2174 = vmatprep.subr.mxu0 0.0
        %2175 = vmatpush1.xpose.msra.mxu0 0.0
        %2176 = vmatprep.subr.mxu0 0.0
        %2177 = vmatpush1.xpose.msra.mxu0 0.0
        %2178 = vmatprep.subr.mxu0 0.0
        %2179 = vmatpush1.xpose.msra.mxu0 0.0
        %2180 = vmatprep.subr.mxu0 0.0
        %2181 = vmatpush1.xpose.msra.mxu0 0.0
        %2182 = vmatprep.subr.mxu0 0.0
        %2183 = vmatpush1.xpose.msra.mxu0 0.0
        %2184 = vmatprep.subr.mxu0 0.0
        %2185 = vmatpush1.xpose.msra.mxu0 0.0
        %2186 = vmatprep.mubr.f32.mxu0 0.0
        %2187 = vmatmul.mubr.f32.gmra.mrb[0].mxu0 %v2116
        %v2188 = vpop.f32.mrb[0].mxu0
        %v2189 = vadd.f32 0.0, %v2188
        %v2190 = vpop.f32.mrb[0].mxu0
        %2191 = vdwg.mxu0
        %v2192 = vmul.f32 %v2107, 0.35355338
        %v2193 = vmul.f32 %v2189, 0.35355338
        %v2194 = vsel %vm1163, %v2192, -inf
        %2195 = vmax.xlane.f32.xlu0 %v2194
        %v2196 = vpop.xlane.xlu0 %2195
        %v2197 = vsel %vm1163, %v2193, -inf
        %2198 = vmax.xlane.f32.xlu0 %v2197
        %v2199 = vpop.xlane.xlu0 %2198
        %v2200 = vsub.f32 %v2192, %v2196
        %v2201 = vsub.f32 %v2193, %v2199
        %v2202 = vmul.f32 %v2200, 1.442695
        %v2203 = vpow.pop %v2202
        %v2204 = vmul.f32 %v2201, 1.442695
        %v2205 = vpow.pop %v2204
        %v2206 = vsel %vm1163, %v2203, 0.0
        %2207 = vadd.xlane.f32.xlu0 %v2206
        %v2208 = vpop.xlane.xlu0 %2207
        %v2209 = vsel %vm1163, %v2205, 0.0
        %2210 = vadd.xlane.f32.xlu0 %v2209
        %v2211 = vpop.xlane.xlu0 %2210
        %v2212 = vrcp.pop %v2208
        %v2213 = vrcp.pop %v2211
        %v2214 = vmul.f32 %v2203, %v2212
        %v2215 = vmul.f32 %v2205, %v2213
        %2216 = vrot.lane.b32.xlu0 %v984, 104
        %v2217 = vpop.permute.xlu0 %2216
        %2218 = vrot.lane.b32.xlu0 %v989, 104
        %v2219 = vpop.permute.xlu0 %2218
        %v2223 = vsel %vm1163, %v2214, 0
        %2225 = vmatprep.subr.mxu0 0.0
        %2226 = vmatpush1.msra.mxu0 %v2217
        %2227 = vmatprep.subr.mxu0 0.0
        %2228 = vmatpush1.msra.mxu0 %v2219
        %2229 = vmatprep.subr.mxu0 0.0
        %2230 = vmatpush1.msra.mxu0 0.0
        %2231 = vmatprep.subr.mxu0 0.0
        %2232 = vmatpush1.msra.mxu0 0.0
        %2233 = vmatprep.subr.mxu0 0.0
        %2234 = vmatpush1.msra.mxu0 0.0
        %2235 = vmatprep.subr.mxu0 0.0
        %2236 = vmatpush1.msra.mxu0 0.0
        %2237 = vmatprep.subr.mxu0 0.0
        %2238 = vmatpush1.msra.mxu0 0.0
        %2239 = vmatprep.subr.mxu0 0.0
        %2240 = vmatpush1.msra.mxu0 0.0
        %2241 = vmatprep.subr.mxu0 0.0
        %2242 = vmatpush1.msra.mxu0 0.0
        %2243 = vmatprep.subr.mxu0 0.0
        %2244 = vmatpush1.msra.mxu0 0.0
        %2245 = vmatprep.subr.mxu0 0.0
        %2246 = vmatpush1.msra.mxu0 0.0
        %2247 = vmatprep.subr.mxu0 0.0
        %2248 = vmatpush1.msra.mxu0 0.0
        %2249 = vmatprep.subr.mxu0 0.0
        %2250 = vmatpush1.msra.mxu0 0.0
        %2251 = vmatprep.subr.mxu0 0.0
        %2252 = vmatpush1.msra.mxu0 0.0
        %2253 = vmatprep.subr.mxu0 0.0
        %2254 = vmatpush1.msra.mxu0 0.0
        %2255 = vmatprep.subr.mxu0 0.0
        %2256 = vmatpush1.msra.mxu0 0.0
        %2257 = vmatprep.subr.mxu0 0.0
        %2258 = vmatpush1.msra.mxu0 0.0
        %2259 = vmatprep.subr.mxu0 0.0
        %2260 = vmatpush1.msra.mxu0 0.0
        %2261 = vmatprep.subr.mxu0 0.0
        %2262 = vmatpush1.msra.mxu0 0.0
        %2263 = vmatprep.subr.mxu0 0.0
        %2264 = vmatpush1.msra.mxu0 0.0
        %2265 = vmatprep.subr.mxu0 0.0
        %2266 = vmatpush1.msra.mxu0 0.0
        %2267 = vmatprep.subr.mxu0 0.0
        %2268 = vmatpush1.msra.mxu0 0.0
        %2269 = vmatprep.subr.mxu0 0.0
        %2270 = vmatpush1.msra.mxu0 0.0
        %2271 = vmatprep.subr.mxu0 0.0
        %2272 = vmatpush1.msra.mxu0 0.0
        %2273 = vmatprep.subr.mxu0 0.0
        %2274 = vmatpush1.msra.mxu0 0.0
        %2275 = vmatprep.subr.mxu0 0.0
        %2276 = vmatpush1.msra.mxu0 0.0
        %2277 = vmatprep.subr.mxu0 0.0
        %2278 = vmatpush1.msra.mxu0 0.0
        %2279 = vmatprep.subr.mxu0 0.0
        %2280 = vmatpush1.msra.mxu0 0.0
        %2281 = vmatprep.subr.mxu0 0.0
        %2282 = vmatpush1.msra.mxu0 0.0
        %2283 = vmatprep.subr.mxu0 0.0
        %2284 = vmatpush1.msra.mxu0 0.0
        %2285 = vmatprep.subr.mxu0 0.0
        %2286 = vmatpush1.msra.mxu0 0.0
        %2287 = vmatprep.subr.mxu0 0.0
        %2288 = vmatpush1.msra.mxu0 0.0
        %2289 = vmatprep.mubr.f32.mxu0 0.0
        %2290 = vmatmul.mubr.f32.gmra.mrb[0].mxu0 %v2223
        %v2291 = vpop.f32.mrb[0].mxu0
        %v2292 = vadd.f32 0.0, %v2291
        %v2293 = vpop.f32.mrb[0].mxu0
        %2294 = vdwg.mxu0
        %2295 = vrot.lane.b32.xlu0 %v994, 104
        %v2296 = vpop.permute.xlu0 %2295
        %2297 = vrot.lane.b32.xlu0 %v999, 104
        %v2298 = vpop.permute.xlu0 %2297
        %v2302 = vsel %vm1163, %v2215, 0
        %2304 = vmatprep.subr.mxu0 0.0
        %2305 = vmatpush1.msra.mxu0 %v2296
        %2306 = vmatprep.subr.mxu0 0.0
        %2307 = vmatpush1.msra.mxu0 %v2298
        %2308 = vmatprep.subr.mxu0 0.0
        %2309 = vmatpush1.msra.mxu0 0.0
        %2310 = vmatprep.subr.mxu0 0.0
        %2311 = vmatpush1.msra.mxu0 0.0
        %2312 = vmatprep.subr.mxu0 0.0
        %2313 = vmatpush1.msra.mxu0 0.0
        %2314 = vmatprep.subr.mxu0 0.0
        %2315 = vmatpush1.msra.mxu0 0.0
        %2316 = vmatprep.subr.mxu0 0.0
        %2317 = vmatpush1.msra.mxu0 0.0
        %2318 = vmatprep.subr.mxu0 0.0
        %2319 = vmatpush1.msra.mxu0 0.0
        %2320 = vmatprep.subr.mxu0 0.0
        %2321 = vmatpush1.msra.mxu0 0.0
        %2322 = vmatprep.subr.mxu0 0.0
        %2323 = vmatpush1.msra.mxu0 0.0
        %2324 = vmatprep.subr.mxu0 0.0
        %2325 = vmatpush1.msra.mxu0 0.0
        %2326 = vmatprep.subr.mxu0 0.0
        %2327 = vmatpush1.msra.mxu0 0.0
        %2328 = vmatprep.subr.mxu0 0.0
        %2329 = vmatpush1.msra.mxu0 0.0
        %2330 = vmatprep.subr.mxu0 0.0
        %2331 = vmatpush1.msra.mxu0 0.0
        %2332 = vmatprep.subr.mxu0 0.0
        %2333 = vmatpush1.msra.mxu0 0.0
        %2334 = vmatprep.subr.mxu0 0.0
        %2335 = vmatpush1.msra.mxu0 0.0
        %2336 = vmatprep.subr.mxu0 0.0
        %2337 = vmatpush1.msra.mxu0 0.0
        %2338 = vmatprep.subr.mxu0 0.0
        %2339 = vmatpush1.msra.mxu0 0.0
        %2340 = vmatprep.subr.mxu0 0.0
        %2341 = vmatpush1.msra.mxu0 0.0
        %2342 = vmatprep.subr.mxu0 0.0
        %2343 = vmatpush1.msra.mxu0 0.0
        %2344 = vmatprep.subr.mxu0 0.0
        %2345 = vmatpush1.msra.mxu0 0.0
        %2346 = vmatprep.subr.mxu0 0.0
        %2347 = vmatpush1.msra.mxu0 0.0
        %2348 = vmatprep.subr.mxu0 0.0
        %2349 = vmatpush1.msra.mxu0 0.0
        %2350 = vmatprep.subr.mxu0 0.0
        %2351 = vmatpush1.msra.mxu0 0.0
        %2352 = vmatprep.subr.mxu0 0.0
        %2353 = vmatpush1.msra.mxu0 0.0
        %2354 = vmatprep.subr.mxu0 0.0
        %2355 = vmatpush1.msra.mxu0 0.0
        %2356 = vmatprep.subr.mxu0 0.0
        %2357 = vmatpush1.msra.mxu0 0.0
        %2358 = vmatprep.subr.mxu0 0.0
        %2359 = vmatpush1.msra.mxu0 0.0
        %2360 = vmatprep.subr.mxu0 0.0
        %2361 = vmatpush1.msra.mxu0 0.0
        %2362 = vmatprep.subr.mxu0 0.0
        %2363 = vmatpush1.msra.mxu0 0.0
        %2364 = vmatprep.subr.mxu0 0.0
        %2365 = vmatpush1.msra.mxu0 0.0
        %2366 = vmatprep.subr.mxu0 0.0
        %2367 = vmatpush1.msra.mxu0 0.0
        %2368 = vmatprep.mubr.f32.mxu0 0.0
        %2369 = vmatmul.mubr.f32.gmra.mrb[0].mxu0 %v2302
        %v2370 = vpop.f32.mrb[0].mxu0
        %v2371 = vadd.f32 0.0, %v2370
        %v2372 = vpop.f32.mrb[0].mxu0
        %2373 = vdwg.mxu0
        %2376 = vrot.lane.b32.xlu0 %v1598, 8
        %v2377 = vpop.permute.xlu0 %2376
        %2378 = vrot.lane.b32.xlu0 %v1679, 8
        %v2379 = vpop.permute.xlu0 %2378
        %2384 = vrot.lane.b32.xlu0 %v1946, 16
        %v2385 = vpop.permute.xlu0 %2384
        %2386 = vrot.lane.b32.xlu0 %v2025, 16
        %v2387 = vpop.permute.xlu0 %2386
        %2392 = vrot.lane.b32.xlu0 %v2292, 24
        %v2393 = vpop.permute.xlu0 %2392
        %2394 = vrot.lane.b32.xlu0 %v2371, 24
        %v2395 = vpop.permute.xlu0 %2394
        %v2398 = vsel %vm1002, %v1256, %v2377
        %v2399 = vsel %vm1002, %v1329, %v2379
        %v2400 = vsel %vm1163, %v2398, %v2385
        %v2401 = vsel %vm1163, %v2399, %v2387
        %vm2402 = vcmask 195584
        %v2403 = vsel %vm2402, %v2400, %v2393
        %v2404 = vsel %vm2402, %v2401, %v2395
        %v2405 = vlaneseq
        %v2406 = vshrl.u32 %v2405, 7
        %v2407 = vsub.s32 3, %v2406
        %v2408 = vrot.slane %v725, %v2407
        %v2410 = vsel %vm730, %v2403, 0
        %v2413 = vsel %vm730, %v2404, 0
        %2415 = vmatprep.subr.mxu0 0.0
        %2416 = vmatpush1.msra.mxu0 %v721
        %2417 = vmatprep.subr.mxu0 0.0
        %2418 = vmatpush1.msra.mxu0 %v722
        %2419 = vmatprep.subr.mxu0 0.0
        %2420 = vmatpush1.msra.mxu0 %v723
        %2421 = vmatprep.subr.mxu0 0.0
        %2422 = vmatpush1.msra.mxu0 %v724
        %2423 = vmatprep.subr.mxu0 0.0
        %2424 = vmatpush1.msra.mxu0 0.0
        %2425 = vmatprep.subr.mxu0 0.0
        %2426 = vmatpush1.msra.mxu0 0.0
        %2427 = vmatprep.subr.mxu0 0.0
        %2428 = vmatpush1.msra.mxu0 0.0
        %2429 = vmatprep.subr.mxu0 0.0
        %2430 = vmatpush1.msra.mxu0 0.0
        %2431 = vmatprep.subr.mxu0 0.0
        %2432 = vmatpush1.msra.mxu0 0.0
        %2433 = vmatprep.subr.mxu0 0.0
        %2434 = vmatpush1.msra.mxu0 0.0
        %2435 = vmatprep.subr.mxu0 0.0
        %2436 = vmatpush1.msra.mxu0 0.0
        %2437 = vmatprep.subr.mxu0 0.0
        %2438 = vmatpush1.msra.mxu0 0.0
        %2439 = vmatprep.subr.mxu0 0.0
        %2440 = vmatpush1.msra.mxu0 0.0
        %2441 = vmatprep.subr.mxu0 0.0
        %2442 = vmatpush1.msra.mxu0 0.0
        %2443 = vmatprep.subr.mxu0 0.0
        %2444 = vmatpush1.msra.mxu0 0.0
        %2445 = vmatprep.subr.mxu0 0.0
        %2446 = vmatpush1.msra.mxu0 0.0
        %2447 = vmatprep.subr.mxu0 0.0
        %2448 = vmatpush1.msra.mxu0 0.0
        %2449 = vmatprep.subr.mxu0 0.0
        %2450 = vmatpush1.msra.mxu0 0.0
        %2451 = vmatprep.subr.mxu0 0.0
        %2452 = vmatpush1.msra.mxu0 0.0
        %2453 = vmatprep.subr.mxu0 0.0
        %2454 = vmatpush1.msra.mxu0 0.0
        %2455 = vmatprep.subr.mxu0 0.0
        %2456 = vmatpush1.msra.mxu0 0.0
        %2457 = vmatprep.subr.mxu0 0.0
        %2458 = vmatpush1.msra.mxu0 0.0
        %2459 = vmatprep.subr.mxu0 0.0
        %2460 = vmatpush1.msra.mxu0 0.0
        %2461 = vmatprep.subr.mxu0 0.0
        %2462 = vmatpush1.msra.mxu0 0.0
        %2463 = vmatprep.subr.mxu0 0.0
        %2464 = vmatpush1.msra.mxu0 0.0
        %2465 = vmatprep.subr.mxu0 0.0
        %2466 = vmatpush1.msra.mxu0 0.0
        %2467 = vmatprep.subr.mxu0 0.0
        %2468 = vmatpush1.msra.mxu0 0.0
        %2469 = vmatprep.subr.mxu0 0.0
        %2470 = vmatpush1.msra.mxu0 0.0
        %2471 = vmatprep.subr.mxu0 0.0
        %2472 = vmatpush1.msra.mxu0 0.0
        %2473 = vmatprep.subr.mxu0 0.0
        %2474 = vmatpush1.msra.mxu0 0.0
        %2475 = vmatprep.subr.mxu0 0.0
        %2476 = vmatpush1.msra.mxu0 0.0
        %2477 = vmatprep.subr.mxu0 0.0
        %2478 = vmatpush1.msra.mxu0 0.0
        %2479 = vmatprep.mubr.f32.mxu0 0.0
        %2480 = vmatmul.mubr.f32.gmra.mrb[0].mxu0 %v2410
        %v2481 = vpop.f32.mrb[0].mxu0
        %v2482 = vadd.f32 %v2408, %v2481
        %v2483 = vpop.f32.mrb[0].mxu0
        %2484 = vmatprep.mubr.f32.mxu0 0.0
        %2485 = vmatmul.mubr.f32.gmra.mrb[0].mxu0 %v2413
        %v2486 = vpop.f32.mrb[0].mxu0
        %v2487 = vadd.f32 %v2408, %v2486
        %v2488 = vpop.f32.mrb[0].mxu0
        %2489 = vdwg.mxu0
        %v2490 = vld [vmem:[%s576] sm:$0xff]
        %v2491 = vld [vmem:[%s576 + $0x8] sm:$0xff]
        %v2492 = vld [vmem:[%s576 + $0x10] sm:$0xff]
        %v2493 = vld [vmem:[%s576 + $0x18] sm:$0xff]
        %v2494 = vld [vmem:[%s576 + $0x20] sm:$0xff]
        %v2495 = vld [vmem:[%s576 + $0x28] sm:$0xff]
        %v2496 = vld [vmem:[%s576 + $0x30] sm:$0xff]
        %v2497 = vld [vmem:[%s576 + $0x38] sm:$0xff]
        %v2498 = vld [vmem:[%s673] sm:$0x3]
        %v2499 = vld [vmem:[%s677] sm:$0x3]
        %v2500 = vlaneseq
        %v2501 = vshrl.u32 %v2500, 7
        %v2502 = vsub.s32 0, %v2501
        %v2503 = vrot.slane %v2498, %v2502
        %v2505 = vsel %vm730, %v2482, 0
        %v2508 = vsel %vm730, %v2487, 0
        %2510 = vmatprep.subr.mxu0 0.0
        %2511 = vmatpush1.msra.mxu0 %v2490
        %2512 = vmatprep.subr.mxu0 0.0
        %2513 = vmatpush1.msra.mxu0 %v2491
        %2514 = vmatprep.subr.mxu0 0.0
        %2515 = vmatpush1.msra.mxu0 %v2492
        %2516 = vmatprep.subr.mxu0 0.0
        %2517 = vmatpush1.msra.mxu0 %v2493
        %2518 = vmatprep.subr.mxu0 0.0
        %2519 = vmatpush1.msra.mxu0 0.0
        %2520 = vmatprep.subr.mxu0 0.0
        %2521 = vmatpush1.msra.mxu0 0.0
        %2522 = vmatprep.subr.mxu0 0.0
        %2523 = vmatpush1.msra.mxu0 0.0
        %2524 = vmatprep.subr.mxu0 0.0
        %2525 = vmatpush1.msra.mxu0 0.0
        %2526 = vmatprep.subr.mxu0 0.0
        %2527 = vmatpush1.msra.mxu0 0.0
        %2528 = vmatprep.subr.mxu0 0.0
        %2529 = vmatpush1.msra.mxu0 0.0
        %2530 = vmatprep.subr.mxu0 0.0
        %2531 = vmatpush1.msra.mxu0 0.0
        %2532 = vmatprep.subr.mxu0 0.0
        %2533 = vmatpush1.msra.mxu0 0.0
        %2534 = vmatprep.subr.mxu0 0.0
        %2535 = vmatpush1.msra.mxu0 0.0
        %2536 = vmatprep.subr.mxu0 0.0
        %2537 = vmatpush1.msra.mxu0 0.0
        %2538 = vmatprep.subr.mxu0 0.0
        %2539 = vmatpush1.msra.mxu0 0.0
        %2540 = vmatprep.subr.mxu0 0.0
        %2541 = vmatpush1.msra.mxu0 0.0
        %2542 = vmatprep.subr.mxu0 0.0
        %2543 = vmatpush1.msra.mxu0 0.0
        %2544 = vmatprep.subr.mxu0 0.0
        %2545 = vmatpush1.msra.mxu0 0.0
        %2546 = vmatprep.subr.mxu0 0.0
        %2547 = vmatpush1.msra.mxu0 0.0
        %2548 = vmatprep.subr.mxu0 0.0
        %2549 = vmatpush1.msra.mxu0 0.0
        %2550 = vmatprep.subr.mxu0 0.0
        %2551 = vmatpush1.msra.mxu0 0.0
        %2552 = vmatprep.subr.mxu0 0.0
        %2553 = vmatpush1.msra.mxu0 0.0
        %2554 = vmatprep.subr.mxu0 0.0
        %2555 = vmatpush1.msra.mxu0 0.0
        %2556 = vmatprep.subr.mxu0 0.0
        %2557 = vmatpush1.msra.mxu0 0.0
        %2558 = vmatprep.subr.mxu0 0.0
        %2559 = vmatpush1.msra.mxu0 0.0
        %2560 = vmatprep.subr.mxu0 0.0
        %2561 = vmatpush1.msra.mxu0 0.0
        %2562 = vmatprep.subr.mxu0 0.0
        %2563 = vmatpush1.msra.mxu0 0.0
        %2564 = vmatprep.subr.mxu0 0.0
        %2565 = vmatpush1.msra.mxu0 0.0
        %2566 = vmatprep.subr.mxu0 0.0
        %2567 = vmatpush1.msra.mxu0 0.0
        %2568 = vmatprep.subr.mxu0 0.0
        %2569 = vmatpush1.msra.mxu0 0.0
        %2570 = vmatprep.subr.mxu0 0.0
        %2571 = vmatpush1.msra.mxu0 0.0
        %2572 = vmatprep.subr.mxu0 0.0
        %2573 = vmatpush1.msra.mxu0 0.0
        %2574 = vmatprep.mubr.f32.mxu0 0.0
        %2575 = vmatmul.mubr.f32.gmra.mrb[0].mxu0 %v2505
        %v2576 = vpop.f32.mrb[0].mxu0
        %v2577 = vadd.f32 %v2503, %v2576
        %v2578 = vpop.f32.mrb[0].mxu0
        %2579 = vmatprep.mubr.f32.mxu0 0.0
        %2580 = vmatmul.mubr.f32.gmra.mrb[0].mxu0 %v2508
        %v2581 = vpop.f32.mrb[0].mxu0
        %v2582 = vadd.f32 %v2503, %v2581
        %v2583 = vpop.f32.mrb[0].mxu0
        %2584 = vdwg.mxu0
        %vm2585 = vcmp.gt.f32.partialorder %v2577, 0.0
        %vm2586 = vcmp.gt.f32.partialorder %v2582, 0.0
        %v2587 = vmul.f32 %v2577, 0.01
        %v2588 = vmul.f32 %v2582, 0.01
        %v2589 = vsel %vm2585, %v2577, %v2587
        %v2590 = vsel %vm2586, %v2582, %v2588
        %v2591 = vlaneseq
        %v2592 = vshrl.u32 %v2591, 7
        %v2593 = vsub.s32 1, %v2592
        %v2594 = vrot.slane %v2498, %v2593
        %v2596 = vsel %vm730, %v2589, 0
        %v2599 = vsel %vm730, %v2590, 0
        %2601 = vmatprep.subr.mxu0 0.0
        %2602 = vmatpush1.msra.mxu0 %v2494
        %2603 = vmatprep.subr.mxu0 0.0
        %2604 = vmatpush1.msra.mxu0 %v2495
        %2605 = vmatprep.subr.mxu0 0.0
        %2606 = vmatpush1.msra.mxu0 %v2496
        %2607 = vmatprep.subr.mxu0 0.0
        %2608 = vmatpush1.msra.mxu0 %v2497
        %2609 = vmatprep.subr.mxu0 0.0
        %2610 = vmatpush1.msra.mxu0 0.0
        %2611 = vmatprep.subr.mxu0 0.0
        %2612 = vmatpush1.msra.mxu0 0.0
        %2613 = vmatprep.subr.mxu0 0.0
        %2614 = vmatpush1.msra.mxu0 0.0
        %2615 = vmatprep.subr.mxu0 0.0
        %2616 = vmatpush1.msra.mxu0 0.0
        %2617 = vmatprep.subr.mxu0 0.0
        %2618 = vmatpush1.msra.mxu0 0.0
        %2619 = vmatprep.subr.mxu0 0.0
        %2620 = vmatpush1.msra.mxu0 0.0
        %2621 = vmatprep.subr.mxu0 0.0
        %2622 = vmatpush1.msra.mxu0 0.0
        %2623 = vmatprep.subr.mxu0 0.0
        %2624 = vmatpush1.msra.mxu0 0.0
        %2625 = vmatprep.subr.mxu0 0.0
        %2626 = vmatpush1.msra.mxu0 0.0
        %2627 = vmatprep.subr.mxu0 0.0
        %2628 = vmatpush1.msra.mxu0 0.0
        %2629 = vmatprep.subr.mxu0 0.0
        %2630 = vmatpush1.msra.mxu0 0.0
        %2631 = vmatprep.subr.mxu0 0.0
        %2632 = vmatpush1.msra.mxu0 0.0
        %2633 = vmatprep.subr.mxu0 0.0
        %2634 = vmatpush1.msra.mxu0 0.0
        %2635 = vmatprep.subr.mxu0 0.0
        %2636 = vmatpush1.msra.mxu0 0.0
        %2637 = vmatprep.subr.mxu0 0.0
        %2638 = vmatpush1.msra.mxu0 0.0
        %2639 = vmatprep.subr.mxu0 0.0
        %2640 = vmatpush1.msra.mxu0 0.0
        %2641 = vmatprep.subr.mxu0 0.0
        %2642 = vmatpush1.msra.mxu0 0.0
        %2643 = vmatprep.subr.mxu0 0.0
        %2644 = vmatpush1.msra.mxu0 0.0
        %2645 = vmatprep.subr.mxu0 0.0
        %2646 = vmatpush1.msra.mxu0 0.0
        %2647 = vmatprep.subr.mxu0 0.0
        %2648 = vmatpush1.msra.mxu0 0.0
        %2649 = vmatprep.subr.mxu0 0.0
        %2650 = vmatpush1.msra.mxu0 0.0
        %2651 = vmatprep.subr.mxu0 0.0
        %2652 = vmatpush1.msra.mxu0 0.0
        %2653 = vmatprep.subr.mxu0 0.0
        %2654 = vmatpush1.msra.mxu0 0.0
        %2655 = vmatprep.subr.mxu0 0.0
        %2656 = vmatpush1.msra.mxu0 0.0
        %2657 = vmatprep.subr.mxu0 0.0
        %2658 = vmatpush1.msra.mxu0 0.0
        %2659 = vmatprep.subr.mxu0 0.0
        %2660 = vmatpush1.msra.mxu0 0.0
        %2661 = vmatprep.subr.mxu0 0.0
        %2662 = vmatpush1.msra.mxu0 0.0
        %2663 = vmatprep.subr.mxu0 0.0
        %2664 = vmatpush1.msra.mxu0 0.0
        %2665 = vmatprep.mubr.f32.mxu0 0.0
        %2666 = vmatmul.mubr.f32.gmra.mrb[0].mxu0 %v2596
        %v2667 = vpop.f32.mrb[0].mxu0
        %v2668 = vadd.f32 %v2594, %v2667
        %v2669 = vpop.f32.mrb[0].mxu0
        %2670 = vmatprep.mubr.f32.mxu0 0.0
        %2671 = vmatmul.mubr.f32.gmra.mrb[0].mxu0 %v2599
        %v2672 = vpop.f32.mrb[0].mxu0
        %v2673 = vadd.f32 %v2594, %v2672
        %v2674 = vpop.f32.mrb[0].mxu0
        %2675 = vdwg.mxu0
        %v2676 = vadd.f32 %v2668, %v2482
        %v2677 = vadd.f32 %v2673, %v2487
        %v2678 = vsel %vm730, %v2676, 0.0
        %2679 = vadd.xlane.f32.xlu0 %v2678
        %v2680 = vpop.xlane.xlu0 %2679
        %v2681 = vsel %vm730, %v2677, 0.0
        %2682 = vadd.xlane.f32.xlu0 %v2681
        %v2683 = vpop.xlane.xlu0 %2682
        %v2684 = vrcp.pop 32.0
        %v2685 = vmul.f32 %v2680, %v2684
        %v2686 = vmul.f32 %v2683, %v2684
        %v2687 = vsub.f32 %v2676, %v2685
        %v2688 = vsub.f32 %v2677, %v2686
        %v2689 = vmul.f32 %v2687, %v2687
        %v2690 = vmul.f32 %v2688, %v2688
        %v2691 = vsel %vm730, %v2689, 0.0
        %2692 = vadd.xlane.f32.xlu0 %v2691
        %v2693 = vpop.xlane.xlu0 %2692
        %v2694 = vsel %vm730, %v2690, 0.0
        %2695 = vadd.xlane.f32.xlu0 %v2694
        %v2696 = vpop.xlane.xlu0 %2695
        %v2697 = vmul.f32 %v2693, %v2684
        %v2698 = vmul.f32 %v2696, %v2684
        %v2699 = vadd.f32 %v2697, 1e-05
        %v2700 = vadd.f32 %v2698, 1e-05
        %v2701 = vrsqrt.pop %v2699
        %v2702 = vrsqrt.pop %v2700
        %v2703 = vmul.f32 %v2687, %v2701
        %v2704 = vmul.f32 %v2688, %v2702
        %v2705 = vlaneseq
        %v2706 = vshrl.u32 %v2705, 7
        %v2707 = vsub.s32 0, %v2706
        %v2708 = vrot.slane %v2499, %v2707
        %v2709 = vmul.f32 %v2703, %v2708
        %v2710 = vmul.f32 %v2704, %v2708
        %v2711 = vlaneseq
        %v2712 = vshrl.u32 %v2711, 7
        %v2713 = vsub.s32 1, %v2712
        %v2714 = vrot.slane %v2499, %v2713
        %v2715 = vadd.f32 %v2709, %v2714
        %v2716 = vadd.f32 %v2710, %v2714
        %v2717 = vld [vmem:[%s567] sm:$0xff]
        %v2718 = vld [vmem:[%s567 + $0x8] sm:$0xff]
        %v2719 = vld [vmem:[%s567 + $0x10] sm:$0xff]
        %v2720 = vld [vmem:[%s567 + $0x18] sm:$0xff]
        %v2721 = vld [vmem:[%s567 + $0x20] sm:$0xff]
        %v2722 = vld [vmem:[%s567 + $0x28] sm:$0xff]
        %v2723 = vld [vmem:[%s567 + $0x30] sm:$0xff]
        %v2724 = vld [vmem:[%s567 + $0x38] sm:$0xff]
        %v2725 = vld [vmem:[%s567 + $0x40] sm:$0xff]
        %v2726 = vld [vmem:[%s567 + $0x48] sm:$0xff]
        %v2727 = vld [vmem:[%s567 + $0x50] sm:$0xff]
        %v2728 = vld [vmem:[%s567 + $0x58] sm:$0xff]
        %v2729 = vld [vmem:[%s567 + $0x60] sm:$0xff]
        %v2730 = vld [vmem:[%s567 + $0x68] sm:$0xff]
        %v2731 = vld [vmem:[%s567 + $0x70] sm:$0xff]
        %v2732 = vld [vmem:[%s567 + $0x78] sm:$0xff]
        %v2733 = vld [vmem:[%s669] sm:$0xf]
        %v2734 = vlaneseq
        %v2735 = vshrl.u32 %v2734, 7
        %v2736 = vsub.s32 0, %v2735
        %v2737 = vrot.slane %v2733, %v2736
        %2738 = vmatprep.subr.mxu0 0.0
        %2739 = vmatpush1.msra.mxu0 %v2717
        %2740 = vmatprep.subr.mxu0 0.0
        %2741 = vmatpush1.msra.mxu0 %v2718
        %2742 = vmatprep.subr.mxu0 0.0
        %2743 = vmatpush1.msra.mxu0 %v2719
        %2744 = vmatprep.subr.mxu0 0.0
        %2745 = vmatpush1.msra.mxu0 %v2720
        %2746 = vmatprep.subr.mxu0 0.0
        %2747 = vmatpush1.msra.mxu0 0.0
        %2748 = vmatprep.subr.mxu0 0.0
        %2749 = vmatpush1.msra.mxu0 0.0
        %2750 = vmatprep.subr.mxu0 0.0
        %2751 = vmatpush1.msra.mxu0 0.0
        %2752 = vmatprep.subr.mxu0 0.0
        %2753 = vmatpush1.msra.mxu0 0.0
        %2754 = vmatprep.subr.mxu0 0.0
        %2755 = vmatpush1.msra.mxu0 0.0
        %2756 = vmatprep.subr.mxu0 0.0
        %2757 = vmatpush1.msra.mxu0 0.0
        %2758 = vmatprep.subr.mxu0 0.0
        %2759 = vmatpush1.msra.mxu0 0.0
        %2760 = vmatprep.subr.mxu0 0.0
        %2761 = vmatpush1.msra.mxu0 0.0
        %2762 = vmatprep.subr.mxu0 0.0
        %2763 = vmatpush1.msra.mxu0 0.0
        %2764 = vmatprep.subr.mxu0 0.0
        %2765 = vmatpush1.msra.mxu0 0.0
        %2766 = vmatprep.subr.mxu0 0.0
        %2767 = vmatpush1.msra.mxu0 0.0
        %2768 = vmatprep.subr.mxu0 0.0
        %2769 = vmatpush1.msra.mxu0 0.0
        %2770 = vmatprep.subr.mxu0 0.0
        %2771 = vmatpush1.msra.mxu0 0.0
        %2772 = vmatprep.subr.mxu0 0.0
        %2773 = vmatpush1.msra.mxu0 0.0
        %2774 = vmatprep.subr.mxu0 0.0
        %2775 = vmatpush1.msra.mxu0 0.0
        %2776 = vmatprep.subr.mxu0 0.0
        %2777 = vmatpush1.msra.mxu0 0.0
        %2778 = vmatprep.subr.mxu0 0.0
        %2779 = vmatpush1.msra.mxu0 0.0
        %2780 = vmatprep.subr.mxu0 0.0
        %2781 = vmatpush1.msra.mxu0 0.0
        %2782 = vmatprep.subr.mxu0 0.0
        %2783 = vmatpush1.msra.mxu0 0.0
        %2784 = vmatprep.subr.mxu0 0.0
        %2785 = vmatpush1.msra.mxu0 0.0
        %2786 = vmatprep.subr.mxu0 0.0
        %2787 = vmatpush1.msra.mxu0 0.0
        %2788 = vmatprep.subr.mxu0 0.0
        %2789 = vmatpush1.msra.mxu0 0.0
        %2790 = vmatprep.subr.mxu0 0.0
        %2791 = vmatpush1.msra.mxu0 0.0
        %2792 = vmatprep.subr.mxu0 0.0
        %2793 = vmatpush1.msra.mxu0 0.0
        %2794 = vmatprep.subr.mxu0 0.0
        %2795 = vmatpush1.msra.mxu0 0.0
        %2796 = vmatprep.subr.mxu0 0.0
        %2797 = vmatpush1.msra.mxu0 0.0
        %2798 = vmatprep.subr.mxu0 0.0
        %2799 = vmatpush1.msra.mxu0 0.0
        %2800 = vmatprep.subr.mxu0 0.0
        %2801 = vmatpush1.msra.mxu0 0.0
        %2802 = vmatprep.mubr.f32.mxu0 0.0
        %2803 = vmatmul.mubr.f32.gmra.mrb[0].mxu0 %v817
        %v2804 = vpop.f32.mrb[0].mxu0
        %v2805 = vadd.f32 %v2737, %v2804
        %v2806 = vpop.f32.mrb[0].mxu0
        %2807 = vmatprep.mubr.f32.mxu0 0.0
        %2808 = vmatmul.mubr.f32.gmra.mrb[0].mxu0 %v820
        %v2809 = vpop.f32.mrb[0].mxu0
        %v2810 = vadd.f32 %v2737, %v2809
        %v2811 = vpop.f32.mrb[0].mxu0
        %2812 = vmatprep.mubr.f32.mxu0 0.0
        %2813 = vmatmul.mubr.f32.gmra.mrb[0].mxu0 %v823
        %v2814 = vpop.f32.mrb[0].mxu0
        %v2815 = vadd.f32 %v2737, %v2814
        %v2816 = vpop.f32.mrb[0].mxu0
        %2817 = vmatprep.mubr.f32.mxu0 0.0
        %2818 = vmatmul.mubr.f32.gmra.mrb[0].mxu0 %v826
        %v2819 = vpop.f32.mrb[0].mxu0
        %v2820 = vadd.f32 %v2737, %v2819
        %v2821 = vpop.f32.mrb[0].mxu0
        %2822 = vdwg.mxu0
        %v2823 = vlaneseq
        %v2824 = vshrl.u32 %v2823, 7
        %v2825 = vsub.s32 1, %v2824
        %v2826 = vrot.slane %v2733, %v2825
        %v2828 = vsel %vm730, %v2715, 0
        %v2831 = vsel %vm730, %v2716, 0
        %2833 = vmatprep.subr.mxu0 0.0
        %2834 = vmatpush1.msra.mxu0 %v2721
        %2835 = vmatprep.subr.mxu0 0.0
        %2836 = vmatpush1.msra.mxu0 %v2722
        %2837 = vmatprep.subr.mxu0 0.0
        %2838 = vmatpush1.msra.mxu0 %v2723
        %2839 = vmatprep.subr.mxu0 0.0
        %2840 = vmatpush1.msra.mxu0 %v2724
        %2841 = vmatprep.subr.mxu0 0.0
        %2842 = vmatpush1.msra.mxu0 0.0
        %2843 = vmatprep.subr.mxu0 0.0
        %2844 = vmatpush1.msra.mxu0 0.0
        %2845 = vmatprep.subr.mxu0 0.0
        %2846 = vmatpush1.msra.mxu0 0.0
        %2847 = vmatprep.subr.mxu0 0.0
        %2848 = vmatpush1.msra.mxu0 0.0
        %2849 = vmatprep.subr.mxu0 0.0
        %2850 = vmatpush1.msra.mxu0 0.0
        %2851 = vmatprep.subr.mxu0 0.0
        %2852 = vmatpush1.msra.mxu0 0.0
        %2853 = vmatprep.subr.mxu0 0.0
        %2854 = vmatpush1.msra.mxu0 0.0
        %2855 = vmatprep.subr.mxu0 0.0
        %2856 = vmatpush1.msra.mxu0 0.0
        %2857 = vmatprep.subr.mxu0 0.0
        %2858 = vmatpush1.msra.mxu0 0.0
        %2859 = vmatprep.subr.mxu0 0.0
        %2860 = vmatpush1.msra.mxu0 0.0
        %2861 = vmatprep.subr.mxu0 0.0
        %2862 = vmatpush1.msra.mxu0 0.0
        %2863 = vmatprep.subr.mxu0 0.0
        %2864 = vmatpush1.msra.mxu0 0.0
        %2865 = vmatprep.subr.mxu0 0.0
        %2866 = vmatpush1.msra.mxu0 0.0
        %2867 = vmatprep.subr.mxu0 0.0
        %2868 = vmatpush1.msra.mxu0 0.0
        %2869 = vmatprep.subr.mxu0 0.0
        %2870 = vmatpush1.msra.mxu0 0.0
        %2871 = vmatprep.subr.mxu0 0.0
        %2872 = vmatpush1.msra.mxu0 0.0
        %2873 = vmatprep.subr.mxu0 0.0
        %2874 = vmatpush1.msra.mxu0 0.0
        %2875 = vmatprep.subr.mxu0 0.0
        %2876 = vmatpush1.msra.mxu0 0.0
        %2877 = vmatprep.subr.mxu0 0.0
        %2878 = vmatpush1.msra.mxu0 0.0
        %2879 = vmatprep.subr.mxu0 0.0
        %2880 = vmatpush1.msra.mxu0 0.0
        %2881 = vmatprep.subr.mxu0 0.0
        %2882 = vmatpush1.msra.mxu0 0.0
        %2883 = vmatprep.subr.mxu0 0.0
        %2884 = vmatpush1.msra.mxu0 0.0
        %2885 = vmatprep.subr.mxu0 0.0
        %2886 = vmatpush1.msra.mxu0 0.0
        %2887 = vmatprep.subr.mxu0 0.0
        %2888 = vmatpush1.msra.mxu0 0.0
        %2889 = vmatprep.subr.mxu0 0.0
        %2890 = vmatpush1.msra.mxu0 0.0
        %2891 = vmatprep.subr.mxu0 0.0
        %2892 = vmatpush1.msra.mxu0 0.0
        %2893 = vmatprep.subr.mxu0 0.0
        %2894 = vmatpush1.msra.mxu0 0.0
        %2895 = vmatprep.subr.mxu0 0.0
        %2896 = vmatpush1.msra.mxu0 0.0
        %2897 = vmatprep.mubr.f32.mxu0 0.0
        %2898 = vmatmul.mubr.f32.gmra.mrb[0].mxu0 %v2828
        %v2899 = vpop.f32.mrb[0].mxu0
        %v2900 = vadd.f32 %v2826, %v2899
        %v2901 = vpop.f32.mrb[0].mxu0
        %2902 = vmatprep.mubr.f32.mxu0 0.0
        %2903 = vmatmul.mubr.f32.gmra.mrb[0].mxu0 %v2831
        %v2904 = vpop.f32.mrb[0].mxu0
        %v2905 = vadd.f32 %v2826, %v2904
        %v2906 = vpop.f32.mrb[0].mxu0
        %2907 = vdwg.mxu0
        %v2908 = vlaneseq
        %v2909 = vshrl.u32 %v2908, 7
        %v2910 = vsub.s32 2, %v2909
        %v2911 = vrot.slane %v2733, %v2910
        %2912 = vmatprep.subr.mxu0 0.0
        %2913 = vmatpush1.msra.mxu0 %v2725
        %2914 = vmatprep.subr.mxu0 0.0
        %2915 = vmatpush1.msra.mxu0 %v2726
        %2916 = vmatprep.subr.mxu0 0.0
        %2917 = vmatpush1.msra.mxu0 %v2727
        %2918 = vmatprep.subr.mxu0 0.0
        %2919 = vmatpush1.msra.mxu0 %v2728
        %2920 = vmatprep.subr.mxu0 0.0
        %2921 = vmatpush1.msra.mxu0 0.0
        %2922 = vmatprep.subr.mxu0 0.0
        %2923 = vmatpush1.msra.mxu0 0.0
        %2924 = vmatprep.subr.mxu0 0.0
        %2925 = vmatpush1.msra.mxu0 0.0
        %2926 = vmatprep.subr.mxu0 0.0
        %2927 = vmatpush1.msra.mxu0 0.0
        %2928 = vmatprep.subr.mxu0 0.0
        %2929 = vmatpush1.msra.mxu0 0.0
        %2930 = vmatprep.subr.mxu0 0.0
        %2931 = vmatpush1.msra.mxu0 0.0
        %2932 = vmatprep.subr.mxu0 0.0
        %2933 = vmatpush1.msra.mxu0 0.0
        %2934 = vmatprep.subr.mxu0 0.0
        %2935 = vmatpush1.msra.mxu0 0.0
        %2936 = vmatprep.subr.mxu0 0.0
        %2937 = vmatpush1.msra.mxu0 0.0
        %2938 = vmatprep.subr.mxu0 0.0
        %2939 = vmatpush1.msra.mxu0 0.0
        %2940 = vmatprep.subr.mxu0 0.0
        %2941 = vmatpush1.msra.mxu0 0.0
        %2942 = vmatprep.subr.mxu0 0.0
        %2943 = vmatpush1.msra.mxu0 0.0
        %2944 = vmatprep.subr.mxu0 0.0
        %2945 = vmatpush1.msra.mxu0 0.0
        %2946 = vmatprep.subr.mxu0 0.0
        %2947 = vmatpush1.msra.mxu0 0.0
        %2948 = vmatprep.subr.mxu0 0.0
        %2949 = vmatpush1.msra.mxu0 0.0
        %2950 = vmatprep.subr.mxu0 0.0
        %2951 = vmatpush1.msra.mxu0 0.0
        %2952 = vmatprep.subr.mxu0 0.0
        %2953 = vmatpush1.msra.mxu0 0.0
        %2954 = vmatprep.subr.mxu0 0.0
        %2955 = vmatpush1.msra.mxu0 0.0
        %2956 = vmatprep.subr.mxu0 0.0
        %2957 = vmatpush1.msra.mxu0 0.0
        %2958 = vmatprep.subr.mxu0 0.0
        %2959 = vmatpush1.msra.mxu0 0.0
        %2960 = vmatprep.subr.mxu0 0.0
        %2961 = vmatpush1.msra.mxu0 0.0
        %2962 = vmatprep.subr.mxu0 0.0
        %2963 = vmatpush1.msra.mxu0 0.0
        %2964 = vmatprep.subr.mxu0 0.0
        %2965 = vmatpush1.msra.mxu0 0.0
        %2966 = vmatprep.subr.mxu0 0.0
        %2967 = vmatpush1.msra.mxu0 0.0
        %2968 = vmatprep.subr.mxu0 0.0
        %2969 = vmatpush1.msra.mxu0 0.0
        %2970 = vmatprep.subr.mxu0 0.0
        %2971 = vmatpush1.msra.mxu0 0.0
        %2972 = vmatprep.subr.mxu0 0.0
        %2973 = vmatpush1.msra.mxu0 0.0
        %2974 = vmatprep.subr.mxu0 0.0
        %2975 = vmatpush1.msra.mxu0 0.0
        %2976 = vmatprep.mubr.f32.mxu0 0.0
        %2977 = vmatmul.mubr.f32.gmra.mrb[0].mxu0 %v2828
        %v2978 = vpop.f32.mrb[0].mxu0
        %v2979 = vadd.f32 %v2911, %v2978
        %v2980 = vpop.f32.mrb[0].mxu0
        %2981 = vmatprep.mubr.f32.mxu0 0.0
        %2982 = vmatmul.mubr.f32.gmra.mrb[0].mxu0 %v2831
        %v2983 = vpop.f32.mrb[0].mxu0
        %v2984 = vadd.f32 %v2911, %v2983
        %v2985 = vpop.f32.mrb[0].mxu0
        %2986 = vdwg.mxu0
        %v2988 = vsel %vm1002, %v2805, 0
        %v2991 = vsel %vm1002, %v2810, 0
        %v2994 = vsel %vm1002, %v2900, 0
        %2996 = vmatprep.subr.mxu0 0.0
        %2997 = vmatpush1.xpose.msra.mxu0 %v2994
        %2998 = vmatprep.subr.mxu0 0.0
        %2999 = vmatpush1.xpose.msra.mxu0 0.0
        %3000 = vmatprep.subr.mxu0 0.0
        %3001 = vmatpush1.xpose.msra.mxu0 0.0
        %3002 = vmatprep.subr.mxu0 0.0
        %3003 = vmatpush1.xpose.msra.mxu0 0.0
        %3004 = vmatprep.subr.mxu0 0.0
        %3005 = vmatpush1.xpose.msra.mxu0 0.0
        %3006 = vmatprep.subr.mxu0 0.0
        %3007 = vmatpush1.xpose.msra.mxu0 0.0
        %3008 = vmatprep.subr.mxu0 0.0
        %3009 = vmatpush1.xpose.msra.mxu0 0.0
        %3010 = vmatprep.subr.mxu0 0.0
        %3011 = vmatpush1.xpose.msra.mxu0 0.0
        %3012 = vmatprep.subr.mxu0 0.0
        %3013 = vmatpush1.xpose.msra.mxu0 0.0
        %3014 = vmatprep.subr.mxu0 0.0
        %3015 = vmatpush1.xpose.msra.mxu0 0.0
        %3016 = vmatprep.subr.mxu0 0.0
        %3017 = vmatpush1.xpose.msra.mxu0 0.0
        %3018 = vmatprep.subr.mxu0 0.0
        %3019 = vmatpush1.xpose.msra.mxu0 0.0
        %3020 = vmatprep.subr.mxu0 0.0
        %3021 = vmatpush1.xpose.msra.mxu0 0.0
        %3022 = vmatprep.subr.mxu0 0.0
        %3023 = vmatpush1.xpose.msra.mxu0 0.0
        %3024 = vmatprep.subr.mxu0 0.0
        %3025 = vmatpush1.xpose.msra.mxu0 0.0
        %3026 = vmatprep.subr.mxu0 0.0
        %3027 = vmatpush1.xpose.msra.mxu0 0.0
        %3028 = vmatprep.subr.mxu0 0.0
        %3029 = vmatpush1.xpose.msra.mxu0 0.0
        %3030 = vmatprep.subr.mxu0 0.0
        %3031 = vmatpush1.xpose.msra.mxu0 0.0
        %3032 = vmatprep.subr.mxu0 0.0
        %3033 = vmatpush1.xpose.msra.mxu0 0.0
        %3034 = vmatprep.subr.mxu0 0.0
        %3035 = vmatpush1.xpose.msra.mxu0 0.0
        %3036 = vmatprep.subr.mxu0 0.0
        %3037 = vmatpush1.xpose.msra.mxu0 0.0
        %3038 = vmatprep.subr.mxu0 0.0
        %3039 = vmatpush1.xpose.msra.mxu0 0.0
        %3040 = vmatprep.subr.mxu0 0.0
        %3041 = vmatpush1.xpose.msra.mxu0 0.0
        %3042 = vmatprep.subr.mxu0 0.0
        %3043 = vmatpush1.xpose.msra.mxu0 0.0
        %3044 = vmatprep.subr.mxu0 0.0
        %3045 = vmatpush1.xpose.msra.mxu0 0.0
        %3046 = vmatprep.subr.mxu0 0.0
        %3047 = vmatpush1.xpose.msra.mxu0 0.0
        %3048 = vmatprep.subr.mxu0 0.0
        %3049 = vmatpush1.xpose.msra.mxu0 0.0
        %3050 = vmatprep.subr.mxu0 0.0
        %3051 = vmatpush1.xpose.msra.mxu0 0.0
        %3052 = vmatprep.subr.mxu0 0.0
        %3053 = vmatpush1.xpose.msra.mxu0 0.0
        %3054 = vmatprep.subr.mxu0 0.0
        %3055 = vmatpush1.xpose.msra.mxu0 0.0
        %3056 = vmatprep.subr.mxu0 0.0
        %3057 = vmatpush1.xpose.msra.mxu0 0.0
        %3058 = vmatprep.subr.mxu0 0.0
        %3059 = vmatpush1.xpose.msra.mxu0 0.0
        %3060 = vmatprep.mubr.f32.mxu0 0.0
        %3061 = vmatmul.mubr.f32.gmra.mrb[0].mxu0 %v2988
        %v3062 = vpop.f32.mrb[0].mxu0
        %v3063 = vadd.f32 0.0, %v3062
        %v3064 = vpop.f32.mrb[0].mxu0
        %3065 = vmatprep.mubr.f32.mxu0 0.0
        %3066 = vmatmul.mubr.f32.gmra.mrb[0].mxu0 %v2991
        %v3067 = vpop.f32.mrb[0].mxu0
        %v3068 = vadd.f32 0.0, %v3067
        %v3069 = vpop.f32.mrb[0].mxu0
        %3070 = vdwg.mxu0
        %v3072 = vsel %vm1002, %v2815, 0
        %v3075 = vsel %vm1002, %v2820, 0
        %v3078 = vsel %vm1002, %v2905, 0
        %3080 = vmatprep.subr.mxu0 0.0
        %3081 = vmatpush1.xpose.msra.mxu0 %v3078
        %3082 = vmatprep.subr.mxu0 0.0
        %3083 = vmatpush1.xpose.msra.mxu0 0.0
        %3084 = vmatprep.subr.mxu0 0.0
        %3085 = vmatpush1.xpose.msra.mxu0 0.0
        %3086 = vmatprep.subr.mxu0 0.0
        %3087 = vmatpush1.xpose.msra.mxu0 0.0
        %3088 = vmatprep.subr.mxu0 0.0
        %3089 = vmatpush1.xpose.msra.mxu0 0.0
        %3090 = vmatprep.subr.mxu0 0.0
        %3091 = vmatpush1.xpose.msra.mxu0 0.0
        %3092 = vmatprep.subr.mxu0 0.0
        %3093 = vmatpush1.xpose.msra.mxu0 0.0
        %3094 = vmatprep.subr.mxu0 0.0
        %3095 = vmatpush1.xpose.msra.mxu0 0.0
        %3096 = vmatprep.subr.mxu0 0.0
        %3097 = vmatpush1.xpose.msra.mxu0 0.0
        %3098 = vmatprep.subr.mxu0 0.0
        %3099 = vmatpush1.xpose.msra.mxu0 0.0
        %3100 = vmatprep.subr.mxu0 0.0
        %3101 = vmatpush1.xpose.msra.mxu0 0.0
        %3102 = vmatprep.subr.mxu0 0.0
        %3103 = vmatpush1.xpose.msra.mxu0 0.0
        %3104 = vmatprep.subr.mxu0 0.0
        %3105 = vmatpush1.xpose.msra.mxu0 0.0
        %3106 = vmatprep.subr.mxu0 0.0
        %3107 = vmatpush1.xpose.msra.mxu0 0.0
        %3108 = vmatprep.subr.mxu0 0.0
        %3109 = vmatpush1.xpose.msra.mxu0 0.0
        %3110 = vmatprep.subr.mxu0 0.0
        %3111 = vmatpush1.xpose.msra.mxu0 0.0
        %3112 = vmatprep.subr.mxu0 0.0
        %3113 = vmatpush1.xpose.msra.mxu0 0.0
        %3114 = vmatprep.subr.mxu0 0.0
        %3115 = vmatpush1.xpose.msra.mxu0 0.0
        %3116 = vmatprep.subr.mxu0 0.0
        %3117 = vmatpush1.xpose.msra.mxu0 0.0
        %3118 = vmatprep.subr.mxu0 0.0
        %3119 = vmatpush1.xpose.msra.mxu0 0.0
        %3120 = vmatprep.subr.mxu0 0.0
        %3121 = vmatpush1.xpose.msra.mxu0 0.0
        %3122 = vmatprep.subr.mxu0 0.0
        %3123 = vmatpush1.xpose.msra.mxu0 0.0
        %3124 = vmatprep.subr.mxu0 0.0
        %3125 = vmatpush1.xpose.msra.mxu0 0.0
        %3126 = vmatprep.subr.mxu0 0.0
        %3127 = vmatpush1.xpose.msra.mxu0 0.0
        %3128 = vmatprep.subr.mxu0 0.0
        %3129 = vmatpush1.xpose.msra.mxu0 0.0
        %3130 = vmatprep.subr.mxu0 0.0
        %3131 = vmatpush1.xpose.msra.mxu0 0.0
        %3132 = vmatprep.subr.mxu0 0.0
        %3133 = vmatpush1.xpose.msra.mxu0 0.0
        %3134 = vmatprep.subr.mxu0 0.0
        %3135 = vmatpush1.xpose.msra.mxu0 0.0
        %3136 = vmatprep.subr.mxu0 0.0
        %3137 = vmatpush1.xpose.msra.mxu0 0.0
        %3138 = vmatprep.subr.mxu0 0.0
        %3139 = vmatpush1.xpose.msra.mxu0 0.0
        %3140 = vmatprep.subr.mxu0 0.0
        %3141 = vmatpush1.xpose.msra.mxu0 0.0
        %3142 = vmatprep.subr.mxu0 0.0
        %3143 = vmatpush1.xpose.msra.mxu0 0.0
        %3144 = vmatprep.mubr.f32.mxu0 0.0
        %3145 = vmatmul.mubr.f32.gmra.mrb[0].mxu0 %v3072
        %v3146 = vpop.f32.mrb[0].mxu0
        %v3147 = vadd.f32 0.0, %v3146
        %v3148 = vpop.f32.mrb[0].mxu0
        %3149 = vmatprep.mubr.f32.mxu0 0.0
        %3150 = vmatmul.mubr.f32.gmra.mrb[0].mxu0 %v3075
        %v3151 = vpop.f32.mrb[0].mxu0
        %v3152 = vadd.f32 0.0, %v3151
        %v3153 = vpop.f32.mrb[0].mxu0
        %3154 = vdwg.mxu0
        %v3155 = vmul.f32 %v3063, 0.35355338
        %v3156 = vmul.f32 %v3068, 0.35355338
        %v3157 = vmul.f32 %v3147, 0.35355338
        %v3158 = vmul.f32 %v3152, 0.35355338
        %v3159 = vsel %vm1002, %v3155, -inf
        %3160 = vmax.xlane.f32.xlu0 %v3159
        %v3161 = vpop.xlane.xlu0 %3160
        %v3162 = vsel %vm1002, %v3156, -inf
        %3163 = vmax.xlane.f32.xlu0 %v3162
        %v3164 = vpop.xlane.xlu0 %3163
        %v3165 = vsel %vm1002, %v3157, -inf
        %3166 = vmax.xlane.f32.xlu0 %v3165
        %v3167 = vpop.xlane.xlu0 %3166
        %v3168 = vsel %vm1002, %v3158, -inf
        %3169 = vmax.xlane.f32.xlu0 %v3168
        %v3170 = vpop.xlane.xlu0 %3169
        %v3171 = vsub.f32 %v3155, %v3161
        %v3172 = vsub.f32 %v3156, %v3164
        %v3173 = vsub.f32 %v3157, %v3167
        %v3174 = vsub.f32 %v3158, %v3170
        %v3175 = vmul.f32 %v3171, 1.442695
        %v3176 = vpow.pop %v3175
        %v3177 = vmul.f32 %v3172, 1.442695
        %v3178 = vpow.pop %v3177
        %v3179 = vmul.f32 %v3173, 1.442695
        %v3180 = vpow.pop %v3179
        %v3181 = vmul.f32 %v3174, 1.442695
        %v3182 = vpow.pop %v3181
        %v3183 = vsel %vm1002, %v3176, 0.0
        %3184 = vadd.xlane.f32.xlu0 %v3183
        %v3185 = vpop.xlane.xlu0 %3184
        %v3186 = vsel %vm1002, %v3178, 0.0
        %3187 = vadd.xlane.f32.xlu0 %v3186
        %v3188 = vpop.xlane.xlu0 %3187
        %v3189 = vsel %vm1002, %v3180, 0.0
        %3190 = vadd.xlane.f32.xlu0 %v3189
        %v3191 = vpop.xlane.xlu0 %3190
        %v3192 = vsel %vm1002, %v3182, 0.0
        %3193 = vadd.xlane.f32.xlu0 %v3192
        %v3194 = vpop.xlane.xlu0 %3193
        %v3195 = vrcp.pop %v3185
        %v3196 = vrcp.pop %v3188
        %v3197 = vrcp.pop %v3191
        %v3198 = vrcp.pop %v3194
        %v3199 = vmul.f32 %v3176, %v3195
        %v3200 = vmul.f32 %v3178, %v3196
        %v3201 = vmul.f32 %v3180, %v3197
        %v3202 = vmul.f32 %v3182, %v3198
        %v3204 = vsel %vm1002, %v3199, 0
        %v3207 = vsel %vm1002, %v3200, 0
        %3209 = vmatprep.subr.mxu0 0.0
        %3210 = vmatpush1.msra.mxu0 %v2979
        %3211 = vmatprep.subr.mxu0 0.0
        %3212 = vmatpush1.msra.mxu0 0.0
        %3213 = vmatprep.subr.mxu0 0.0
        %3214 = vmatpush1.msra.mxu0 0.0
        %3215 = vmatprep.subr.mxu0 0.0
        %3216 = vmatpush1.msra.mxu0 0.0
        %3217 = vmatprep.subr.mxu0 0.0
        %3218 = vmatpush1.msra.mxu0 0.0
        %3219 = vmatprep.subr.mxu0 0.0
        %3220 = vmatpush1.msra.mxu0 0.0
        %3221 = vmatprep.subr.mxu0 0.0
        %3222 = vmatpush1.msra.mxu0 0.0
        %3223 = vmatprep.subr.mxu0 0.0
        %3224 = vmatpush1.msra.mxu0 0.0
        %3225 = vmatprep.subr.mxu0 0.0
        %3226 = vmatpush1.msra.mxu0 0.0
        %3227 = vmatprep.subr.mxu0 0.0
        %3228 = vmatpush1.msra.mxu0 0.0
        %3229 = vmatprep.subr.mxu0 0.0
        %3230 = vmatpush1.msra.mxu0 0.0
        %3231 = vmatprep.subr.mxu0 0.0
        %3232 = vmatpush1.msra.mxu0 0.0
        %3233 = vmatprep.subr.mxu0 0.0
        %3234 = vmatpush1.msra.mxu0 0.0
        %3235 = vmatprep.subr.mxu0 0.0
        %3236 = vmatpush1.msra.mxu0 0.0
        %3237 = vmatprep.subr.mxu0 0.0
        %3238 = vmatpush1.msra.mxu0 0.0
        %3239 = vmatprep.subr.mxu0 0.0
        %3240 = vmatpush1.msra.mxu0 0.0
        %3241 = vmatprep.subr.mxu0 0.0
        %3242 = vmatpush1.msra.mxu0 0.0
        %3243 = vmatprep.subr.mxu0 0.0
        %3244 = vmatpush1.msra.mxu0 0.0
        %3245 = vmatprep.subr.mxu0 0.0
        %3246 = vmatpush1.msra.mxu0 0.0
        %3247 = vmatprep.subr.mxu0 0.0
        %3248 = vmatpush1.msra.mxu0 0.0
        %3249 = vmatprep.subr.mxu0 0.0
        %3250 = vmatpush1.msra.mxu0 0.0
        %3251 = vmatprep.subr.mxu0 0.0
        %3252 = vmatpush1.msra.mxu0 0.0
        %3253 = vmatprep.subr.mxu0 0.0
        %3254 = vmatpush1.msra.mxu0 0.0
        %3255 = vmatprep.subr.mxu0 0.0
        %3256 = vmatpush1.msra.mxu0 0.0
        %3257 = vmatprep.subr.mxu0 0.0
        %3258 = vmatpush1.msra.mxu0 0.0
        %3259 = vmatprep.subr.mxu0 0.0
        %3260 = vmatpush1.msra.mxu0 0.0
        %3261 = vmatprep.subr.mxu0 0.0
        %3262 = vmatpush1.msra.mxu0 0.0
        %3263 = vmatprep.subr.mxu0 0.0
        %3264 = vmatpush1.msra.mxu0 0.0
        %3265 = vmatprep.subr.mxu0 0.0
        %3266 = vmatpush1.msra.mxu0 0.0
        %3267 = vmatprep.subr.mxu0 0.0
        %3268 = vmatpush1.msra.mxu0 0.0
        %3269 = vmatprep.subr.mxu0 0.0
        %3270 = vmatpush1.msra.mxu0 0.0
        %3271 = vmatprep.subr.mxu0 0.0
        %3272 = vmatpush1.msra.mxu0 0.0
        %3273 = vmatprep.mubr.f32.mxu0 0.0
        %3274 = vmatmul.mubr.f32.gmra.mrb[0].mxu0 %v3204
        %v3275 = vpop.f32.mrb[0].mxu0
        %v3276 = vadd.f32 0.0, %v3275
        %v3277 = vpop.f32.mrb[0].mxu0
        %3278 = vmatprep.mubr.f32.mxu0 0.0
        %3279 = vmatmul.mubr.f32.gmra.mrb[0].mxu0 %v3207
        %v3280 = vpop.f32.mrb[0].mxu0
        %v3281 = vadd.f32 0.0, %v3280
        %v3282 = vpop.f32.mrb[0].mxu0
        %3283 = vdwg.mxu0
        %v3285 = vsel %vm1002, %v3201, 0
        %v3288 = vsel %vm1002, %v3202, 0
        %3290 = vmatprep.subr.mxu0 0.0
        %3291 = vmatpush1.msra.mxu0 %v2984
        %3292 = vmatprep.subr.mxu0 0.0
        %3293 = vmatpush1.msra.mxu0 0.0
        %3294 = vmatprep.subr.mxu0 0.0
        %3295 = vmatpush1.msra.mxu0 0.0
        %3296 = vmatprep.subr.mxu0 0.0
        %3297 = vmatpush1.msra.mxu0 0.0
        %3298 = vmatprep.subr.mxu0 0.0
        %3299 = vmatpush1.msra.mxu0 0.0
        %3300 = vmatprep.subr.mxu0 0.0
        %3301 = vmatpush1.msra.mxu0 0.0
        %3302 = vmatprep.subr.mxu0 0.0
        %3303 = vmatpush1.msra.mxu0 0.0
        %3304 = vmatprep.subr.mxu0 0.0
        %3305 = vmatpush1.msra.mxu0 0.0
        %3306 = vmatprep.subr.mxu0 0.0
        %3307 = vmatpush1.msra.mxu0 0.0
        %3308 = vmatprep.subr.mxu0 0.0
        %3309 = vmatpush1.msra.mxu0 0.0
        %3310 = vmatprep.subr.mxu0 0.0
        %3311 = vmatpush1.msra.mxu0 0.0
        %3312 = vmatprep.subr.mxu0 0.0
        %3313 = vmatpush1.msra.mxu0 0.0
        %3314 = vmatprep.subr.mxu0 0.0
        %3315 = vmatpush1.msra.mxu0 0.0
        %3316 = vmatprep.subr.mxu0 0.0
        %3317 = vmatpush1.msra.mxu0 0.0
        %3318 = vmatprep.subr.mxu0 0.0
        %3319 = vmatpush1.msra.mxu0 0.0
        %3320 = vmatprep.subr.mxu0 0.0
        %3321 = vmatpush1.msra.mxu0 0.0
        %3322 = vmatprep.subr.mxu0 0.0
        %3323 = vmatpush1.msra.mxu0 0.0
        %3324 = vmatprep.subr.mxu0 0.0
        %3325 = vmatpush1.msra.mxu0 0.0
        %3326 = vmatprep.subr.mxu0 0.0
        %3327 = vmatpush1.msra.mxu0 0.0
        %3328 = vmatprep.subr.mxu0 0.0
        %3329 = vmatpush1.msra.mxu0 0.0
        %3330 = vmatprep.subr.mxu0 0.0
        %3331 = vmatpush1.msra.mxu0 0.0
        %3332 = vmatprep.subr.mxu0 0.0
        %3333 = vmatpush1.msra.mxu0 0.0
        %3334 = vmatprep.subr.mxu0 0.0
        %3335 = vmatpush1.msra.mxu0 0.0
        %3336 = vmatprep.subr.mxu0 0.0
        %3337 = vmatpush1.msra.mxu0 0.0
        %3338 = vmatprep.subr.mxu0 0.0
        %3339 = vmatpush1.msra.mxu0 0.0
        %3340 = vmatprep.subr.mxu0 0.0
        %3341 = vmatpush1.msra.mxu0 0.0
        %3342 = vmatprep.subr.mxu0 0.0
        %3343 = vmatpush1.msra.mxu0 0.0
        %3344 = vmatprep.subr.mxu0 0.0
        %3345 = vmatpush1.msra.mxu0 0.0
        %3346 = vmatprep.subr.mxu0 0.0
        %3347 = vmatpush1.msra.mxu0 0.0
        %3348 = vmatprep.subr.mxu0 0.0
        %3349 = vmatpush1.msra.mxu0 0.0
        %3350 = vmatprep.subr.mxu0 0.0
        %3351 = vmatpush1.msra.mxu0 0.0
        %3352 = vmatprep.subr.mxu0 0.0
        %3353 = vmatpush1.msra.mxu0 0.0
        %3354 = vmatprep.mubr.f32.mxu0 0.0
        %3355 = vmatmul.mubr.f32.gmra.mrb[0].mxu0 %v3285
        %v3356 = vpop.f32.mrb[0].mxu0
        %v3357 = vadd.f32 0.0, %v3356
        %v3358 = vpop.f32.mrb[0].mxu0
        %3359 = vmatprep.mubr.f32.mxu0 0.0
        %3360 = vmatmul.mubr.f32.gmra.mrb[0].mxu0 %v3288
        %v3361 = vpop.f32.mrb[0].mxu0
        %v3362 = vadd.f32 0.0, %v3361
        %v3363 = vpop.f32.mrb[0].mxu0
        %3364 = vdwg.mxu0
        %3365 = vrot.lane.b32.xlu0 %v2805, 120
        %v3366 = vpop.permute.xlu0 %3365
        %3367 = vrot.lane.b32.xlu0 %v2810, 120
        %v3368 = vpop.permute.xlu0 %3367
        %3369 = vrot.lane.b32.xlu0 %v2900, 120
        %v3370 = vpop.permute.xlu0 %3369
        %v3371 = vsel %vm1002, %v3366, 0
        %v3373 = vsel %vm1002, %v3368, 0
        %v3375 = vsel %vm1002, %v3370, 0
        %3377 = vmatprep.subr.mxu0 0.0
        %3378 = vmatpush1.xpose.msra.mxu0 %v3375
        %3379 = vmatprep.subr.mxu0 0.0
        %3380 = vmatpush1.xpose.msra.mxu0 0.0
        %3381 = vmatprep.subr.mxu0 0.0
        %3382 = vmatpush1.xpose.msra.mxu0 0.0
        %3383 = vmatprep.subr.mxu0 0.0
        %3384 = vmatpush1.xpose.msra.mxu0 0.0
        %3385 = vmatprep.subr.mxu0 0.0
        %3386 = vmatpush1.xpose.msra.mxu0 0.0
        %3387 = vmatprep.subr.mxu0 0.0
        %3388 = vmatpush1.xpose.msra.mxu0 0.0
        %3389 = vmatprep.subr.mxu0 0.0
        %3390 = vmatpush1.xpose.msra.mxu0 0.0
        %3391 = vmatprep.subr.mxu0 0.0
        %3392 = vmatpush1.xpose.msra.mxu0 0.0
        %3393 = vmatprep.subr.mxu0 0.0
        %3394 = vmatpush1.xpose.msra.mxu0 0.0
        %3395 = vmatprep.subr.mxu0 0.0
        %3396 = vmatpush1.xpose.msra.mxu0 0.0
        %3397 = vmatprep.subr.mxu0 0.0
        %3398 = vmatpush1.xpose.msra.mxu0 0.0
        %3399 = vmatprep.subr.mxu0 0.0
        %3400 = vmatpush1.xpose.msra.mxu0 0.0
        %3401 = vmatprep.subr.mxu0 0.0
        %3402 = vmatpush1.xpose.msra.mxu0 0.0
        %3403 = vmatprep.subr.mxu0 0.0
        %3404 = vmatpush1.xpose.msra.mxu0 0.0
        %3405 = vmatprep.subr.mxu0 0.0
        %3406 = vmatpush1.xpose.msra.mxu0 0.0
        %3407 = vmatprep.subr.mxu0 0.0
        %3408 = vmatpush1.xpose.msra.mxu0 0.0
        %3409 = vmatprep.subr.mxu0 0.0
        %3410 = vmatpush1.xpose.msra.mxu0 0.0
        %3411 = vmatprep.subr.mxu0 0.0
        %3412 = vmatpush1.xpose.msra.mxu0 0.0
        %3413 = vmatprep.subr.mxu0 0.0
        %3414 = vmatpush1.xpose.msra.mxu0 0.0
        %3415 = vmatprep.subr.mxu0 0.0
        %3416 = vmatpush1.xpose.msra.mxu0 0.0
        %3417 = vmatprep.subr.mxu0 0.0
        %3418 = vmatpush1.xpose.msra.mxu0 0.0
        %3419 = vmatprep.subr.mxu0 0.0
        %3420 = vmatpush1.xpose.msra.mxu0 0.0
        %3421 = vmatprep.subr.mxu0 0.0
        %3422 = vmatpush1.xpose.msra.mxu0 0.0
        %3423 = vmatprep.subr.mxu0 0.0
        %3424 = vmatpush1.xpose.msra.mxu0 0.0
        %3425 = vmatprep.subr.mxu0 0.0
        %3426 = vmatpush1.xpose.msra.mxu0 0.0
        %3427 = vmatprep.subr.mxu0 0.0
        %3428 = vmatpush1.xpose.msra.mxu0 0.0
        %3429 = vmatprep.subr.mxu0 0.0
        %3430 = vmatpush1.xpose.msra.mxu0 0.0
        %3431 = vmatprep.subr.mxu0 0.0
        %3432 = vmatpush1.xpose.msra.mxu0 0.0
        %3433 = vmatprep.subr.mxu0 0.0
        %3434 = vmatpush1.xpose.msra.mxu0 0.0
        %3435 = vmatprep.subr.mxu0 0.0
        %3436 = vmatpush1.xpose.msra.mxu0 0.0
        %3437 = vmatprep.subr.mxu0 0.0
        %3438 = vmatpush1.xpose.msra.mxu0 0.0
        %3439 = vmatprep.subr.mxu0 0.0
        %3440 = vmatpush1.xpose.msra.mxu0 0.0
        %3441 = vmatprep.mubr.f32.mxu0 0.0
        %3442 = vmatmul.mubr.f32.gmra.mrb[0].mxu0 %v3371
        %v3443 = vpop.f32.mrb[0].mxu0
        %v3444 = vadd.f32 0.0, %v3443
        %v3445 = vpop.f32.mrb[0].mxu0
        %3446 = vmatprep.mubr.f32.mxu0 0.0
        %3447 = vmatmul.mubr.f32.gmra.mrb[0].mxu0 %v3373
        %v3448 = vpop.f32.mrb[0].mxu0
        %v3449 = vadd.f32 0.0, %v3448
        %v3450 = vpop.f32.mrb[0].mxu0
        %3451 = vdwg.mxu0
        %3452 = vrot.lane.b32.xlu0 %v2815, 120
        %v3453 = vpop.permute.xlu0 %3452
        %3454 = vrot.lane.b32.xlu0 %v2820, 120
        %v3455 = vpop.permute.xlu0 %3454
        %3456 = vrot.lane.b32.xlu0 %v2905, 120
        %v3457 = vpop.permute.xlu0 %3456
        %v3458 = vsel %vm1002, %v3453, 0
        %v3460 = vsel %vm1002, %v3455, 0
        %v3462 = vsel %vm1002, %v3457, 0
        %3464 = vmatprep.subr.mxu0 0.0
        %3465 = vmatpush1.xpose.msra.mxu0 %v3462
        %3466 = vmatprep.subr.mxu0 0.0
        %3467 = vmatpush1.xpose.msra.mxu0 0.0
        %3468 = vmatprep.subr.mxu0 0.0
        %3469 = vmatpush1.xpose.msra.mxu0 0.0
        %3470 = vmatprep.subr.mxu0 0.0
        %3471 = vmatpush1.xpose.msra.mxu0 0.0
        %3472 = vmatprep.subr.mxu0 0.0
        %3473 = vmatpush1.xpose.msra.mxu0 0.0
        %3474 = vmatprep.subr.mxu0 0.0
        %3475 = vmatpush1.xpose.msra.mxu0 0.0
        %3476 = vmatprep.subr.mxu0 0.0
        %3477 = vmatpush1.xpose.msra.mxu0 0.0
        %3478 = vmatprep.subr.mxu0 0.0
        %3479 = vmatpush1.xpose.msra.mxu0 0.0
        %3480 = vmatprep.subr.mxu0 0.0
        %3481 = vmatpush1.xpose.msra.mxu0 0.0
        %3482 = vmatprep.subr.mxu0 0.0
        %3483 = vmatpush1.xpose.msra.mxu0 0.0
        %3484 = vmatprep.subr.mxu0 0.0
        %3485 = vmatpush1.xpose.msra.mxu0 0.0
        %3486 = vmatprep.subr.mxu0 0.0
        %3487 = vmatpush1.xpose.msra.mxu0 0.0
        %3488 = vmatprep.subr.mxu0 0.0
        %3489 = vmatpush1.xpose.msra.mxu0 0.0
        %3490 = vmatprep.subr.mxu0 0.0
        %3491 = vmatpush1.xpose.msra.mxu0 0.0
        %3492 = vmatprep.subr.mxu0 0.0
        %3493 = vmatpush1.xpose.msra.mxu0 0.0
        %3494 = vmatprep.subr.mxu0 0.0
        %3495 = vmatpush1.xpose.msra.mxu0 0.0
        %3496 = vmatprep.subr.mxu0 0.0
        %3497 = vmatpush1.xpose.msra.mxu0 0.0
        %3498 = vmatprep.subr.mxu0 0.0
        %3499 = vmatpush1.xpose.msra.mxu0 0.0
        %3500 = vmatprep.subr.mxu0 0.0
        %3501 = vmatpush1.xpose.msra.mxu0 0.0
        %3502 = vmatprep.subr.mxu0 0.0
        %3503 = vmatpush1.xpose.msra.mxu0 0.0
        %3504 = vmatprep.subr.mxu0 0.0
        %3505 = vmatpush1.xpose.msra.mxu0 0.0
        %3506 = vmatprep.subr.mxu0 0.0
        %3507 = vmatpush1.xpose.msra.mxu0 0.0
        %3508 = vmatprep.subr.mxu0 0.0
        %3509 = vmatpush1.xpose.msra.mxu0 0.0
        %3510 = vmatprep.subr.mxu0 0.0
        %3511 = vmatpush1.xpose.msra.mxu0 0.0
        %3512 = vmatprep.subr.mxu0 0.0
        %3513 = vmatpush1.xpose.msra.mxu0 0.0
        %3514 = vmatprep.subr.mxu0 0.0
        %3515 = vmatpush1.xpose.msra.mxu0 0.0
        %3516 = vmatprep.subr.mxu0 0.0
        %3517 = vmatpush1.xpose.msra.mxu0 0.0
        %3518 = vmatprep.subr.mxu0 0.0
        %3519 = vmatpush1.xpose.msra.mxu0 0.0
        %3520 = vmatprep.subr.mxu0 0.0
        %3521 = vmatpush1.xpose.msra.mxu0 0.0
        %3522 = vmatprep.subr.mxu0 0.0
        %3523 = vmatpush1.xpose.msra.mxu0 0.0
        %3524 = vmatprep.subr.mxu0 0.0
        %3525 = vmatpush1.xpose.msra.mxu0 0.0
        %3526 = vmatprep.subr.mxu0 0.0
        %3527 = vmatpush1.xpose.msra.mxu0 0.0
        %3528 = vmatprep.mubr.f32.mxu0 0.0
        %3529 = vmatmul.mubr.f32.gmra.mrb[0].mxu0 %v3458
        %v3530 = vpop.f32.mrb[0].mxu0
        %v3531 = vadd.f32 0.0, %v3530
        %v3532 = vpop.f32.mrb[0].mxu0
        %3533 = vmatprep.mubr.f32.mxu0 0.0
        %3534 = vmatmul.mubr.f32.gmra.mrb[0].mxu0 %v3460
        %v3535 = vpop.f32.mrb[0].mxu0
        %v3536 = vadd.f32 0.0, %v3535
        %v3537 = vpop.f32.mrb[0].mxu0
        %3538 = vdwg.mxu0
        %v3539 = vmul.f32 %v3444, 0.35355338
        %v3540 = vmul.f32 %v3449, 0.35355338
        %v3541 = vmul.f32 %v3531, 0.35355338
        %v3542 = vmul.f32 %v3536, 0.35355338
        %v3543 = vsel %vm1002, %v3539, -inf
        %3544 = vmax.xlane.f32.xlu0 %v3543
        %v3545 = vpop.xlane.xlu0 %3544
        %v3546 = vsel %vm1002, %v3540, -inf
        %3547 = vmax.xlane.f32.xlu0 %v3546
        %v3548 = vpop.xlane.xlu0 %3547
        %v3549 = vsel %vm1002, %v3541, -inf
        %3550 = vmax.xlane.f32.xlu0 %v3549
        %v3551 = vpop.xlane.xlu0 %3550
        %v3552 = vsel %vm1002, %v3542, -inf
        %3553 = vmax.xlane.f32.xlu0 %v3552
        %v3554 = vpop.xlane.xlu0 %3553
        %v3555 = vsub.f32 %v3539, %v3545
        %v3556 = vsub.f32 %v3540, %v3548
        %v3557 = vsub.f32 %v3541, %v3551
        %v3558 = vsub.f32 %v3542, %v3554
        %v3559 = vmul.f32 %v3555, 1.442695
        %v3560 = vpow.pop %v3559
        %v3561 = vmul.f32 %v3556, 1.442695
        %v3562 = vpow.pop %v3561
        %v3563 = vmul.f32 %v3557, 1.442695
        %v3564 = vpow.pop %v3563
        %v3565 = vmul.f32 %v3558, 1.442695
        %v3566 = vpow.pop %v3565
        %v3567 = vsel %vm1002, %v3560, 0.0
        %3568 = vadd.xlane.f32.xlu0 %v3567
        %v3569 = vpop.xlane.xlu0 %3568
        %v3570 = vsel %vm1002, %v3562, 0.0
        %3571 = vadd.xlane.f32.xlu0 %v3570
        %v3572 = vpop.xlane.xlu0 %3571
        %v3573 = vsel %vm1002, %v3564, 0.0
        %3574 = vadd.xlane.f32.xlu0 %v3573
        %v3575 = vpop.xlane.xlu0 %3574
        %v3576 = vsel %vm1002, %v3566, 0.0
        %3577 = vadd.xlane.f32.xlu0 %v3576
        %v3578 = vpop.xlane.xlu0 %3577
        %v3579 = vrcp.pop %v3569
        %v3580 = vrcp.pop %v3572
        %v3581 = vrcp.pop %v3575
        %v3582 = vrcp.pop %v3578
        %v3583 = vmul.f32 %v3560, %v3579
        %v3584 = vmul.f32 %v3562, %v3580
        %v3585 = vmul.f32 %v3564, %v3581
        %v3586 = vmul.f32 %v3566, %v3582
        %3588 = vrot.lane.b32.xlu0 %v2979, 120
        %v3589 = vpop.permute.xlu0 %3588
        %v3592 = vsel %vm1002, %v3583, 0
        %v3595 = vsel %vm1002, %v3584, 0
        %3597 = vmatprep.subr.mxu0 0.0
        %3598 = vmatpush1.msra.mxu0 %v3589
        %3599 = vmatprep.subr.mxu0 0.0
        %3600 = vmatpush1.msra.mxu0 0.0
        %3601 = vmatprep.subr.mxu0 0.0
        %3602 = vmatpush1.msra.mxu0 0.0
        %3603 = vmatprep.subr.mxu0 0.0
        %3604 = vmatpush1.msra.mxu0 0.0
        %3605 = vmatprep.subr.mxu0 0.0
        %3606 = vmatpush1.msra.mxu0 0.0
        %3607 = vmatprep.subr.mxu0 0.0
        %3608 = vmatpush1.msra.mxu0 0.0
        %3609 = vmatprep.subr.mxu0 0.0
        %3610 = vmatpush1.msra.mxu0 0.0
        %3611 = vmatprep.subr.mxu0 0.0
        %3612 = vmatpush1.msra.mxu0 0.0
        %3613 = vmatprep.subr.mxu0 0.0
        %3614 = vmatpush1.msra.mxu0 0.0
        %3615 = vmatprep.subr.mxu0 0.0
        %3616 = vmatpush1.msra.mxu0 0.0
        %3617 = vmatprep.subr.mxu0 0.0
        %3618 = vmatpush1.msra.mxu0 0.0
        %3619 = vmatprep.subr.mxu0 0.0
        %3620 = vmatpush1.msra.mxu0 0.0
        %3621 = vmatprep.subr.mxu0 0.0
        %3622 = vmatpush1.msra.mxu0 0.0
        %3623 = vmatprep.subr.mxu0 0.0
        %3624 = vmatpush1.msra.mxu0 0.0
        %3625 = vmatprep.subr.mxu0 0.0
        %3626 = vmatpush1.msra.mxu0 0.0
        %3627 = vmatprep.subr.mxu0 0.0
        %3628 = vmatpush1.msra.mxu0 0.0
        %3629 = vmatprep.subr.mxu0 0.0
        %3630 = vmatpush1.msra.mxu0 0.0
        %3631 = vmatprep.subr.mxu0 0.0
        %3632 = vmatpush1.msra.mxu0 0.0
        %3633 = vmatprep.subr.mxu0 0.0
        %3634 = vmatpush1.msra.mxu0 0.0
        %3635 = vmatprep.subr.mxu0 0.0
        %3636 = vmatpush1.msra.mxu0 0.0
        %3637 = vmatprep.subr.mxu0 0.0
        %3638 = vmatpush1.msra.mxu0 0.0
        %3639 = vmatprep.subr.mxu0 0.0
        %3640 = vmatpush1.msra.mxu0 0.0
        %3641 = vmatprep.subr.mxu0 0.0
        %3642 = vmatpush1.msra.mxu0 0.0
        %3643 = vmatprep.subr.mxu0 0.0
        %3644 = vmatpush1.msra.mxu0 0.0
        %3645 = vmatprep.subr.mxu0 0.0
        %3646 = vmatpush1.msra.mxu0 0.0
        %3647 = vmatprep.subr.mxu0 0.0
        %3648 = vmatpush1.msra.mxu0 0.0
        %3649 = vmatprep.subr.mxu0 0.0
        %3650 = vmatpush1.msra.mxu0 0.0
        %3651 = vmatprep.subr.mxu0 0.0
        %3652 = vmatpush1.msra.mxu0 0.0
        %3653 = vmatprep.subr.mxu0 0.0
        %3654 = vmatpush1.msra.mxu0 0.0
        %3655 = vmatprep.subr.mxu0 0.0
        %3656 = vmatpush1.msra.mxu0 0.0
        %3657 = vmatprep.subr.mxu0 0.0
        %3658 = vmatpush1.msra.mxu0 0.0
        %3659 = vmatprep.subr.mxu0 0.0
        %3660 = vmatpush1.msra.mxu0 0.0
        %3661 = vmatprep.mubr.f32.mxu0 0.0
        %3662 = vmatmul.mubr.f32.gmra.mrb[0].mxu0 %v3592
        %v3663 = vpop.f32.mrb[0].mxu0
        %v3664 = vadd.f32 0.0, %v3663
        %v3665 = vpop.f32.mrb[0].mxu0
        %3666 = vmatprep.mubr.f32.mxu0 0.0
        %3667 = vmatmul.mubr.f32.gmra.mrb[0].mxu0 %v3595
        %v3668 = vpop.f32.mrb[0].mxu0
        %v3669 = vadd.f32 0.0, %v3668
        %v3670 = vpop.f32.mrb[0].mxu0
        %3671 = vdwg.mxu0
        %3673 = vrot.lane.b32.xlu0 %v2984, 120
        %v3674 = vpop.permute.xlu0 %3673
        %v3677 = vsel %vm1002, %v3585, 0
        %v3680 = vsel %vm1002, %v3586, 0
        %3682 = vmatprep.subr.mxu0 0.0
        %3683 = vmatpush1.msra.mxu0 %v3674
        %3684 = vmatprep.subr.mxu0 0.0
        %3685 = vmatpush1.msra.mxu0 0.0
        %3686 = vmatprep.subr.mxu0 0.0
        %3687 = vmatpush1.msra.mxu0 0.0
        %3688 = vmatprep.subr.mxu0 0.0
        %3689 = vmatpush1.msra.mxu0 0.0
        %3690 = vmatprep.subr.mxu0 0.0
        %3691 = vmatpush1.msra.mxu0 0.0
        %3692 = vmatprep.subr.mxu0 0.0
        %3693 = vmatpush1.msra.mxu0 0.0
        %3694 = vmatprep.subr.mxu0 0.0
        %3695 = vmatpush1.msra.mxu0 0.0
        %3696 = vmatprep.subr.mxu0 0.0
        %3697 = vmatpush1.msra.mxu0 0.0
        %3698 = vmatprep.subr.mxu0 0.0
        %3699 = vmatpush1.msra.mxu0 0.0
        %3700 = vmatprep.subr.mxu0 0.0
        %3701 = vmatpush1.msra.mxu0 0.0
        %3702 = vmatprep.subr.mxu0 0.0
        %3703 = vmatpush1.msra.mxu0 0.0
        %3704 = vmatprep.subr.mxu0 0.0
        %3705 = vmatpush1.msra.mxu0 0.0
        %3706 = vmatprep.subr.mxu0 0.0
        %3707 = vmatpush1.msra.mxu0 0.0
        %3708 = vmatprep.subr.mxu0 0.0
        %3709 = vmatpush1.msra.mxu0 0.0
        %3710 = vmatprep.subr.mxu0 0.0
        %3711 = vmatpush1.msra.mxu0 0.0
        %3712 = vmatprep.subr.mxu0 0.0
        %3713 = vmatpush1.msra.mxu0 0.0
        %3714 = vmatprep.subr.mxu0 0.0
        %3715 = vmatpush1.msra.mxu0 0.0
        %3716 = vmatprep.subr.mxu0 0.0
        %3717 = vmatpush1.msra.mxu0 0.0
        %3718 = vmatprep.subr.mxu0 0.0
        %3719 = vmatpush1.msra.mxu0 0.0
        %3720 = vmatprep.subr.mxu0 0.0
        %3721 = vmatpush1.msra.mxu0 0.0
        %3722 = vmatprep.subr.mxu0 0.0
        %3723 = vmatpush1.msra.mxu0 0.0
        %3724 = vmatprep.subr.mxu0 0.0
        %3725 = vmatpush1.msra.mxu0 0.0
        %3726 = vmatprep.subr.mxu0 0.0
        %3727 = vmatpush1.msra.mxu0 0.0
        %3728 = vmatprep.subr.mxu0 0.0
        %3729 = vmatpush1.msra.mxu0 0.0
        %3730 = vmatprep.subr.mxu0 0.0
        %3731 = vmatpush1.msra.mxu0 0.0
        %3732 = vmatprep.subr.mxu0 0.0
        %3733 = vmatpush1.msra.mxu0 0.0
        %3734 = vmatprep.subr.mxu0 0.0
        %3735 = vmatpush1.msra.mxu0 0.0
        %3736 = vmatprep.subr.mxu0 0.0
        %3737 = vmatpush1.msra.mxu0 0.0
        %3738 = vmatprep.subr.mxu0 0.0
        %3739 = vmatpush1.msra.mxu0 0.0
        %3740 = vmatprep.subr.mxu0 0.0
        %3741 = vmatpush1.msra.mxu0 0.0
        %3742 = vmatprep.subr.mxu0 0.0
        %3743 = vmatpush1.msra.mxu0 0.0
        %3744 = vmatprep.subr.mxu0 0.0
        %3745 = vmatpush1.msra.mxu0 0.0
        %3746 = vmatprep.mubr.f32.mxu0 0.0
        %3747 = vmatmul.mubr.f32.gmra.mrb[0].mxu0 %v3677
        %v3748 = vpop.f32.mrb[0].mxu0
        %v3749 = vadd.f32 0.0, %v3748
        %v3750 = vpop.f32.mrb[0].mxu0
        %3751 = vmatprep.mubr.f32.mxu0 0.0
        %3752 = vmatmul.mubr.f32.gmra.mrb[0].mxu0 %v3680
        %v3753 = vpop.f32.mrb[0].mxu0
        %v3754 = vadd.f32 0.0, %v3753
        %v3755 = vpop.f32.mrb[0].mxu0
        %3756 = vdwg.mxu0
        %3757 = vrot.lane.b32.xlu0 %v2805, 112
        %v3758 = vpop.permute.xlu0 %3757
        %3759 = vrot.lane.b32.xlu0 %v2810, 112
        %v3760 = vpop.permute.xlu0 %3759
        %3761 = vrot.lane.b32.xlu0 %v2900, 112
        %v3762 = vpop.permute.xlu0 %3761
        %v3763 = vsel %vm1002, %v3758, 0
        %v3765 = vsel %vm1002, %v3760, 0
        %v3767 = vsel %vm1002, %v3762, 0
        %3769 = vmatprep.subr.mxu0 0.0
        %3770 = vmatpush1.xpose.msra.mxu0 %v3767
        %3771 = vmatprep.subr.mxu0 0.0
        %3772 = vmatpush1.xpose.msra.mxu0 0.0
        %3773 = vmatprep.subr.mxu0 0.0
        %3774 = vmatpush1.xpose.msra.mxu0 0.0
        %3775 = vmatprep.subr.mxu0 0.0
        %3776 = vmatpush1.xpose.msra.mxu0 0.0
        %3777 = vmatprep.subr.mxu0 0.0
        %3778 = vmatpush1.xpose.msra.mxu0 0.0
        %3779 = vmatprep.subr.mxu0 0.0
        %3780 = vmatpush1.xpose.msra.mxu0 0.0
        %3781 = vmatprep.subr.mxu0 0.0
        %3782 = vmatpush1.xpose.msra.mxu0 0.0
        %3783 = vmatprep.subr.mxu0 0.0
        %3784 = vmatpush1.xpose.msra.mxu0 0.0
        %3785 = vmatprep.subr.mxu0 0.0
        %3786 = vmatpush1.xpose.msra.mxu0 0.0
        %3787 = vmatprep.subr.mxu0 0.0
        %3788 = vmatpush1.xpose.msra.mxu0 0.0
        %3789 = vmatprep.subr.mxu0 0.0
        %3790 = vmatpush1.xpose.msra.mxu0 0.0
        %3791 = vmatprep.subr.mxu0 0.0
        %3792 = vmatpush1.xpose.msra.mxu0 0.0
        %3793 = vmatprep.subr.mxu0 0.0
        %3794 = vmatpush1.xpose.msra.mxu0 0.0
        %3795 = vmatprep.subr.mxu0 0.0
        %3796 = vmatpush1.xpose.msra.mxu0 0.0
        %3797 = vmatprep.subr.mxu0 0.0
        %3798 = vmatpush1.xpose.msra.mxu0 0.0
        %3799 = vmatprep.subr.mxu0 0.0
        %3800 = vmatpush1.xpose.msra.mxu0 0.0
        %3801 = vmatprep.subr.mxu0 0.0
        %3802 = vmatpush1.xpose.msra.mxu0 0.0
        %3803 = vmatprep.subr.mxu0 0.0
        %3804 = vmatpush1.xpose.msra.mxu0 0.0
        %3805 = vmatprep.subr.mxu0 0.0
        %3806 = vmatpush1.xpose.msra.mxu0 0.0
        %3807 = vmatprep.subr.mxu0 0.0
        %3808 = vmatpush1.xpose.msra.mxu0 0.0
        %3809 = vmatprep.subr.mxu0 0.0
        %3810 = vmatpush1.xpose.msra.mxu0 0.0
        %3811 = vmatprep.subr.mxu0 0.0
        %3812 = vmatpush1.xpose.msra.mxu0 0.0
        %3813 = vmatprep.subr.mxu0 0.0
        %3814 = vmatpush1.xpose.msra.mxu0 0.0
        %3815 = vmatprep.subr.mxu0 0.0
        %3816 = vmatpush1.xpose.msra.mxu0 0.0
        %3817 = vmatprep.subr.mxu0 0.0
        %3818 = vmatpush1.xpose.msra.mxu0 0.0
        %3819 = vmatprep.subr.mxu0 0.0
        %3820 = vmatpush1.xpose.msra.mxu0 0.0
        %3821 = vmatprep.subr.mxu0 0.0
        %3822 = vmatpush1.xpose.msra.mxu0 0.0
        %3823 = vmatprep.subr.mxu0 0.0
        %3824 = vmatpush1.xpose.msra.mxu0 0.0
        %3825 = vmatprep.subr.mxu0 0.0
        %3826 = vmatpush1.xpose.msra.mxu0 0.0
        %3827 = vmatprep.subr.mxu0 0.0
        %3828 = vmatpush1.xpose.msra.mxu0 0.0
        %3829 = vmatprep.subr.mxu0 0.0
        %3830 = vmatpush1.xpose.msra.mxu0 0.0
        %3831 = vmatprep.subr.mxu0 0.0
        %3832 = vmatpush1.xpose.msra.mxu0 0.0
        %3833 = vmatprep.mubr.f32.mxu0 0.0
        %3834 = vmatmul.mubr.f32.gmra.mrb[0].mxu0 %v3763
        %v3835 = vpop.f32.mrb[0].mxu0
        %v3836 = vadd.f32 0.0, %v3835
        %v3837 = vpop.f32.mrb[0].mxu0
        %3838 = vmatprep.mubr.f32.mxu0 0.0
        %3839 = vmatmul.mubr.f32.gmra.mrb[0].mxu0 %v3765
        %v3840 = vpop.f32.mrb[0].mxu0
        %v3841 = vadd.f32 0.0, %v3840
        %v3842 = vpop.f32.mrb[0].mxu0
        %3843 = vdwg.mxu0
        %3844 = vrot.lane.b32.xlu0 %v2815, 112
        %v3845 = vpop.permute.xlu0 %3844
        %3846 = vrot.lane.b32.xlu0 %v2820, 112
        %v3847 = vpop.permute.xlu0 %3846
        %3848 = vrot.lane.b32.xlu0 %v2905, 112
        %v3849 = vpop.permute.xlu0 %3848
        %v3850 = vsel %vm1002, %v3845, 0
        %v3852 = vsel %vm1002, %v3847, 0
        %v3854 = vsel %vm1002, %v3849, 0
        %3856 = vmatprep.subr.mxu0 0.0
        %3857 = vmatpush1.xpose.msra.mxu0 %v3854
        %3858 = vmatprep.subr.mxu0 0.0
        %3859 = vmatpush1.xpose.msra.mxu0 0.0
        %3860 = vmatprep.subr.mxu0 0.0
        %3861 = vmatpush1.xpose.msra.mxu0 0.0
        %3862 = vmatprep.subr.mxu0 0.0
        %3863 = vmatpush1.xpose.msra.mxu0 0.0
        %3864 = vmatprep.subr.mxu0 0.0
        %3865 = vmatpush1.xpose.msra.mxu0 0.0
        %3866 = vmatprep.subr.mxu0 0.0
        %3867 = vmatpush1.xpose.msra.mxu0 0.0
        %3868 = vmatprep.subr.mxu0 0.0
        %3869 = vmatpush1.xpose.msra.mxu0 0.0
        %3870 = vmatprep.subr.mxu0 0.0
        %3871 = vmatpush1.xpose.msra.mxu0 0.0
        %3872 = vmatprep.subr.mxu0 0.0
        %3873 = vmatpush1.xpose.msra.mxu0 0.0
        %3874 = vmatprep.subr.mxu0 0.0
        %3875 = vmatpush1.xpose.msra.mxu0 0.0
        %3876 = vmatprep.subr.mxu0 0.0
        %3877 = vmatpush1.xpose.msra.mxu0 0.0
        %3878 = vmatprep.subr.mxu0 0.0
        %3879 = vmatpush1.xpose.msra.mxu0 0.0
        %3880 = vmatprep.subr.mxu0 0.0
        %3881 = vmatpush1.xpose.msra.mxu0 0.0
        %3882 = vmatprep.subr.mxu0 0.0
        %3883 = vmatpush1.xpose.msra.mxu0 0.0
        %3884 = vmatprep.subr.mxu0 0.0
        %3885 = vmatpush1.xpose.msra.mxu0 0.0
        %3886 = vmatprep.subr.mxu0 0.0
        %3887 = vmatpush1.xpose.msra.mxu0 0.0
        %3888 = vmatprep.subr.mxu0 0.0
        %3889 = vmatpush1.xpose.msra.mxu0 0.0
        %3890 = vmatprep.subr.mxu0 0.0
        %3891 = vmatpush1.xpose.msra.mxu0 0.0
        %3892 = vmatprep.subr.mxu0 0.0
        %3893 = vmatpush1.xpose.msra.mxu0 0.0
        %3894 = vmatprep.subr.mxu0 0.0
        %3895 = vmatpush1.xpose.msra.mxu0 0.0
        %3896 = vmatprep.subr.mxu0 0.0
        %3897 = vmatpush1.xpose.msra.mxu0 0.0
        %3898 = vmatprep.subr.mxu0 0.0
        %3899 = vmatpush1.xpose.msra.mxu0 0.0
        %3900 = vmatprep.subr.mxu0 0.0
        %3901 = vmatpush1.xpose.msra.mxu0 0.0
        %3902 = vmatprep.subr.mxu0 0.0
        %3903 = vmatpush1.xpose.msra.mxu0 0.0
        %3904 = vmatprep.subr.mxu0 0.0
        %3905 = vmatpush1.xpose.msra.mxu0 0.0
        %3906 = vmatprep.subr.mxu0 0.0
        %3907 = vmatpush1.xpose.msra.mxu0 0.0
        %3908 = vmatprep.subr.mxu0 0.0
        %3909 = vmatpush1.xpose.msra.mxu0 0.0
        %3910 = vmatprep.subr.mxu0 0.0
        %3911 = vmatpush1.xpose.msra.mxu0 0.0
        %3912 = vmatprep.subr.mxu0 0.0
        %3913 = vmatpush1.xpose.msra.mxu0 0.0
        %3914 = vmatprep.subr.mxu0 0.0
        %3915 = vmatpush1.xpose.msra.mxu0 0.0
        %3916 = vmatprep.subr.mxu0 0.0
        %3917 = vmatpush1.xpose.msra.mxu0 0.0
        %3918 = vmatprep.subr.mxu0 0.0
        %3919 = vmatpush1.xpose.msra.mxu0 0.0
        %3920 = vmatprep.mubr.f32.mxu0 0.0
        %3921 = vmatmul.mubr.f32.gmra.mrb[0].mxu0 %v3850
        %v3922 = vpop.f32.mrb[0].mxu0
        %v3923 = vadd.f32 0.0, %v3922
        %v3924 = vpop.f32.mrb[0].mxu0
        %3925 = vmatprep.mubr.f32.mxu0 0.0
        %3926 = vmatmul.mubr.f32.gmra.mrb[0].mxu0 %v3852
        %v3927 = vpop.f32.mrb[0].mxu0
        %v3928 = vadd.f32 0.0, %v3927
        %v3929 = vpop.f32.mrb[0].mxu0
        %3930 = vdwg.mxu0
        %v3931 = vmul.f32 %v3836, 0.35355338
        %v3932 = vmul.f32 %v3841, 0.35355338
        %v3933 = vmul.f32 %v3923, 0.35355338
        %v3934 = vmul.f32 %v3928, 0.35355338
        %v3935 = vsel %vm1002, %v3931, -inf
        %3936 = vmax.xlane.f32.xlu0 %v3935
        %v3937 = vpop.xlane.xlu0 %3936
        %v3938 = vsel %vm1002, %v3932, -inf
        %3939 = vmax.xlane.f32.xlu0 %v3938
        %v3940 = vpop.xlane.xlu0 %3939
        %v3941 = vsel %vm1002, %v3933, -inf
        %3942 = vmax.xlane.f32.xlu0 %v3941
        %v3943 = vpop.xlane.xlu0 %3942
        %v3944 = vsel %vm1002, %v3934, -inf
        %3945 = vmax.xlane.f32.xlu0 %v3944
        %v3946 = vpop.xlane.xlu0 %3945
        %v3947 = vsub.f32 %v3931, %v3937
        %v3948 = vsub.f32 %v3932, %v3940
        %v3949 = vsub.f32 %v3933, %v3943
        %v3950 = vsub.f32 %v3934, %v3946
        %v3951 = vmul.f32 %v3947, 1.442695
        %v3952 = vpow.pop %v3951
        %v3953 = vmul.f32 %v3948, 1.442695
        %v3954 = vpow.pop %v3953
        %v3955 = vmul.f32 %v3949, 1.442695
        %v3956 = vpow.pop %v3955
        %v3957 = vmul.f32 %v3950, 1.442695
        %v3958 = vpow.pop %v3957
        %v3959 = vsel %vm1002, %v3952, 0.0
        %3960 = vadd.xlane.f32.xlu0 %v3959
        %v3961 = vpop.xlane.xlu0 %3960
        %v3962 = vsel %vm1002, %v3954, 0.0
        %3963 = vadd.xlane.f32.xlu0 %v3962
        %v3964 = vpop.xlane.xlu0 %3963
        %v3965 = vsel %vm1002, %v3956, 0.0
        %3966 = vadd.xlane.f32.xlu0 %v3965
        %v3967 = vpop.xlane.xlu0 %3966
        %v3968 = vsel %vm1002, %v3958, 0.0
        %3969 = vadd.xlane.f32.xlu0 %v3968
        %v3970 = vpop.xlane.xlu0 %3969
        %v3971 = vrcp.pop %v3961
        %v3972 = vrcp.pop %v3964
        %v3973 = vrcp.pop %v3967
        %v3974 = vrcp.pop %v3970
        %v3975 = vmul.f32 %v3952, %v3971
        %v3976 = vmul.f32 %v3954, %v3972
        %v3977 = vmul.f32 %v3956, %v3973
        %v3978 = vmul.f32 %v3958, %v3974
        %3979 = vrot.lane.b32.xlu0 %v2979, 112
        %v3980 = vpop.permute.xlu0 %3979
        %v3983 = vsel %vm1002, %v3975, 0
        %v3986 = vsel %vm1002, %v3976, 0
        %3988 = vmatprep.subr.mxu0 0.0
        %3989 = vmatpush1.msra.mxu0 %v3980
        %3990 = vmatprep.subr.mxu0 0.0
        %3991 = vmatpush1.msra.mxu0 0.0
        %3992 = vmatprep.subr.mxu0 0.0
        %3993 = vmatpush1.msra.mxu0 0.0
        %3994 = vmatprep.subr.mxu0 0.0
        %3995 = vmatpush1.msra.mxu0 0.0
        %3996 = vmatprep.subr.mxu0 0.0
        %3997 = vmatpush1.msra.mxu0 0.0
        %3998 = vmatprep.subr.mxu0 0.0
        %3999 = vmatpush1.msra.mxu0 0.0
        %4000 = vmatprep.subr.mxu0 0.0
        %4001 = vmatpush1.msra.mxu0 0.0
        %4002 = vmatprep.subr.mxu0 0.0
        %4003 = vmatpush1.msra.mxu0 0.0
        %4004 = vmatprep.subr.mxu0 0.0
        %4005 = vmatpush1.msra.mxu0 0.0
        %4006 = vmatprep.subr.mxu0 0.0
        %4007 = vmatpush1.msra.mxu0 0.0
        %4008 = vmatprep.subr.mxu0 0.0
        %4009 = vmatpush1.msra.mxu0 0.0
        %4010 = vmatprep.subr.mxu0 0.0
        %4011 = vmatpush1.msra.mxu0 0.0
        %4012 = vmatprep.subr.mxu0 0.0
        %4013 = vmatpush1.msra.mxu0 0.0
        %4014 = vmatprep.subr.mxu0 0.0
        %4015 = vmatpush1.msra.mxu0 0.0
        %4016 = vmatprep.subr.mxu0 0.0
        %4017 = vmatpush1.msra.mxu0 0.0
        %4018 = vmatprep.subr.mxu0 0.0
        %4019 = vmatpush1.msra.mxu0 0.0
        %4020 = vmatprep.subr.mxu0 0.0
        %4021 = vmatpush1.msra.mxu0 0.0
        %4022 = vmatprep.subr.mxu0 0.0
        %4023 = vmatpush1.msra.mxu0 0.0
        %4024 = vmatprep.subr.mxu0 0.0
        %4025 = vmatpush1.msra.mxu0 0.0
        %4026 = vmatprep.subr.mxu0 0.0
        %4027 = vmatpush1.msra.mxu0 0.0
        %4028 = vmatprep.subr.mxu0 0.0
        %4029 = vmatpush1.msra.mxu0 0.0
        %4030 = vmatprep.subr.mxu0 0.0
        %4031 = vmatpush1.msra.mxu0 0.0
        %4032 = vmatprep.subr.mxu0 0.0
        %4033 = vmatpush1.msra.mxu0 0.0
        %4034 = vmatprep.subr.mxu0 0.0
        %4035 = vmatpush1.msra.mxu0 0.0
        %4036 = vmatprep.subr.mxu0 0.0
        %4037 = vmatpush1.msra.mxu0 0.0
        %4038 = vmatprep.subr.mxu0 0.0
        %4039 = vmatpush1.msra.mxu0 0.0
        %4040 = vmatprep.subr.mxu0 0.0
        %4041 = vmatpush1.msra.mxu0 0.0
        %4042 = vmatprep.subr.mxu0 0.0
        %4043 = vmatpush1.msra.mxu0 0.0
        %4044 = vmatprep.subr.mxu0 0.0
        %4045 = vmatpush1.msra.mxu0 0.0
        %4046 = vmatprep.subr.mxu0 0.0
        %4047 = vmatpush1.msra.mxu0 0.0
        %4048 = vmatprep.subr.mxu0 0.0
        %4049 = vmatpush1.msra.mxu0 0.0
        %4050 = vmatprep.subr.mxu0 0.0
        %4051 = vmatpush1.msra.mxu0 0.0
        %4052 = vmatprep.mubr.f32.mxu0 0.0
        %4053 = vmatmul.mubr.f32.gmra.mrb[0].mxu0 %v3983
        %v4054 = vpop.f32.mrb[0].mxu0
        %v4055 = vadd.f32 0.0, %v4054
        %v4056 = vpop.f32.mrb[0].mxu0
        %4057 = vmatprep.mubr.f32.mxu0 0.0
        %4058 = vmatmul.mubr.f32.gmra.mrb[0].mxu0 %v3986
        %v4059 = vpop.f32.mrb[0].mxu0
        %v4060 = vadd.f32 0.0, %v4059
        %v4061 = vpop.f32.mrb[0].mxu0
        %4062 = vdwg.mxu0
        %4063 = vrot.lane.b32.xlu0 %v2984, 112
        %v4064 = vpop.permute.xlu0 %4063
        %v4067 = vsel %vm1002, %v3977, 0
        %v4070 = vsel %vm1002, %v3978, 0
        %4072 = vmatprep.subr.mxu0 0.0
        %4073 = vmatpush1.msra.mxu0 %v4064
        %4074 = vmatprep.subr.mxu0 0.0
        %4075 = vmatpush1.msra.mxu0 0.0
        %4076 = vmatprep.subr.mxu0 0.0
        %4077 = vmatpush1.msra.mxu0 0.0
        %4078 = vmatprep.subr.mxu0 0.0
        %4079 = vmatpush1.msra.mxu0 0.0
        %4080 = vmatprep.subr.mxu0 0.0
        %4081 = vmatpush1.msra.mxu0 0.0
        %4082 = vmatprep.subr.mxu0 0.0
        %4083 = vmatpush1.msra.mxu0 0.0
        %4084 = vmatprep.subr.mxu0 0.0
        %4085 = vmatpush1.msra.mxu0 0.0
        %4086 = vmatprep.subr.mxu0 0.0
        %4087 = vmatpush1.msra.mxu0 0.0
        %4088 = vmatprep.subr.mxu0 0.0
        %4089 = vmatpush1.msra.mxu0 0.0
        %4090 = vmatprep.subr.mxu0 0.0
        %4091 = vmatpush1.msra.mxu0 0.0
        %4092 = vmatprep.subr.mxu0 0.0
        %4093 = vmatpush1.msra.mxu0 0.0
        %4094 = vmatprep.subr.mxu0 0.0
        %4095 = vmatpush1.msra.mxu0 0.0
        %4096 = vmatprep.subr.mxu0 0.0
        %4097 = vmatpush1.msra.mxu0 0.0
        %4098 = vmatprep.subr.mxu0 0.0
        %4099 = vmatpush1.msra.mxu0 0.0
        %4100 = vmatprep.subr.mxu0 0.0
        %4101 = vmatpush1.msra.mxu0 0.0
        %4102 = vmatprep.subr.mxu0 0.0
        %4103 = vmatpush1.msra.mxu0 0.0
        %4104 = vmatprep.subr.mxu0 0.0
        %4105 = vmatpush1.msra.mxu0 0.0
        %4106 = vmatprep.subr.mxu0 0.0
        %4107 = vmatpush1.msra.mxu0 0.0
        %4108 = vmatprep.subr.mxu0 0.0
        %4109 = vmatpush1.msra.mxu0 0.0
        %4110 = vmatprep.subr.mxu0 0.0
        %4111 = vmatpush1.msra.mxu0 0.0
        %4112 = vmatprep.subr.mxu0 0.0
        %4113 = vmatpush1.msra.mxu0 0.0
        %4114 = vmatprep.subr.mxu0 0.0
        %4115 = vmatpush1.msra.mxu0 0.0
        %4116 = vmatprep.subr.mxu0 0.0
        %4117 = vmatpush1.msra.mxu0 0.0
        %4118 = vmatprep.subr.mxu0 0.0
        %4119 = vmatpush1.msra.mxu0 0.0
        %4120 = vmatprep.subr.mxu0 0.0
        %4121 = vmatpush1.msra.mxu0 0.0
        %4122 = vmatprep.subr.mxu0 0.0
        %4123 = vmatpush1.msra.mxu0 0.0
        %4124 = vmatprep.subr.mxu0 0.0
        %4125 = vmatpush1.msra.mxu0 0.0
        %4126 = vmatprep.subr.mxu0 0.0
        %4127 = vmatpush1.msra.mxu0 0.0
        %4128 = vmatprep.subr.mxu0 0.0
        %4129 = vmatpush1.msra.mxu0 0.0
        %4130 = vmatprep.subr.mxu0 0.0
        %4131 = vmatpush1.msra.mxu0 0.0
        %4132 = vmatprep.subr.mxu0 0.0
        %4133 = vmatpush1.msra.mxu0 0.0
        %4134 = vmatprep.subr.mxu0 0.0
        %4135 = vmatpush1.msra.mxu0 0.0
        %4136 = vmatprep.mubr.f32.mxu0 0.0
        %4137 = vmatmul.mubr.f32.gmra.mrb[0].mxu0 %v4067
        %v4138 = vpop.f32.mrb[0].mxu0
        %v4139 = vadd.f32 0.0, %v4138
        %v4140 = vpop.f32.mrb[0].mxu0
        %4141 = vmatprep.mubr.f32.mxu0 0.0
        %4142 = vmatmul.mubr.f32.gmra.mrb[0].mxu0 %v4070
        %v4143 = vpop.f32.mrb[0].mxu0
        %v4144 = vadd.f32 0.0, %v4143
        %v4145 = vpop.f32.mrb[0].mxu0
        %4146 = vdwg.mxu0
        %4147 = vrot.lane.b32.xlu0 %v2805, 104
        %v4148 = vpop.permute.xlu0 %4147
        %4149 = vrot.lane.b32.xlu0 %v2810, 104
        %v4150 = vpop.permute.xlu0 %4149
        %4151 = vrot.lane.b32.xlu0 %v2900, 104
        %v4152 = vpop.permute.xlu0 %4151
        %v4153 = vsel %vm1002, %v4148, 0
        %v4155 = vsel %vm1002, %v4150, 0
        %v4157 = vsel %vm1002, %v4152, 0
        %4159 = vmatprep.subr.mxu0 0.0
        %4160 = vmatpush1.xpose.msra.mxu0 %v4157
        %4161 = vmatprep.subr.mxu0 0.0
        %4162 = vmatpush1.xpose.msra.mxu0 0.0
        %4163 = vmatprep.subr.mxu0 0.0
        %4164 = vmatpush1.xpose.msra.mxu0 0.0
        %4165 = vmatprep.subr.mxu0 0.0
        %4166 = vmatpush1.xpose.msra.mxu0 0.0
        %4167 = vmatprep.subr.mxu0 0.0
        %4168 = vmatpush1.xpose.msra.mxu0 0.0
        %4169 = vmatprep.subr.mxu0 0.0
        %4170 = vmatpush1.xpose.msra.mxu0 0.0
        %4171 = vmatprep.subr.mxu0 0.0
        %4172 = vmatpush1.xpose.msra.mxu0 0.0
        %4173 = vmatprep.subr.mxu0 0.0
        %4174 = vmatpush1.xpose.msra.mxu0 0.0
        %4175 = vmatprep.subr.mxu0 0.0
        %4176 = vmatpush1.xpose.msra.mxu0 0.0
        %4177 = vmatprep.subr.mxu0 0.0
        %4178 = vmatpush1.xpose.msra.mxu0 0.0
        %4179 = vmatprep.subr.mxu0 0.0
        %4180 = vmatpush1.xpose.msra.mxu0 0.0
        %4181 = vmatprep.subr.mxu0 0.0
        %4182 = vmatpush1.xpose.msra.mxu0 0.0
        %4183 = vmatprep.subr.mxu0 0.0
        %4184 = vmatpush1.xpose.msra.mxu0 0.0
        %4185 = vmatprep.subr.mxu0 0.0
        %4186 = vmatpush1.xpose.msra.mxu0 0.0
        %4187 = vmatprep.subr.mxu0 0.0
        %4188 = vmatpush1.xpose.msra.mxu0 0.0
        %4189 = vmatprep.subr.mxu0 0.0
        %4190 = vmatpush1.xpose.msra.mxu0 0.0
        %4191 = vmatprep.subr.mxu0 0.0
        %4192 = vmatpush1.xpose.msra.mxu0 0.0
        %4193 = vmatprep.subr.mxu0 0.0
        %4194 = vmatpush1.xpose.msra.mxu0 0.0
        %4195 = vmatprep.subr.mxu0 0.0
        %4196 = vmatpush1.xpose.msra.mxu0 0.0
        %4197 = vmatprep.subr.mxu0 0.0
        %4198 = vmatpush1.xpose.msra.mxu0 0.0
        %4199 = vmatprep.subr.mxu0 0.0
        %4200 = vmatpush1.xpose.msra.mxu0 0.0
        %4201 = vmatprep.subr.mxu0 0.0
        %4202 = vmatpush1.xpose.msra.mxu0 0.0
        %4203 = vmatprep.subr.mxu0 0.0
        %4204 = vmatpush1.xpose.msra.mxu0 0.0
        %4205 = vmatprep.subr.mxu0 0.0
        %4206 = vmatpush1.xpose.msra.mxu0 0.0
        %4207 = vmatprep.subr.mxu0 0.0
        %4208 = vmatpush1.xpose.msra.mxu0 0.0
        %4209 = vmatprep.subr.mxu0 0.0
        %4210 = vmatpush1.xpose.msra.mxu0 0.0
        %4211 = vmatprep.subr.mxu0 0.0
        %4212 = vmatpush1.xpose.msra.mxu0 0.0
        %4213 = vmatprep.subr.mxu0 0.0
        %4214 = vmatpush1.xpose.msra.mxu0 0.0
        %4215 = vmatprep.subr.mxu0 0.0
        %4216 = vmatpush1.xpose.msra.mxu0 0.0
        %4217 = vmatprep.subr.mxu0 0.0
        %4218 = vmatpush1.xpose.msra.mxu0 0.0
        %4219 = vmatprep.subr.mxu0 0.0
        %4220 = vmatpush1.xpose.msra.mxu0 0.0
        %4221 = vmatprep.subr.mxu0 0.0
        %4222 = vmatpush1.xpose.msra.mxu0 0.0
        %4223 = vmatprep.mubr.f32.mxu0 0.0
        %4224 = vmatmul.mubr.f32.gmra.mrb[0].mxu0 %v4153
        %v4225 = vpop.f32.mrb[0].mxu0
        %v4226 = vadd.f32 0.0, %v4225
        %v4227 = vpop.f32.mrb[0].mxu0
        %4228 = vmatprep.mubr.f32.mxu0 0.0
        %4229 = vmatmul.mubr.f32.gmra.mrb[0].mxu0 %v4155
        %v4230 = vpop.f32.mrb[0].mxu0
        %v4231 = vadd.f32 0.0, %v4230
        %v4232 = vpop.f32.mrb[0].mxu0
        %4233 = vdwg.mxu0
        %4234 = vrot.lane.b32.xlu0 %v2815, 104
        %v4235 = vpop.permute.xlu0 %4234
        %4236 = vrot.lane.b32.xlu0 %v2820, 104
        %v4237 = vpop.permute.xlu0 %4236
        %4238 = vrot.lane.b32.xlu0 %v2905, 104
        %v4239 = vpop.permute.xlu0 %4238
        %v4240 = vsel %vm1002, %v4235, 0
        %v4242 = vsel %vm1002, %v4237, 0
        %v4244 = vsel %vm1002, %v4239, 0
        %4246 = vmatprep.subr.mxu0 0.0
        %4247 = vmatpush1.xpose.msra.mxu0 %v4244
        %4248 = vmatprep.subr.mxu0 0.0
        %4249 = vmatpush1.xpose.msra.mxu0 0.0
        %4250 = vmatprep.subr.mxu0 0.0
        %4251 = vmatpush1.xpose.msra.mxu0 0.0
        %4252 = vmatprep.subr.mxu0 0.0
        %4253 = vmatpush1.xpose.msra.mxu0 0.0
        %4254 = vmatprep.subr.mxu0 0.0
        %4255 = vmatpush1.xpose.msra.mxu0 0.0
        %4256 = vmatprep.subr.mxu0 0.0
        %4257 = vmatpush1.xpose.msra.mxu0 0.0
        %4258 = vmatprep.subr.mxu0 0.0
        %4259 = vmatpush1.xpose.msra.mxu0 0.0
        %4260 = vmatprep.subr.mxu0 0.0
        %4261 = vmatpush1.xpose.msra.mxu0 0.0
        %4262 = vmatprep.subr.mxu0 0.0
        %4263 = vmatpush1.xpose.msra.mxu0 0.0
        %4264 = vmatprep.subr.mxu0 0.0
        %4265 = vmatpush1.xpose.msra.mxu0 0.0
        %4266 = vmatprep.subr.mxu0 0.0
        %4267 = vmatpush1.xpose.msra.mxu0 0.0
        %4268 = vmatprep.subr.mxu0 0.0
        %4269 = vmatpush1.xpose.msra.mxu0 0.0
        %4270 = vmatprep.subr.mxu0 0.0
        %4271 = vmatpush1.xpose.msra.mxu0 0.0
        %4272 = vmatprep.subr.mxu0 0.0
        %4273 = vmatpush1.xpose.msra.mxu0 0.0
        %4274 = vmatprep.subr.mxu0 0.0
        %4275 = vmatpush1.xpose.msra.mxu0 0.0
        %4276 = vmatprep.subr.mxu0 0.0
        %4277 = vmatpush1.xpose.msra.mxu0 0.0
        %4278 = vmatprep.subr.mxu0 0.0
        %4279 = vmatpush1.xpose.msra.mxu0 0.0
        %4280 = vmatprep.subr.mxu0 0.0
        %4281 = vmatpush1.xpose.msra.mxu0 0.0
        %4282 = vmatprep.subr.mxu0 0.0
        %4283 = vmatpush1.xpose.msra.mxu0 0.0
        %4284 = vmatprep.subr.mxu0 0.0
        %4285 = vmatpush1.xpose.msra.mxu0 0.0
        %4286 = vmatprep.subr.mxu0 0.0
        %4287 = vmatpush1.xpose.msra.mxu0 0.0
        %4288 = vmatprep.subr.mxu0 0.0
        %4289 = vmatpush1.xpose.msra.mxu0 0.0
        %4290 = vmatprep.subr.mxu0 0.0
        %4291 = vmatpush1.xpose.msra.mxu0 0.0
        %4292 = vmatprep.subr.mxu0 0.0
        %4293 = vmatpush1.xpose.msra.mxu0 0.0
        %4294 = vmatprep.subr.mxu0 0.0
        %4295 = vmatpush1.xpose.msra.mxu0 0.0
        %4296 = vmatprep.subr.mxu0 0.0
        %4297 = vmatpush1.xpose.msra.mxu0 0.0
        %4298 = vmatprep.subr.mxu0 0.0
        %4299 = vmatpush1.xpose.msra.mxu0 0.0
        %4300 = vmatprep.subr.mxu0 0.0
        %4301 = vmatpush1.xpose.msra.mxu0 0.0
        %4302 = vmatprep.subr.mxu0 0.0
        %4303 = vmatpush1.xpose.msra.mxu0 0.0
        %4304 = vmatprep.subr.mxu0 0.0
        %4305 = vmatpush1.xpose.msra.mxu0 0.0
        %4306 = vmatprep.subr.mxu0 0.0
        %4307 = vmatpush1.xpose.msra.mxu0 0.0
        %4308 = vmatprep.subr.mxu0 0.0
        %4309 = vmatpush1.xpose.msra.mxu0 0.0
        %4310 = vmatprep.mubr.f32.mxu0 0.0
        %4311 = vmatmul.mubr.f32.gmra.mrb[0].mxu0 %v4240
        %v4312 = vpop.f32.mrb[0].mxu0
        %v4313 = vadd.f32 0.0, %v4312
        %v4314 = vpop.f32.mrb[0].mxu0
        %4315 = vmatprep.mubr.f32.mxu0 0.0
        %4316 = vmatmul.mubr.f32.gmra.mrb[0].mxu0 %v4242
        %v4317 = vpop.f32.mrb[0].mxu0
        %v4318 = vadd.f32 0.0, %v4317
        %v4319 = vpop.f32.mrb[0].mxu0
        %4320 = vdwg.mxu0
        %v4321 = vmul.f32 %v4226, 0.35355338
        %v4322 = vmul.f32 %v4231, 0.35355338
        %v4323 = vmul.f32 %v4313, 0.35355338
        %v4324 = vmul.f32 %v4318, 0.35355338
        %v4325 = vsel %vm1002, %v4321, -inf
        %4326 = vmax.xlane.f32.xlu0 %v4325
        %v4327 = vpop.xlane.xlu0 %4326
        %v4328 = vsel %vm1002, %v4322, -inf
        %4329 = vmax.xlane.f32.xlu0 %v4328
        %v4330 = vpop.xlane.xlu0 %4329
        %v4331 = vsel %vm1002, %v4323, -inf
        %4332 = vmax.xlane.f32.xlu0 %v4331
        %v4333 = vpop.xlane.xlu0 %4332
        %v4334 = vsel %vm1002, %v4324, -inf
        %4335 = vmax.xlane.f32.xlu0 %v4334
        %v4336 = vpop.xlane.xlu0 %4335
        %v4337 = vsub.f32 %v4321, %v4327
        %v4338 = vsub.f32 %v4322, %v4330
        %v4339 = vsub.f32 %v4323, %v4333
        %v4340 = vsub.f32 %v4324, %v4336
        %v4341 = vmul.f32 %v4337, 1.442695
        %v4342 = vpow.pop %v4341
        %v4343 = vmul.f32 %v4338, 1.442695
        %v4344 = vpow.pop %v4343
        %v4345 = vmul.f32 %v4339, 1.442695
        %v4346 = vpow.pop %v4345
        %v4347 = vmul.f32 %v4340, 1.442695
        %v4348 = vpow.pop %v4347
        %v4349 = vsel %vm1002, %v4342, 0.0
        %4350 = vadd.xlane.f32.xlu0 %v4349
        %v4351 = vpop.xlane.xlu0 %4350
        %v4352 = vsel %vm1002, %v4344, 0.0
        %4353 = vadd.xlane.f32.xlu0 %v4352
        %v4354 = vpop.xlane.xlu0 %4353
        %v4355 = vsel %vm1002, %v4346, 0.0
        %4356 = vadd.xlane.f32.xlu0 %v4355
        %v4357 = vpop.xlane.xlu0 %4356
        %v4358 = vsel %vm1002, %v4348, 0.0
        %4359 = vadd.xlane.f32.xlu0 %v4358
        %v4360 = vpop.xlane.xlu0 %4359
        %v4361 = vrcp.pop %v4351
        %v4362 = vrcp.pop %v4354
        %v4363 = vrcp.pop %v4357
        %v4364 = vrcp.pop %v4360
        %v4365 = vmul.f32 %v4342, %v4361
        %v4366 = vmul.f32 %v4344, %v4362
        %v4367 = vmul.f32 %v4346, %v4363
        %v4368 = vmul.f32 %v4348, %v4364
        %4369 = vrot.lane.b32.xlu0 %v2979, 104
        %v4370 = vpop.permute.xlu0 %4369
        %v4373 = vsel %vm1002, %v4365, 0
        %v4376 = vsel %vm1002, %v4366, 0
        %4378 = vmatprep.subr.mxu0 0.0
        %4379 = vmatpush1.msra.mxu0 %v4370
        %4380 = vmatprep.subr.mxu0 0.0
        %4381 = vmatpush1.msra.mxu0 0.0
        %4382 = vmatprep.subr.mxu0 0.0
        %4383 = vmatpush1.msra.mxu0 0.0
        %4384 = vmatprep.subr.mxu0 0.0
        %4385 = vmatpush1.msra.mxu0 0.0
        %4386 = vmatprep.subr.mxu0 0.0
        %4387 = vmatpush1.msra.mxu0 0.0
        %4388 = vmatprep.subr.mxu0 0.0
        %4389 = vmatpush1.msra.mxu0 0.0
        %4390 = vmatprep.subr.mxu0 0.0
        %4391 = vmatpush1.msra.mxu0 0.0
        %4392 = vmatprep.subr.mxu0 0.0
        %4393 = vmatpush1.msra.mxu0 0.0
        %4394 = vmatprep.subr.mxu0 0.0
        %4395 = vmatpush1.msra.mxu0 0.0
        %4396 = vmatprep.subr.mxu0 0.0
        %4397 = vmatpush1.msra.mxu0 0.0
        %4398 = vmatprep.subr.mxu0 0.0
        %4399 = vmatpush1.msra.mxu0 0.0
        %4400 = vmatprep.subr.mxu0 0.0
        %4401 = vmatpush1.msra.mxu0 0.0
        %4402 = vmatprep.subr.mxu0 0.0
        %4403 = vmatpush1.msra.mxu0 0.0
        %4404 = vmatprep.subr.mxu0 0.0
        %4405 = vmatpush1.msra.mxu0 0.0
        %4406 = vmatprep.subr.mxu0 0.0
        %4407 = vmatpush1.msra.mxu0 0.0
        %4408 = vmatprep.subr.mxu0 0.0
        %4409 = vmatpush1.msra.mxu0 0.0
        %4410 = vmatprep.subr.mxu0 0.0
        %4411 = vmatpush1.msra.mxu0 0.0
        %4412 = vmatprep.subr.mxu0 0.0
        %4413 = vmatpush1.msra.mxu0 0.0
        %4414 = vmatprep.subr.mxu0 0.0
        %4415 = vmatpush1.msra.mxu0 0.0
        %4416 = vmatprep.subr.mxu0 0.0
        %4417 = vmatpush1.msra.mxu0 0.0
        %4418 = vmatprep.subr.mxu0 0.0
        %4419 = vmatpush1.msra.mxu0 0.0
        %4420 = vmatprep.subr.mxu0 0.0
        %4421 = vmatpush1.msra.mxu0 0.0
        %4422 = vmatprep.subr.mxu0 0.0
        %4423 = vmatpush1.msra.mxu0 0.0
        %4424 = vmatprep.subr.mxu0 0.0
        %4425 = vmatpush1.msra.mxu0 0.0
        %4426 = vmatprep.subr.mxu0 0.0
        %4427 = vmatpush1.msra.mxu0 0.0
        %4428 = vmatprep.subr.mxu0 0.0
        %4429 = vmatpush1.msra.mxu0 0.0
        %4430 = vmatprep.subr.mxu0 0.0
        %4431 = vmatpush1.msra.mxu0 0.0
        %4432 = vmatprep.subr.mxu0 0.0
        %4433 = vmatpush1.msra.mxu0 0.0
        %4434 = vmatprep.subr.mxu0 0.0
        %4435 = vmatpush1.msra.mxu0 0.0
        %4436 = vmatprep.subr.mxu0 0.0
        %4437 = vmatpush1.msra.mxu0 0.0
        %4438 = vmatprep.subr.mxu0 0.0
        %4439 = vmatpush1.msra.mxu0 0.0
        %4440 = vmatprep.subr.mxu0 0.0
        %4441 = vmatpush1.msra.mxu0 0.0
        %4442 = vmatprep.mubr.f32.mxu0 0.0
        %4443 = vmatmul.mubr.f32.gmra.mrb[0].mxu0 %v4373
        %v4444 = vpop.f32.mrb[0].mxu0
        %v4445 = vadd.f32 0.0, %v4444
        %v4446 = vpop.f32.mrb[0].mxu0
        %4447 = vmatprep.mubr.f32.mxu0 0.0
        %4448 = vmatmul.mubr.f32.gmra.mrb[0].mxu0 %v4376
        %v4449 = vpop.f32.mrb[0].mxu0
        %v4450 = vadd.f32 0.0, %v4449
        %v4451 = vpop.f32.mrb[0].mxu0
        %4452 = vdwg.mxu0
        %4453 = vrot.lane.b32.xlu0 %v2984, 104
        %v4454 = vpop.permute.xlu0 %4453
        %v4457 = vsel %vm1002, %v4367, 0
        %v4460 = vsel %vm1002, %v4368, 0
        %4462 = vmatprep.subr.mxu0 0.0
        %4463 = vmatpush1.msra.mxu0 %v4454
        %4464 = vmatprep.subr.mxu0 0.0
        %4465 = vmatpush1.msra.mxu0 0.0
        %4466 = vmatprep.subr.mxu0 0.0
        %4467 = vmatpush1.msra.mxu0 0.0
        %4468 = vmatprep.subr.mxu0 0.0
        %4469 = vmatpush1.msra.mxu0 0.0
        %4470 = vmatprep.subr.mxu0 0.0
        %4471 = vmatpush1.msra.mxu0 0.0
        %4472 = vmatprep.subr.mxu0 0.0
        %4473 = vmatpush1.msra.mxu0 0.0
        %4474 = vmatprep.subr.mxu0 0.0
        %4475 = vmatpush1.msra.mxu0 0.0
        %4476 = vmatprep.subr.mxu0 0.0
        %4477 = vmatpush1.msra.mxu0 0.0
        %4478 = vmatprep.subr.mxu0 0.0
        %4479 = vmatpush1.msra.mxu0 0.0
        %4480 = vmatprep.subr.mxu0 0.0
        %4481 = vmatpush1.msra.mxu0 0.0
        %4482 = vmatprep.subr.mxu0 0.0
        %4483 = vmatpush1.msra.mxu0 0.0
        %4484 = vmatprep.subr.mxu0 0.0
        %4485 = vmatpush1.msra.mxu0 0.0
        %4486 = vmatprep.subr.mxu0 0.0
        %4487 = vmatpush1.msra.mxu0 0.0
        %4488 = vmatprep.subr.mxu0 0.0
        %4489 = vmatpush1.msra.mxu0 0.0
        %4490 = vmatprep.subr.mxu0 0.0
        %4491 = vmatpush1.msra.mxu0 0.0
        %4492 = vmatprep.subr.mxu0 0.0
        %4493 = vmatpush1.msra.mxu0 0.0
        %4494 = vmatprep.subr.mxu0 0.0
        %4495 = vmatpush1.msra.mxu0 0.0
        %4496 = vmatprep.subr.mxu0 0.0
        %4497 = vmatpush1.msra.mxu0 0.0
        %4498 = vmatprep.subr.mxu0 0.0
        %4499 = vmatpush1.msra.mxu0 0.0
        %4500 = vmatprep.subr.mxu0 0.0
        %4501 = vmatpush1.msra.mxu0 0.0
        %4502 = vmatprep.subr.mxu0 0.0
        %4503 = vmatpush1.msra.mxu0 0.0
        %4504 = vmatprep.subr.mxu0 0.0
        %4505 = vmatpush1.msra.mxu0 0.0
        %4506 = vmatprep.subr.mxu0 0.0
        %4507 = vmatpush1.msra.mxu0 0.0
        %4508 = vmatprep.subr.mxu0 0.0
        %4509 = vmatpush1.msra.mxu0 0.0
        %4510 = vmatprep.subr.mxu0 0.0
        %4511 = vmatpush1.msra.mxu0 0.0
        %4512 = vmatprep.subr.mxu0 0.0
        %4513 = vmatpush1.msra.mxu0 0.0
        %4514 = vmatprep.subr.mxu0 0.0
        %4515 = vmatpush1.msra.mxu0 0.0
        %4516 = vmatprep.subr.mxu0 0.0
        %4517 = vmatpush1.msra.mxu0 0.0
        %4518 = vmatprep.subr.mxu0 0.0
        %4519 = vmatpush1.msra.mxu0 0.0
        %4520 = vmatprep.subr.mxu0 0.0
        %4521 = vmatpush1.msra.mxu0 0.0
        %4522 = vmatprep.subr.mxu0 0.0
        %4523 = vmatpush1.msra.mxu0 0.0
        %4524 = vmatprep.subr.mxu0 0.0
        %4525 = vmatpush1.msra.mxu0 0.0
        %4526 = vmatprep.mubr.f32.mxu0 0.0
        %4527 = vmatmul.mubr.f32.gmra.mrb[0].mxu0 %v4457
        %v4528 = vpop.f32.mrb[0].mxu0
        %v4529 = vadd.f32 0.0, %v4528
        %v4530 = vpop.f32.mrb[0].mxu0
        %4531 = vmatprep.mubr.f32.mxu0 0.0
        %4532 = vmatmul.mubr.f32.gmra.mrb[0].mxu0 %v4460
        %v4533 = vpop.f32.mrb[0].mxu0
        %v4534 = vadd.f32 0.0, %v4533
        %v4535 = vpop.f32.mrb[0].mxu0
        %4536 = vdwg.mxu0
        %4541 = vrot.lane.b32.xlu0 %v3664, 8
        %v4542 = vpop.permute.xlu0 %4541
        %4543 = vrot.lane.b32.xlu0 %v3669, 8
        %v4544 = vpop.permute.xlu0 %4543
        %4545 = vrot.lane.b32.xlu0 %v3749, 8
        %v4546 = vpop.permute.xlu0 %4545
        %4547 = vrot.lane.b32.xlu0 %v3754, 8
        %v4548 = vpop.permute.xlu0 %4547
        %4557 = vrot.lane.b32.xlu0 %v4055, 16
        %v4558 = vpop.permute.xlu0 %4557
        %4559 = vrot.lane.b32.xlu0 %v4060, 16
        %v4560 = vpop.permute.xlu0 %4559
        %4561 = vrot.lane.b32.xlu0 %v4139, 16
        %v4562 = vpop.permute.xlu0 %4561
        %4563 = vrot.lane.b32.xlu0 %v4144, 16
        %v4564 = vpop.permute.xlu0 %4563
        %4573 = vrot.lane.b32.xlu0 %v4445, 24
        %v4574 = vpop.permute.xlu0 %4573
        %4575 = vrot.lane.b32.xlu0 %v4450, 24
        %v4576 = vpop.permute.xlu0 %4575
        %4577 = vrot.lane.b32.xlu0 %v4529, 24
        %v4578 = vpop.permute.xlu0 %4577
        %4579 = vrot.lane.b32.xlu0 %v4534, 24
        %v4580 = vpop.permute.xlu0 %4579
        %v4585 = vsel %vm1002, %v3276, %v4542
        %v4586 = vsel %vm1002, %v3281, %v4544
        %v4587 = vsel %vm1002, %v3357, %v4546
        %v4588 = vsel %vm1002, %v3362, %v4548
        %v4589 = vsel %vm1163, %v4585, %v4558
        %v4590 = vsel %vm1163, %v4586, %v4560
        %v4591 = vsel %vm1163, %v4587, %v4562
        %v4592 = vsel %vm1163, %v4588, %v4564
        %v4593 = vsel %vm2402, %v4589, %v4574
        %v4594 = vsel %vm2402, %v4590, %v4576
        %v4595 = vsel %vm2402, %v4591, %v4578
        %v4596 = vsel %vm2402, %v4592, %v4580
        %v4597 = vlaneseq
        %v4598 = vshrl.u32 %v4597, 7
        %v4599 = vsub.s32 3, %v4598
        %v4600 = vrot.slane %v2733, %v4599
        %v4602 = vsel %vm730, %v4593, 0
        %v4605 = vsel %vm730, %v4594, 0
        %v4608 = vsel %vm730, %v4595, 0
        %v4611 = vsel %vm730, %v4596, 0
        %4613 = vmatprep.subr.mxu0 0.0
        %4614 = vmatpush1.msra.mxu0 %v2729
        %4615 = vmatprep.subr.mxu0 0.0
        %4616 = vmatpush1.msra.mxu0 %v2730
        %4617 = vmatprep.subr.mxu0 0.0
        %4618 = vmatpush1.msra.mxu0 %v2731
        %4619 = vmatprep.subr.mxu0 0.0
        %4620 = vmatpush1.msra.mxu0 %v2732
        %4621 = vmatprep.subr.mxu0 0.0
        %4622 = vmatpush1.msra.mxu0 0.0
        %4623 = vmatprep.subr.mxu0 0.0
        %4624 = vmatpush1.msra.mxu0 0.0
        %4625 = vmatprep.subr.mxu0 0.0
        %4626 = vmatpush1.msra.mxu0 0.0
        %4627 = vmatprep.subr.mxu0 0.0
        %4628 = vmatpush1.msra.mxu0 0.0
        %4629 = vmatprep.subr.mxu0 0.0
        %4630 = vmatpush1.msra.mxu0 0.0
        %4631 = vmatprep.subr.mxu0 0.0
        %4632 = vmatpush1.msra.mxu0 0.0
        %4633 = vmatprep.subr.mxu0 0.0
        %4634 = vmatpush1.msra.mxu0 0.0
        %4635 = vmatprep.subr.mxu0 0.0
        %4636 = vmatpush1.msra.mxu0 0.0
        %4637 = vmatprep.subr.mxu0 0.0
        %4638 = vmatpush1.msra.mxu0 0.0
        %4639 = vmatprep.subr.mxu0 0.0
        %4640 = vmatpush1.msra.mxu0 0.0
        %4641 = vmatprep.subr.mxu0 0.0
        %4642 = vmatpush1.msra.mxu0 0.0
        %4643 = vmatprep.subr.mxu0 0.0
        %4644 = vmatpush1.msra.mxu0 0.0
        %4645 = vmatprep.subr.mxu0 0.0
        %4646 = vmatpush1.msra.mxu0 0.0
        %4647 = vmatprep.subr.mxu0 0.0
        %4648 = vmatpush1.msra.mxu0 0.0
        %4649 = vmatprep.subr.mxu0 0.0
        %4650 = vmatpush1.msra.mxu0 0.0
        %4651 = vmatprep.subr.mxu0 0.0
        %4652 = vmatpush1.msra.mxu0 0.0
        %4653 = vmatprep.subr.mxu0 0.0
        %4654 = vmatpush1.msra.mxu0 0.0
        %4655 = vmatprep.subr.mxu0 0.0
        %4656 = vmatpush1.msra.mxu0 0.0
        %4657 = vmatprep.subr.mxu0 0.0
        %4658 = vmatpush1.msra.mxu0 0.0
        %4659 = vmatprep.subr.mxu0 0.0
        %4660 = vmatpush1.msra.mxu0 0.0
        %4661 = vmatprep.subr.mxu0 0.0
        %4662 = vmatpush1.msra.mxu0 0.0
        %4663 = vmatprep.subr.mxu0 0.0
        %4664 = vmatpush1.msra.mxu0 0.0
        %4665 = vmatprep.subr.mxu0 0.0
        %4666 = vmatpush1.msra.mxu0 0.0
        %4667 = vmatprep.subr.mxu0 0.0
        %4668 = vmatpush1.msra.mxu0 0.0
        %4669 = vmatprep.subr.mxu0 0.0
        %4670 = vmatpush1.msra.mxu0 0.0
        %4671 = vmatprep.subr.mxu0 0.0
        %4672 = vmatpush1.msra.mxu0 0.0
        %4673 = vmatprep.subr.mxu0 0.0
        %4674 = vmatpush1.msra.mxu0 0.0
        %4675 = vmatprep.subr.mxu0 0.0
        %4676 = vmatpush1.msra.mxu0 0.0
        %4677 = vmatprep.mubr.f32.mxu0 0.0
        %4678 = vmatmul.mubr.f32.gmra.mrb[0].mxu0 %v4602
        %v4679 = vpop.f32.mrb[0].mxu0
        %v4680 = vadd.f32 %v4600, %v4679
        %v4681 = vpop.f32.mrb[0].mxu0
        %4682 = vmatprep.mubr.f32.mxu0 0.0
        %4683 = vmatmul.mubr.f32.gmra.mrb[0].mxu0 %v4605
        %v4684 = vpop.f32.mrb[0].mxu0
        %v4685 = vadd.f32 %v4600, %v4684
        %v4686 = vpop.f32.mrb[0].mxu0
        %4687 = vmatprep.mubr.f32.mxu0 0.0
        %4688 = vmatmul.mubr.f32.gmra.mrb[0].mxu0 %v4608
        %v4689 = vpop.f32.mrb[0].mxu0
        %v4690 = vadd.f32 %v4600, %v4689
        %v4691 = vpop.f32.mrb[0].mxu0
        %4692 = vmatprep.mubr.f32.mxu0 0.0
        %4693 = vmatmul.mubr.f32.gmra.mrb[0].mxu0 %v4611
        %v4694 = vpop.f32.mrb[0].mxu0
        %v4695 = vadd.f32 %v4600, %v4694
        %v4696 = vpop.f32.mrb[0].mxu0
        %4697 = vdwg.mxu0
        %v4698 = vld [vmem:[%s585] sm:$0xff]
        %v4699 = vld [vmem:[%s585 + $0x8] sm:$0xff]
        %v4700 = vld [vmem:[%s585 + $0x10] sm:$0xff]
        %v4701 = vld [vmem:[%s585 + $0x18] sm:$0xff]
        %v4702 = vld [vmem:[%s585 + $0x20] sm:$0xff]
        %v4703 = vld [vmem:[%s585 + $0x28] sm:$0xff]
        %v4704 = vld [vmem:[%s585 + $0x30] sm:$0xff]
        %v4705 = vld [vmem:[%s585 + $0x38] sm:$0xff]
        %v4706 = vld [vmem:[%s681] sm:$0x3]
        %v4707 = vld [vmem:[%s685] sm:$0x3]
        %v4708 = vlaneseq
        %v4709 = vshrl.u32 %v4708, 7
        %v4710 = vsub.s32 0, %v4709
        %v4711 = vrot.slane %v4706, %v4710
        %v4713 = vsel %vm730, %v4680, 0
        %v4716 = vsel %vm730, %v4685, 0
        %v4719 = vsel %vm730, %v4690, 0
        %v4722 = vsel %vm730, %v4695, 0
        %4724 = vmatprep.subr.mxu0 0.0
        %4725 = vmatpush1.msra.mxu0 %v4698
        %4726 = vmatprep.subr.mxu0 0.0
        %4727 = vmatpush1.msra.mxu0 %v4699
        %4728 = vmatprep.subr.mxu0 0.0
        %4729 = vmatpush1.msra.mxu0 %v4700
        %4730 = vmatprep.subr.mxu0 0.0
        %4731 = vmatpush1.msra.mxu0 %v4701
        %4732 = vmatprep.subr.mxu0 0.0
        %4733 = vmatpush1.msra.mxu0 0.0
        %4734 = vmatprep.subr.mxu0 0.0
        %4735 = vmatpush1.msra.mxu0 0.0
        %4736 = vmatprep.subr.mxu0 0.0
        %4737 = vmatpush1.msra.mxu0 0.0
        %4738 = vmatprep.subr.mxu0 0.0
        %4739 = vmatpush1.msra.mxu0 0.0
        %4740 = vmatprep.subr.mxu0 0.0
        %4741 = vmatpush1.msra.mxu0 0.0
        %4742 = vmatprep.subr.mxu0 0.0
        %4743 = vmatpush1.msra.mxu0 0.0
        %4744 = vmatprep.subr.mxu0 0.0
        %4745 = vmatpush1.msra.mxu0 0.0
        %4746 = vmatprep.subr.mxu0 0.0
        %4747 = vmatpush1.msra.mxu0 0.0
        %4748 = vmatprep.subr.mxu0 0.0
        %4749 = vmatpush1.msra.mxu0 0.0
        %4750 = vmatprep.subr.mxu0 0.0
        %4751 = vmatpush1.msra.mxu0 0.0
        %4752 = vmatprep.subr.mxu0 0.0
        %4753 = vmatpush1.msra.mxu0 0.0
        %4754 = vmatprep.subr.mxu0 0.0
        %4755 = vmatpush1.msra.mxu0 0.0
        %4756 = vmatprep.subr.mxu0 0.0
        %4757 = vmatpush1.msra.mxu0 0.0
        %4758 = vmatprep.subr.mxu0 0.0
        %4759 = vmatpush1.msra.mxu0 0.0
        %4760 = vmatprep.subr.mxu0 0.0
        %4761 = vmatpush1.msra.mxu0 0.0
        %4762 = vmatprep.subr.mxu0 0.0
        %4763 = vmatpush1.msra.mxu0 0.0
        %4764 = vmatprep.subr.mxu0 0.0
        %4765 = vmatpush1.msra.mxu0 0.0
        %4766 = vmatprep.subr.mxu0 0.0
        %4767 = vmatpush1.msra.mxu0 0.0
        %4768 = vmatprep.subr.mxu0 0.0
        %4769 = vmatpush1.msra.mxu0 0.0
        %4770 = vmatprep.subr.mxu0 0.0
        %4771 = vmatpush1.msra.mxu0 0.0
        %4772 = vmatprep.subr.mxu0 0.0
        %4773 = vmatpush1.msra.mxu0 0.0
        %4774 = vmatprep.subr.mxu0 0.0
        %4775 = vmatpush1.msra.mxu0 0.0
        %4776 = vmatprep.subr.mxu0 0.0
        %4777 = vmatpush1.msra.mxu0 0.0
        %4778 = vmatprep.subr.mxu0 0.0
        %4779 = vmatpush1.msra.mxu0 0.0
        %4780 = vmatprep.subr.mxu0 0.0
        %4781 = vmatpush1.msra.mxu0 0.0
        %4782 = vmatprep.subr.mxu0 0.0
        %4783 = vmatpush1.msra.mxu0 0.0
        %4784 = vmatprep.subr.mxu0 0.0
        %4785 = vmatpush1.msra.mxu0 0.0
        %4786 = vmatprep.subr.mxu0 0.0
        %4787 = vmatpush1.msra.mxu0 0.0
        %4788 = vmatprep.mubr.f32.mxu0 0.0
        %4789 = vmatmul.mubr.f32.gmra.mrb[0].mxu0 %v4713
        %v4790 = vpop.f32.mrb[0].mxu0
        %v4791 = vadd.f32 %v4711, %v4790
        %v4792 = vpop.f32.mrb[0].mxu0
        %4793 = vmatprep.mubr.f32.mxu0 0.0
        %4794 = vmatmul.mubr.f32.gmra.mrb[0].mxu0 %v4716
        %v4795 = vpop.f32.mrb[0].mxu0
        %v4796 = vadd.f32 %v4711, %v4795
        %v4797 = vpop.f32.mrb[0].mxu0
        %4798 = vmatprep.mubr.f32.mxu0 0.0
        %4799 = vmatmul.mubr.f32.gmra.mrb[0].mxu0 %v4719
        %v4800 = vpop.f32.mrb[0].mxu0
        %v4801 = vadd.f32 %v4711, %v4800
        %v4802 = vpop.f32.mrb[0].mxu0
        %4803 = vmatprep.mubr.f32.mxu0 0.0
        %4804 = vmatmul.mubr.f32.gmra.mrb[0].mxu0 %v4722
        %v4805 = vpop.f32.mrb[0].mxu0
        %v4806 = vadd.f32 %v4711, %v4805
        %v4807 = vpop.f32.mrb[0].mxu0
        %4808 = vdwg.mxu0
        %vm4809 = vcmp.gt.f32.partialorder %v4791, 0.0
        %vm4810 = vcmp.gt.f32.partialorder %v4796, 0.0
        %vm4811 = vcmp.gt.f32.partialorder %v4801, 0.0
        %vm4812 = vcmp.gt.f32.partialorder %v4806, 0.0
        %v4813 = vmul.f32 %v4791, 0.01
        %v4814 = vmul.f32 %v4796, 0.01
        %v4815 = vmul.f32 %v4801, 0.01
        %v4816 = vmul.f32 %v4806, 0.01
        %v4817 = vsel %vm4809, %v4791, %v4813
        %v4818 = vsel %vm4810, %v4796, %v4814
        %v4819 = vsel %vm4811, %v4801, %v4815
        %v4820 = vsel %vm4812, %v4806, %v4816
        %v4821 = vlaneseq
        %v4822 = vshrl.u32 %v4821, 7
        %v4823 = vsub.s32 1, %v4822
        %v4824 = vrot.slane %v4706, %v4823
        %v4826 = vsel %vm730, %v4817, 0
        %v4829 = vsel %vm730, %v4818, 0
        %v4832 = vsel %vm730, %v4819, 0
        %v4835 = vsel %vm730, %v4820, 0
        %4837 = vmatprep.subr.mxu0 0.0
        %4838 = vmatpush1.msra.mxu0 %v4702
        %4839 = vmatprep.subr.mxu0 0.0
        %4840 = vmatpush1.msra.mxu0 %v4703
        %4841 = vmatprep.subr.mxu0 0.0
        %4842 = vmatpush1.msra.mxu0 %v4704
        %4843 = vmatprep.subr.mxu0 0.0
        %4844 = vmatpush1.msra.mxu0 %v4705
        %4845 = vmatprep.subr.mxu0 0.0
        %4846 = vmatpush1.msra.mxu0 0.0
        %4847 = vmatprep.subr.mxu0 0.0
        %4848 = vmatpush1.msra.mxu0 0.0
        %4849 = vmatprep.subr.mxu0 0.0
        %4850 = vmatpush1.msra.mxu0 0.0
        %4851 = vmatprep.subr.mxu0 0.0
        %4852 = vmatpush1.msra.mxu0 0.0
        %4853 = vmatprep.subr.mxu0 0.0
        %4854 = vmatpush1.msra.mxu0 0.0
        %4855 = vmatprep.subr.mxu0 0.0
        %4856 = vmatpush1.msra.mxu0 0.0
        %4857 = vmatprep.subr.mxu0 0.0
        %4858 = vmatpush1.msra.mxu0 0.0
        %4859 = vmatprep.subr.mxu0 0.0
        %4860 = vmatpush1.msra.mxu0 0.0
        %4861 = vmatprep.subr.mxu0 0.0
        %4862 = vmatpush1.msra.mxu0 0.0
        %4863 = vmatprep.subr.mxu0 0.0
        %4864 = vmatpush1.msra.mxu0 0.0
        %4865 = vmatprep.subr.mxu0 0.0
        %4866 = vmatpush1.msra.mxu0 0.0
        %4867 = vmatprep.subr.mxu0 0.0
        %4868 = vmatpush1.msra.mxu0 0.0
        %4869 = vmatprep.subr.mxu0 0.0
        %4870 = vmatpush1.msra.mxu0 0.0
        %4871 = vmatprep.subr.mxu0 0.0
        %4872 = vmatpush1.msra.mxu0 0.0
        %4873 = vmatprep.subr.mxu0 0.0
        %4874 = vmatpush1.msra.mxu0 0.0
        %4875 = vmatprep.subr.mxu0 0.0
        %4876 = vmatpush1.msra.mxu0 0.0
        %4877 = vmatprep.subr.mxu0 0.0
        %4878 = vmatpush1.msra.mxu0 0.0
        %4879 = vmatprep.subr.mxu0 0.0
        %4880 = vmatpush1.msra.mxu0 0.0
        %4881 = vmatprep.subr.mxu0 0.0
        %4882 = vmatpush1.msra.mxu0 0.0
        %4883 = vmatprep.subr.mxu0 0.0
        %4884 = vmatpush1.msra.mxu0 0.0
        %4885 = vmatprep.subr.mxu0 0.0
        %4886 = vmatpush1.msra.mxu0 0.0
        %4887 = vmatprep.subr.mxu0 0.0
        %4888 = vmatpush1.msra.mxu0 0.0
        %4889 = vmatprep.subr.mxu0 0.0
        %4890 = vmatpush1.msra.mxu0 0.0
        %4891 = vmatprep.subr.mxu0 0.0
        %4892 = vmatpush1.msra.mxu0 0.0
        %4893 = vmatprep.subr.mxu0 0.0
        %4894 = vmatpush1.msra.mxu0 0.0
        %4895 = vmatprep.subr.mxu0 0.0
        %4896 = vmatpush1.msra.mxu0 0.0
        %4897 = vmatprep.subr.mxu0 0.0
        %4898 = vmatpush1.msra.mxu0 0.0
        %4899 = vmatprep.subr.mxu0 0.0
        %4900 = vmatpush1.msra.mxu0 0.0
        %4901 = vmatprep.mubr.f32.mxu0 0.0
        %4902 = vmatmul.mubr.f32.gmra.mrb[0].mxu0 %v4826
        %v4903 = vpop.f32.mrb[0].mxu0
        %v4904 = vadd.f32 %v4824, %v4903
        %v4905 = vpop.f32.mrb[0].mxu0
        %4906 = vmatprep.mubr.f32.mxu0 0.0
        %4907 = vmatmul.mubr.f32.gmra.mrb[0].mxu0 %v4829
        %v4908 = vpop.f32.mrb[0].mxu0
        %v4909 = vadd.f32 %v4824, %v4908
        %v4910 = vpop.f32.mrb[0].mxu0
        %4911 = vmatprep.mubr.f32.mxu0 0.0
        %4912 = vmatmul.mubr.f32.gmra.mrb[0].mxu0 %v4832
        %v4913 = vpop.f32.mrb[0].mxu0
        %v4914 = vadd.f32 %v4824, %v4913
        %v4915 = vpop.f32.mrb[0].mxu0
        %4916 = vmatprep.mubr.f32.mxu0 0.0
        %4917 = vmatmul.mubr.f32.gmra.mrb[0].mxu0 %v4835
        %v4918 = vpop.f32.mrb[0].mxu0
        %v4919 = vadd.f32 %v4824, %v4918
        %v4920 = vpop.f32.mrb[0].mxu0
        %4921 = vdwg.mxu0
        %v4922 = vadd.f32 %v4904, %v4680
        %v4923 = vadd.f32 %v4909, %v4685
        %v4924 = vadd.f32 %v4914, %v4690
        %v4925 = vadd.f32 %v4919, %v4695
        %v4926 = vsel %vm730, %v4922, 0.0
        %4927 = vadd.xlane.f32.xlu0 %v4926
        %v4928 = vpop.xlane.xlu0 %4927
        %v4929 = vsel %vm730, %v4923, 0.0
        %4930 = vadd.xlane.f32.xlu0 %v4929
        %v4931 = vpop.xlane.xlu0 %4930
        %v4932 = vsel %vm730, %v4924, 0.0
        %4933 = vadd.xlane.f32.xlu0 %v4932
        %v4934 = vpop.xlane.xlu0 %4933
        %v4935 = vsel %vm730, %v4925, 0.0
        %4936 = vadd.xlane.f32.xlu0 %v4935
        %v4937 = vpop.xlane.xlu0 %4936
        %v4938 = vmul.f32 %v4928, %v2684
        %v4939 = vmul.f32 %v4931, %v2684
        %v4940 = vmul.f32 %v4934, %v2684
        %v4941 = vmul.f32 %v4937, %v2684
        %v4942 = vsub.f32 %v4922, %v4938
        %v4943 = vsub.f32 %v4923, %v4939
        %v4944 = vsub.f32 %v4924, %v4940
        %v4945 = vsub.f32 %v4925, %v4941
        %v4946 = vmul.f32 %v4942, %v4942
        %v4947 = vmul.f32 %v4943, %v4943
        %v4948 = vmul.f32 %v4944, %v4944
        %v4949 = vmul.f32 %v4945, %v4945
        %v4950 = vsel %vm730, %v4946, 0.0
        %4951 = vadd.xlane.f32.xlu0 %v4950
        %v4952 = vpop.xlane.xlu0 %4951
        %v4953 = vsel %vm730, %v4947, 0.0
        %4954 = vadd.xlane.f32.xlu0 %v4953
        %v4955 = vpop.xlane.xlu0 %4954
        %v4956 = vsel %vm730, %v4948, 0.0
        %4957 = vadd.xlane.f32.xlu0 %v4956
        %v4958 = vpop.xlane.xlu0 %4957
        %v4959 = vsel %vm730, %v4949, 0.0
        %4960 = vadd.xlane.f32.xlu0 %v4959
        %v4961 = vpop.xlane.xlu0 %4960
        %v4962 = vmul.f32 %v4952, %v2684
        %v4963 = vmul.f32 %v4955, %v2684
        %v4964 = vmul.f32 %v4958, %v2684
        %v4965 = vmul.f32 %v4961, %v2684
        %v4966 = vadd.f32 %v4962, 1e-05
        %v4967 = vadd.f32 %v4963, 1e-05
        %v4968 = vadd.f32 %v4964, 1e-05
        %v4969 = vadd.f32 %v4965, 1e-05
        %v4970 = vrsqrt.pop %v4966
        %v4971 = vrsqrt.pop %v4967
        %v4972 = vrsqrt.pop %v4968
        %v4973 = vrsqrt.pop %v4969
        %v4974 = vmul.f32 %v4942, %v4970
        %v4975 = vmul.f32 %v4943, %v4971
        %v4976 = vmul.f32 %v4944, %v4972
        %v4977 = vmul.f32 %v4945, %v4973
        %v4978 = vlaneseq
        %v4979 = vshrl.u32 %v4978, 7
        %v4980 = vsub.s32 0, %v4979
        %v4981 = vrot.slane %v4707, %v4980
        %v4982 = vmul.f32 %v4974, %v4981
        %v4983 = vmul.f32 %v4975, %v4981
        %v4984 = vmul.f32 %v4976, %v4981
        %v4985 = vmul.f32 %v4977, %v4981
        %v4986 = vlaneseq
        %v4987 = vshrl.u32 %v4986, 7
        %v4988 = vsub.s32 1, %v4987
        %v4989 = vrot.slane %v4707, %v4988
        %v4990 = vadd.f32 %v4982, %v4989
        %v4991 = vadd.f32 %v4983, %v4989
        %v4992 = vadd.f32 %v4984, %v4989
        %v4993 = vadd.f32 %v4985, %v4989
        %4994 = vst.msk [vmem:[#allocation11] sm:$0xff] %vm730, %v2715
        %4995 = vst.msk [vmem:[#allocation11 + $0x8] sm:$0xff] %vm730, %v2716
        %4996 = vst.msk [vmem:[#allocation12] sm:$0xff] %vm730, %v4990
        %4997 = vst.msk [vmem:[#allocation12 + $0x8] sm:$0xff] %vm730, %v4991
        %4998 = vst.msk [vmem:[#allocation12 + $0x10] sm:$0xff] %vm730, %v4992
        %4999 = vst.msk [vmem:[#allocation12 + $0x18] sm:$0xff] %vm730, %v4993
        // Predicated region
        $region97: #{tpu_custom_call.1} parent=67 // pred_check
          %p5000 = pneg %p344
        $region98: #{tpu_custom_call.1} parent=67 // pred_check_branch
          %5002 = sbr.rel (%p5000) target = $region100
        $region99: #{tpu_custom_call.1} parent=67 // pred_region
          %s5004 = ssub.s32 256, 256
          %5005 = vsyncadd [#allocation4], %s5004
          %s5006 = sshll.u32 [#allocation11], 4
          %s5007 = int_to_ptr.vmem [resolvable:$true] %s5006
          %5012 = dma.vmem_to_hbm [thread:$0]  %s5007, 256, %s12, [#allocation4], 128, 128, 8
        $region100: #{tpu_custom_call.1} parent=67 // pred_fallthru
          _
        // Predicated region
        $region101: #{tpu_custom_call.1} parent=67 // pred_check
          %p5013 = pneg %p365
        $region102: #{tpu_custom_call.1} parent=67 // pred_check_branch
          %5015 = sbr.rel (%p5013) target = $region104
        $region103: #{tpu_custom_call.1} parent=67 // pred_region
          %s5017 = ssub.s32 512, 512
          %5018 = vsyncadd [#allocation13], %s5017
          %s5019 = sshll.u32 [#allocation12], 4
          %s5020 = int_to_ptr.vmem [resolvable:$true] %s5019
          %5025 = dma.vmem_to_hbm [thread:$0]  %s5020, 512, %s13, [#allocation13], 128, 128, 8
        $region104: #{tpu_custom_call.1} parent=67 // pred_fallthru
          _
        // Predicated region
        $region105: #{tpu_custom_call.1} parent=67 // pred_check
          %p5026 = pneg %p344
        $region106: #{tpu_custom_call.1} parent=67 // pred_check_branch
          %5028 = sbr.rel (%p5026) target = $region108
        $region107: #{tpu_custom_call.1} parent=67 // pred_region
          %5029 = dma.done [#allocation4], 256
        $region108: #{tpu_custom_call.1} parent=67 // pred_fallthru
          _
        // Predicated region
        $region109: #{tpu_custom_call.1} parent=67 // pred_check
          %p5030 = pneg %p365
        $region110: #{tpu_custom_call.1} parent=67 // pred_check_branch
          %5032 = sbr.rel (%p5030) target = $region112
        $region111: #{tpu_custom_call.1} parent=67 // pred_region
          %5033 = dma.done [#allocation13], 512
        $region112: #{tpu_custom_call.1} parent=67 // pred_fallthru
          _
      $region68: #{tpu_custom_call.1} parent=5 // pred_fallthru
        _
      %p5034 = scmp.le.s32.totalorder 2, %s24
      // Predicated region
      $region113: #{tpu_custom_call.1} parent=5 // pred_check
        %p5035 = pneg %p5034
      $region114: #{tpu_custom_call.1} parent=5 // pred_check_branch
        %5037 = sbr.rel (%p5035) target = $region116
      $region115: #{tpu_custom_call.1} parent=5 // pred_region
        %s5038 = ssub.s32 %s24, 2
      $region116: #{tpu_custom_call.1} parent=5 // pred_fallthru
        _
    $region6: #{tpu_custom_call.1} parent=1 // loop_footer
      %s28 = sadd.s32 1, %s24
    $region7: #{tpu_custom_call.1} parent=1 // loop_footer_branch
      %23 = sbr.rel target = $region3
    $region8: #{tpu_custom_call.1} parent=1 // loop_exit
      _
    %5039 = vsyncpa [#allocation3], 1
    %s5040 = scalar_lea.sflag [#allocation3], 1
    %5041 = vsyncpa %s5040, 1
    %5042 = vsyncpa [#allocation6], 1
    %5043 = vsyncpa [#allocation4], 1
    %s5044 = scalar_lea.sflag [#allocation4], 1
    %5045 = vsyncpa %s5044, 1
    %5046 = vsyncpa [#allocation13], 1

</llo_original>
